<compile_context>
chip_gen: v7x
topology: tpu7x:2x2x1
jax: 0.10.0
libtpu: 0.0.40
codegen_flags: <defaults>
</compile_context>

<pallas_src>
import jax
import jax.numpy as jnp
from jax import lax
from jax.experimental import pallas as pl
from jax.experimental.pallas import tpu as pltpu

# ----- small DistilBERT-like config (synthetic init, not a checkpoint load) -----
VOCAB = 128
MAX_POS = 32
HIDDEN = 64
N_HEADS = 4
HEAD_DIM = HIDDEN // N_HEADS
FFN = 128
N_LAYERS = 2
LN_EPS = 1e-12
SCALE = 1.0 / (HEAD_DIM ** 0.5)
MASK_BIG_NEG = -1e9  # additive bias for masked keys


def _layer_norm(x, g, b):
    mean = jnp.mean(x, axis=-1, keepdims=True)
    xc = x - mean
    var = jnp.mean(xc * xc, axis=-1, keepdims=True)  # biased, like torch LayerNorm
    return xc * lax.rsqrt(var + LN_EPS) * g + b


# --------------------------- fused Pallas kernel ----------------------------
def _fused_forward_kernel(
    x_ref, bias_ref,
    emb_g_ref, emb_b_ref,
    qkv_w_ref, qkv_b_ref, o_w_ref, o_b_ref,
    ln1_g_ref, ln1_b_ref,
    ffn1_w_ref, ffn1_b_ref, ffn2_w_ref, ffn2_b_ref,
    ln2_g_ref, ln2_b_ref,
    reg_w_ref, reg_b_ref,
    out_ref,
    act_ref,
):
    layer = pl.program_id(1)

    # Embedding LayerNorm once per sequence (first layer step); the result
    # lives in the VMEM scratch across the whole layer axis.
    @pl.when(layer == 0)
    def _():
        act_ref[...] = _layer_norm(x_ref[0], emb_g_ref[...], emb_b_ref[...])

    x = act_ref[...]                       # (S, H) f32, VMEM-resident
    x_mx = x.astype(jnp.bfloat16)
    bias = bias_ref[0]                     # (1, S) additive key mask

    # ---- multi-head self-attention: per-head weight slabs (leading-dim
    # indexed, no lane slicing), output projection folded into per-head
    # accumulation (no concatenates) ----
    attn = None
    for h in range(N_HEADS):
        q = (jnp.dot(x_mx, qkv_w_ref[0, h],
                     preferred_element_type=jnp.float32) + qkv_b_ref[0, h])
        k = (jnp.dot(x_mx, qkv_w_ref[0, N_HEADS + h],
                     preferred_element_type=jnp.float32) + qkv_b_ref[0, N_HEADS + h])
        v = (jnp.dot(x_mx, qkv_w_ref[0, 2 * N_HEADS + h],
                     preferred_element_type=jnp.float32) + qkv_b_ref[0, 2 * N_HEADS + h])
        # contract last axes of both (no explicit K transpose); 1/sqrt(Dh) is
        # already folded into the Q projection weights.
        s = lax.dot_general(q.astype(jnp.bfloat16), k.astype(jnp.bfloat16),
                            (((1,), (1,)), ((), ())),
                            preferred_element_type=jnp.float32)      # (S, S)
        s = s + bias
        s = s - jnp.max(s, axis=-1, keepdims=True)   # keeps all-masked rows finite
        e = jnp.exp(s)
        p = e * pl.reciprocal(jnp.sum(e, axis=-1, keepdims=True), approx=True)
        ctx = jnp.dot(p.astype(jnp.bfloat16), v.astype(jnp.bfloat16),
                      preferred_element_type=jnp.float32)            # (S, Dh)
        part = jnp.dot(ctx.astype(jnp.bfloat16), o_w_ref[0, h],
                       preferred_element_type=jnp.float32)           # (S, H)
        attn = part if attn is None else attn + part
    attn = attn + o_b_ref[0]

    x = _layer_norm(attn + x, ln1_g_ref[0], ln1_b_ref[0])            # sa_layer_norm

    # ---- FFN (GELU) + fused residual + LayerNorm ----
    h1 = (jnp.dot(x.astype(jnp.bfloat16), ffn1_w_ref[0],
                  preferred_element_type=jnp.float32) + ffn1_b_ref[0])
    # TODO(synk): DistilBERT uses exact erf-GELU; tanh approximation used here.
    h1 = jax.nn.gelu(h1, approximate=True)
    h2 = (jnp.dot(h1.astype(jnp.bfloat16), ffn2_w_ref[0],
                  preferred_element_type=jnp.float32) + ffn2_b_ref[0])
    x = _layer_norm(h2 + x, ln2_g_ref[0], ln2_b_ref[0])              # output_layer_norm

    act_ref[...] = x                       # carry activation to the next layer step

    # ---- CLS regression, only on the last layer step ----
    @pl.when(layer == pl.num_programs(1) - 1)
    def _():
        cls = x[0:1, :]                                              # row 0 (sublane-aligned)
        y = jnp.sum(cls * reg_w_ref[...], axis=-1, keepdims=True) + reg_b_ref[0]
        out_ref[0] = y


# -------------------------- parameter init ---------------------------------
def init_params(key):
    keys = iter(jax.random.split(key, 3 + 6 * N_LAYERS))

    def nrm(shape):
        return jax.random.normal(next(keys), shape, jnp.float32) * 0.02

    def split_cols(w):    # (H, H) -> (N_HEADS, H, HEAD_DIM) per-head slabs
        return jnp.stack(
            [w[:, h * HEAD_DIM:(h + 1) * HEAD_DIM] for h in range(N_HEADS)], axis=0)

    params = {
        "word_emb": nrm((VOCAB, HIDDEN)),
        "pos_emb": nrm((MAX_POS, HIDDEN)),
        "emb_ln_g": jnp.ones((1, HIDDEN), jnp.float32),
        "emb_ln_b": jnp.zeros((1, HIDDEN), jnp.float32),
        "reg_w": nrm((1, HIDDEN)),                 # nn.Linear(hidden, 1) weight
        "reg_b": jnp.zeros((1,), jnp.float32),     # scalar bias -> SMEM
    }

    qkv_w, o_w, ffn1_w, ffn2_w = [], [], [], []
    for _ in range(N_LAYERS):
        wq = nrm((HIDDEN, HIDDEN)) * SCALE         # fold 1/sqrt(head_dim) into Wq
        wk = nrm((HIDDEN, HIDDEN))
        wv = nrm((HIDDEN, HIDDEN))
        qkv_w.append(jnp.concatenate(
            [split_cols(wq), split_cols(wk), split_cols(wv)], axis=0))   # (3*NH, H, Dh)
        wo = nrm((HIDDEN, HIDDEN))
        o_w.append(jnp.stack(
            [wo[h * HEAD_DIM:(h + 1) * HEAD_DIM, :] for h in range(N_HEADS)],
            axis=0))                                                     # (NH, Dh, H)
        ffn1_w.append(nrm((HIDDEN, FFN)))
        ffn2_w.append(nrm((FFN, HIDDEN)))

    params.update({
        # MXU operands in bf16; biases / LN params stay f32.
        "qkv_w": jnp.stack(qkv_w).astype(jnp.bfloat16),                  # (L, 3*NH, H, Dh)
        "qkv_b": jnp.zeros((N_LAYERS, 3 * N_HEADS, 1, HEAD_DIM), jnp.float32),
        "o_w": jnp.stack(o_w).astype(jnp.bfloat16),                      # (L, NH, Dh, H)
        "o_b": jnp.zeros((N_LAYERS, 1, HIDDEN), jnp.float32),
        "ln1_g": jnp.ones((N_LAYERS, 1, HIDDEN), jnp.float32),
        "ln1_b": jnp.zeros((N_LAYERS, 1, HIDDEN), jnp.float32),
        "ffn1_w": jnp.stack(ffn1_w).astype(jnp.bfloat16),                # (L, H, FFN)
        "ffn1_b": jnp.zeros((N_LAYERS, 1, FFN), jnp.float32),
        "ffn2_w": jnp.stack(ffn2_w).astype(jnp.bfloat16),                # (L, FFN, H)
        "ffn2_b": jnp.zeros((N_LAYERS, 1, HIDDEN), jnp.float32),
        "ln2_g": jnp.ones((N_LAYERS, 1, HIDDEN), jnp.float32),
        "ln2_b": jnp.zeros((N_LAYERS, 1, HIDDEN), jnp.float32),
    })
    return params


# ----------------------------- forward pass --------------------------------
def distilbert_regressor(params, input_ids, attention_mask):
    B, S = input_ids.shape
    # embedding gathers are plain-JAX glue
    x = params["word_emb"][input_ids] + params["pos_emb"][jnp.arange(S)][None, :, :]
    x = x.astype(jnp.float32)                                     # (B, S, H)

    # additive key-mask bias: 0 for valid tokens, -1e9 for padded tokens
    mask_bias = jnp.where(attention_mask > 0, 0.0, MASK_BIG_NEG)
    mask_bias = mask_bias.astype(jnp.float32).reshape(B, 1, S)

    def rows(b, l):  # per-batch blocks (constant across the layer axis)
        return (b, 0, 0)

    def lyr3(b, l):  # per-layer weight blocks (3-D)
        return (l, 0, 0)

    def lyr4(b, l):  # per-layer weight blocks (4-D)
        return (l, 0, 0, 0)

    def cst2(b, l):  # layer-independent small params
        return (0, 0)

    in_specs = [
        pl.BlockSpec((1, S, HIDDEN), rows),                              # x
        pl.BlockSpec((1, 1, S), rows),                                   # mask bias
        pl.BlockSpec((1, HIDDEN), cst2),                                 # emb_ln_g
        pl.BlockSpec((1, HIDDEN), cst2),                                 # emb_ln_b
        pl.BlockSpec((1, 3 * N_HEADS, HIDDEN, HEAD_DIM), lyr4),          # qkv_w
        pl.BlockSpec((1, 3 * N_HEADS, 1, HEAD_DIM), lyr4),               # qkv_b
        pl.BlockSpec((1, N_HEADS, HEAD_DIM, HIDDEN), lyr4),              # o_w
        pl.BlockSpec((1, 1, HIDDEN), lyr3),                              # o_b
        pl.BlockSpec((1, 1, HIDDEN), lyr3),                              # ln1_g
        pl.BlockSpec((1, 1, HIDDEN), lyr3),                              # ln1_b
        pl.BlockSpec((1, HIDDEN, FFN), lyr3),                            # ffn1_w
        pl.BlockSpec((1, 1, FFN), lyr3),                                 # ffn1_b
        pl.BlockSpec((1, FFN, HIDDEN), lyr3),                            # ffn2_w
        pl.BlockSpec((1, 1, HIDDEN), lyr3),                              # ffn2_b
        pl.BlockSpec((1, 1, HIDDEN), lyr3),                              # ln2_g
        pl.BlockSpec((1, 1, HIDDEN), lyr3),                              # ln2_b
        pl.BlockSpec((1, HIDDEN), cst2),                                 # reg_w
        pl.BlockSpec(memory_space=pltpu.MemorySpace.SMEM),               # reg_b (scalar)
    ]

    out = pl.pallas_call(
        _fused_forward_kernel,
        out_shape=jax.ShapeDtypeStruct((B, 1, 1), jnp.float32),
        grid=(B, N_LAYERS),
        in_specs=in_specs,
        out_specs=pl.BlockSpec((1, 1, 1), rows),
        scratch_shapes=[pltpu.VMEM((S, HIDDEN), jnp.float32)],           # resident activation
        compiler_params=pltpu.CompilerParams(
            dimension_semantics=("parallel", "arbitrary"),
            vmem_limit_bytes=32 * 1024 * 1024,
        ),
    )(
        x, mask_bias,
        params["emb_ln_g"], params["emb_ln_b"],
        params["qkv_w"], params["qkv_b"], params["o_w"], params["o_b"],
        params["ln1_g"], params["ln1_b"],
        params["ffn1_w"], params["ffn1_b"], params["ffn2_w"], params["ffn2_b"],
        params["ln2_g"], params["ln2_b"],
        params["reg_w"], params["reg_b"],
    )
    return out.reshape(B)


# --------------------------------- main -------------------------------------
if __name__ == "__main__":
    key = jax.random.PRNGKey(0)
    pkey, ikey = jax.random.split(key)
    params = init_params(pkey)

    B, S = 2, 8
    input_ids = jax.random.randint(ikey, (B, S), 0, VOCAB, dtype=jnp.int32)
    attention_mask = jnp.array([[1, 1, 1, 1, 1, 1, 1, 1],
                                [1, 1, 1, 1, 1, 1, 0, 0]], dtype=jnp.int32)

    fwd = jax.jit(distilbert_regressor)
    out = fwd(params, input_ids, attention_mask)
    jax.block_until_ready(out)
    assert out.shape == (B,)
    assert bool(jnp.all(jnp.isfinite(out)))
    print("KERNEL_OK")
</pallas_src>

<mosaic_0001>
module attributes {stable_mosaic.version = 11 : i64} {
  func.func @_fused_forward_kernel(%arg0: i32, %arg1: i32, %arg2: memref<1x8x64xf32, #tpu.memory_space<vmem>>, %arg3: memref<1x1x8xf32, #tpu.memory_space<vmem>>, %arg4: memref<1x64xf32, #tpu.memory_space<vmem>>, %arg5: memref<1x64xf32, #tpu.memory_space<vmem>>, %arg6: memref<1x12x64x16xbf16, #tpu.memory_space<vmem>>, %arg7: memref<1x12x1x16xf32, #tpu.memory_space<vmem>>, %arg8: memref<1x4x16x64xbf16, #tpu.memory_space<vmem>>, %arg9: memref<1x1x64xf32, #tpu.memory_space<vmem>>, %arg10: memref<1x1x64xf32, #tpu.memory_space<vmem>>, %arg11: memref<1x1x64xf32, #tpu.memory_space<vmem>>, %arg12: memref<1x64x128xbf16, #tpu.memory_space<vmem>>, %arg13: memref<1x1x128xf32, #tpu.memory_space<vmem>>, %arg14: memref<1x128x64xbf16, #tpu.memory_space<vmem>>, %arg15: memref<1x1x64xf32, #tpu.memory_space<vmem>>, %arg16: memref<1x1x64xf32, #tpu.memory_space<vmem>>, %arg17: memref<1x1x64xf32, #tpu.memory_space<vmem>>, %arg18: memref<1x64xf32, #tpu.memory_space<vmem>>, %arg19: memref<1xf32, #tpu.memory_space<smem>>, %arg20: memref<1x1x1xf32, #tpu.memory_space<vmem>>, %arg21: memref<8x64xf32, #tpu.memory_space<vmem>>) attributes {dimension_semantics = [#tpu.dimension_semantics<parallel>, #tpu.dimension_semantics<arbitrary>], iteration_bounds = array<i64: 2, 2>, scalar_prefetch = 0 : i64, scratch_operands = 1 : i64, tpu.core_type = #tpu.core_type<tc>, window_params = [{transform_indices = @transform_0, window_bounds = array<i64: 1, 8, 64>}, {transform_indices = @transform_1, window_bounds = array<i64: 1, 1, 8>}, {pipeline_mode = #tpu.pipeline_mode<synchronous>, transform_indices = @transform_2, window_bounds = array<i64: 1, 64>}, {pipeline_mode = #tpu.pipeline_mode<synchronous>, transform_indices = @transform_3, window_bounds = array<i64: 1, 64>}, {transform_indices = @transform_4, window_bounds = array<i64: 1, 12, 64, 16>}, {transform_indices = @transform_5, window_bounds = array<i64: 1, 12, 1, 16>}, {transform_indices = @transform_6, window_bounds = array<i64: 1, 4, 16, 64>}, {transform_indices = @transform_7, window_bounds = array<i64: 1, 1, 64>}, {transform_indices = @transform_8, window_bounds = array<i64: 1, 1, 64>}, {transform_indices = @transform_9, window_bounds = array<i64: 1, 1, 64>}, {transform_indices = @transform_10, window_bounds = array<i64: 1, 64, 128>}, {transform_indices = @transform_11, window_bounds = array<i64: 1, 1, 128>}, {transform_indices = @transform_12, window_bounds = array<i64: 1, 128, 64>}, {transform_indices = @transform_13, window_bounds = array<i64: 1, 1, 64>}, {transform_indices = @transform_14, window_bounds = array<i64: 1, 1, 64>}, {transform_indices = @transform_15, window_bounds = array<i64: 1, 1, 64>}, {pipeline_mode = #tpu.pipeline_mode<synchronous>, transform_indices = @transform_16, window_bounds = array<i64: 1, 64>}, {transform_indices = @transform_17, window_bounds = array<i64: 1>}, {transform_indices = @transform_18, window_bounds = array<i64: 1, 1, 1>}]} {
    %c0_i32 = arith.constant 0 : i32
    %0 = arith.cmpi eq, %arg1, %c0_i32 : i32
    %1 = arith.extui %0 : i1 to i32
    %c0_i32_0 = arith.constant 0 : i32
    %2 = arith.cmpi ne, %1, %c0_i32_0 : i32
    scf.if %2 {
      %c0_183 = arith.constant 0 : index
      %c0_184 = arith.constant 0 : index
      %c0_185 = arith.constant 0 : index
      %269 = vector.load %arg2[%c0_183, %c0_184, %c0_185] : memref<1x8x64xf32, #tpu.memory_space<vmem>>, vector<1x8x64xf32>
      %270 = vector.shape_cast %269 : vector<1x8x64xf32> to vector<8x64xf32>
      %c0_186 = arith.constant 0 : index
      %c0_187 = arith.constant 0 : index
      %271 = vector.load %arg4[%c0_186, %c0_187] : memref<1x64xf32, #tpu.memory_space<vmem>>, vector<1x64xf32>
      %c0_188 = arith.constant 0 : index
      %c0_189 = arith.constant 0 : index
      %272 = vector.load %arg5[%c0_188, %c0_189] : memref<1x64xf32, #tpu.memory_space<vmem>>, vector<1x64xf32>
      %cst_190 = arith.constant dense<0.000000e+00> : vector<8xf32>
      %273 = vector.multi_reduction <add>, %270, %cst_190 [1] : vector<8x64xf32> to vector<8xf32>
      %274 = vector.shape_cast %273 : vector<8xf32> to vector<8x1xf32>
      %cst_191 = arith.constant 6.400000e+01 : f32
      %275 = vector.broadcast %cst_191 : f32 to vector<8x1xf32>
      %276 = arith.divf %274, %275 : vector<8x1xf32>
      %277 = vector.broadcast %276 : vector<8x1xf32> to vector<8x64xf32>
      %278 = arith.subf %270, %277 : vector<8x64xf32>
      %279 = arith.mulf %278, %278 : vector<8x64xf32>
      %cst_192 = arith.constant dense<0.000000e+00> : vector<8xf32>
      %280 = vector.multi_reduction <add>, %279, %cst_192 [1] : vector<8x64xf32> to vector<8xf32>
      %281 = vector.shape_cast %280 : vector<8xf32> to vector<8x1xf32>
      %cst_193 = arith.constant 6.400000e+01 : f32
      %282 = vector.broadcast %cst_193 : f32 to vector<8x1xf32>
      %283 = arith.divf %281, %282 : vector<8x1xf32>
      %cst_194 = arith.constant 9.99999996E-13 : f32
      %284 = vector.broadcast %cst_194 : f32 to vector<8x1xf32>
      %285 = arith.addf %283, %284 : vector<8x1xf32>
      %286 = math.rsqrt %285 : vector<8x1xf32>
      %287 = vector.broadcast %286 : vector<8x1xf32> to vector<8x64xf32>
      %288 = arith.mulf %278, %287 : vector<8x64xf32>
      %289 = vector.broadcast %271 : vector<1x64xf32> to vector<8x64xf32>
      %290 = arith.mulf %288, %289 : vector<8x64xf32>
      %291 = vector.broadcast %272 : vector<1x64xf32> to vector<8x64xf32>
      %292 = arith.addf %290, %291 : vector<8x64xf32>
      %c0_195 = arith.constant 0 : index
      %c0_196 = arith.constant 0 : index
      %293 = vector.load %arg21[%c0_195, %c0_196] : memref<8x64xf32, #tpu.memory_space<vmem>>, vector<8x64xf32>
      tpu.vector_store %arg21[%c0_195, %c0_196], %292 {strides = array<i32>} : memref<8x64xf32, #tpu.memory_space<vmem>>, vector<8x64xf32>,
    } else {
    }
    %c0 = arith.constant 0 : index
    %c0_1 = arith.constant 0 : index
    %3 = vector.load %arg21[%c0, %c0_1] : memref<8x64xf32, #tpu.memory_space<vmem>>, vector<8x64xf32>
    %4 = arith.truncf %3 : vector<8x64xf32> to vector<8x64xbf16>
    %c0_2 = arith.constant 0 : index
    %c0_3 = arith.constant 0 : index
    %c0_4 = arith.constant 0 : index
    %5 = vector.load %arg3[%c0_2, %c0_3, %c0_4] : memref<1x1x8xf32, #tpu.memory_space<vmem>>, vector<1x1x8xf32>
    %6 = vector.shape_cast %5 : vector<1x1x8xf32> to vector<1x8xf32>
    %c0_5 = arith.constant 0 : index
    %c0_6 = arith.constant 0 : index
    %c0_7 = arith.constant 0 : index
    %c0_8 = arith.constant 0 : index
    %7 = vector.load %arg6[%c0_5, %c0_6, %c0_7, %c0_8] : memref<1x12x64x16xbf16, #tpu.memory_space<vmem>>, vector<1x1x64x16xbf16>
    %8 = vector.shape_cast %7 : vector<1x1x64x16xbf16> to vector<64x16xbf16>
    %cst = arith.constant dense<0.000000e+00> : vector<8x16xf32>
    %9 = tpu.matmul %4, %8, %cst {dimension_numbers = #tpu.dot_dimension_numbers<[1], [0], [0], [1], [0, 0, 1, 1], [], []>} : vector<8x64xbf16>, vector<64x16xbf16>, vector<8x16xf32> -> vector<8x16xf32>
    %c0_9 = arith.constant 0 : index
    %c0_10 = arith.constant 0 : index
    %c0_11 = arith.constant 0 : index
    %c0_12 = arith.constant 0 : index
    %10 = vector.load %arg7[%c0_9, %c0_10, %c0_11, %c0_12] : memref<1x12x1x16xf32, #tpu.memory_space<vmem>>, vector<1x1x1x16xf32>
    %11 = vector.shape_cast %10 : vector<1x1x1x16xf32> to vector<1x16xf32>
    %12 = vector.broadcast %11 : vector<1x16xf32> to vector<8x16xf32>
    %13 = arith.addf %9, %12 : vector<8x16xf32>
    %c0_13 = arith.constant 0 : index
    %c4 = arith.constant 4 : index
    %c0_14 = arith.constant 0 : index
    %c0_15 = arith.constant 0 : index
    %14 = vector.load %arg6[%c0_13, %c4, %c0_14, %c0_15] : memref<1x12x64x16xbf16, #tpu.memory_space<vmem>>, vector<1x1x64x16xbf16>
    %15 = vector.shape_cast %14 : vector<1x1x64x16xbf16> to vector<64x16xbf16>
    %cst_16 = arith.constant dense<0.000000e+00> : vector<8x16xf32>
    %16 = tpu.matmul %4, %15, %cst_16 {dimension_numbers = #tpu.dot_dimension_numbers<[1], [0], [0], [1], [0, 0, 1, 1], [], []>} : vector<8x64xbf16>, vector<64x16xbf16>, vector<8x16xf32> -> vector<8x16xf32>
    %c0_17 = arith.constant 0 : index
    %c4_18 = arith.constant 4 : index
    %c0_19 = arith.constant 0 : index
    %c0_20 = arith.constant 0 : index
    %17 = vector.load %arg7[%c0_17, %c4_18, %c0_19, %c0_20] : memref<1x12x1x16xf32, #tpu.memory_space<vmem>>, vector<1x1x1x16xf32>
    %18 = vector.shape_cast %17 : vector<1x1x1x16xf32> to vector<1x16xf32>
    %19 = vector.broadcast %18 : vector<1x16xf32> to vector<8x16xf32>
    %20 = arith.addf %16, %19 : vector<8x16xf32>
    %c0_21 = arith.constant 0 : index
    %c8 = arith.constant 8 : index
    %c0_22 = arith.constant 0 : index
    %c0_23 = arith.constant 0 : index
    %21 = vector.load %arg6[%c0_21, %c8, %c0_22, %c0_23] : memref<1x12x64x16xbf16, #tpu.memory_space<vmem>>, vector<1x1x64x16xbf16>
    %22 = vector.shape_cast %21 : vector<1x1x64x16xbf16> to vector<64x16xbf16>
    %cst_24 = arith.constant dense<0.000000e+00> : vector<8x16xf32>
    %23 = tpu.matmul %4, %22, %cst_24 {dimension_numbers = #tpu.dot_dimension_numbers<[1], [0], [0], [1], [0, 0, 1, 1], [], []>} : vector<8x64xbf16>, vector<64x16xbf16>, vector<8x16xf32> -> vector<8x16xf32>
    %c0_25 = arith.constant 0 : index
    %c8_26 = arith.constant 8 : index
    %c0_27 = arith.constant 0 : index
    %c0_28 = arith.constant 0 : index
    %24 = vector.load %arg7[%c0_25, %c8_26, %c0_27, %c0_28] : memref<1x12x1x16xf32, #tpu.memory_space<vmem>>, vector<1x1x1x16xf32>
    %25 = vector.shape_cast %24 : vector<1x1x1x16xf32> to vector<1x16xf32>
    %26 = vector.broadcast %25 : vector<1x16xf32> to vector<8x16xf32>
    %27 = arith.addf %23, %26 : vector<8x16xf32>
    %28 = arith.truncf %13 : vector<8x16xf32> to vector<8x16xbf16>
    %29 = arith.truncf %20 : vector<8x16xf32> to vector<8x16xbf16>
    %cst_29 = arith.constant dense<0.000000e+00> : vector<8x8xf32>
    %30 = tpu.matmul %28, %29, %cst_29 {dimension_numbers = #tpu.dot_dimension_numbers<[1], [1], [0], [0], [0, 0, 1, 0], [], []>} : vector<8x16xbf16>, vector<8x16xbf16>, vector<8x8xf32> -> vector<8x8xf32>
    %31 = vector.broadcast %6 : vector<1x8xf32> to vector<8x8xf32>
    %32 = arith.addf %30, %31 : vector<8x8xf32>
    %cst_30 = arith.constant dense<0xFF800000> : vector<8xf32>
    %33 = vector.multi_reduction <maximumf>, %32, %cst_30 [1] : vector<8x8xf32> to vector<8xf32>
    %34 = vector.shape_cast %33 : vector<8xf32> to vector<8x1xf32>
    %35 = vector.broadcast %34 : vector<8x1xf32> to vector<8x8xf32>
    %36 = arith.subf %32, %35 : vector<8x8xf32>
    %37 = math.exp %36 : vector<8x8xf32>
    %cst_31 = arith.constant dense<0.000000e+00> : vector<8xf32>
    %38 = vector.multi_reduction <add>, %37, %cst_31 [1] : vector<8x8xf32> to vector<8xf32>
    %39 = vector.shape_cast %38 : vector<8xf32> to vector<8x1xf32>
    %40 = tpu.reciprocal %39 {approx = true} : vector<8x1xf32> -> vector<8x1xf32>
    %41 = vector.broadcast %40 : vector<8x1xf32> to vector<8x8xf32>
    %42 = arith.mulf %37, %41 : vector<8x8xf32>
    %43 = arith.truncf %42 : vector<8x8xf32> to vector<8x8xbf16>
    %44 = arith.truncf %27 : vector<8x16xf32> to vector<8x16xbf16>
    %cst_32 = arith.constant dense<0.000000e+00> : vector<8x16xf32>
    %45 = tpu.matmul %43, %44, %cst_32 {dimension_numbers = #tpu.dot_dimension_numbers<[1], [0], [0], [1], [0, 0, 1, 1], [], []>} : vector<8x8xbf16>, vector<8x16xbf16>, vector<8x16xf32> -> vector<8x16xf32>
    %46 = arith.truncf %45 : vector<8x16xf32> to vector<8x16xbf16>
    %c0_33 = arith.constant 0 : index
    %c0_34 = arith.constant 0 : index
    %c0_35 = arith.constant 0 : index
    %c0_36 = arith.constant 0 : index
    %47 = vector.load %arg8[%c0_33, %c0_34, %c0_35, %c0_36] : memref<1x4x16x64xbf16, #tpu.memory_space<vmem>>, vector<1x1x16x64xbf16>
    %48 = vector.shape_cast %47 : vector<1x1x16x64xbf16> to vector<16x64xbf16>
    %cst_37 = arith.constant dense<0.000000e+00> : vector<8x64xf32>
    %49 = tpu.matmul %46, %48, %cst_37 {dimension_numbers = #tpu.dot_dimension_numbers<[1], [0], [0], [1], [0, 0, 1, 1], [], []>} : vector<8x16xbf16>, vector<16x64xbf16>, vector<8x64xf32> -> vector<8x64xf32>
    %c0_38 = arith.constant 0 : index
    %c1 = arith.constant 1 : index
    %c0_39 = arith.constant 0 : index
    %c0_40 = arith.constant 0 : index
    %50 = vector.load %arg6[%c0_38, %c1, %c0_39, %c0_40] : memref<1x12x64x16xbf16, #tpu.memory_space<vmem>>, vector<1x1x64x16xbf16>
    %51 = vector.shape_cast %50 : vector<1x1x64x16xbf16> to vector<64x16xbf16>
    %cst_41 = arith.constant dense<0.000000e+00> : vector<8x16xf32>
    %52 = tpu.matmul %4, %51, %cst_41 {dimension_numbers = #tpu.dot_dimension_numbers<[1], [0], [0], [1], [0, 0, 1, 1], [], []>} : vector<8x64xbf16>, vector<64x16xbf16>, vector<8x16xf32> -> vector<8x16xf32>
    %c0_42 = arith.constant 0 : index
    %c1_43 = arith.constant 1 : index
    %c0_44 = arith.constant 0 : index
    %c0_45 = arith.constant 0 : index
    %53 = vector.load %arg7[%c0_42, %c1_43, %c0_44, %c0_45] : memref<1x12x1x16xf32, #tpu.memory_space<vmem>>, vector<1x1x1x16xf32>
    %54 = vector.shape_cast %53 : vector<1x1x1x16xf32> to vector<1x16xf32>
    %55 = vector.broadcast %54 : vector<1x16xf32> to vector<8x16xf32>
    %56 = arith.addf %52, %55 : vector<8x16xf32>
    %c0_46 = arith.constant 0 : index
    %c5 = arith.constant 5 : index
    %c0_47 = arith.constant 0 : index
    %c0_48 = arith.constant 0 : index
    %57 = vector.load %arg6[%c0_46, %c5, %c0_47, %c0_48] : memref<1x12x64x16xbf16, #tpu.memory_space<vmem>>, vector<1x1x64x16xbf16>
    %58 = vector.shape_cast %57 : vector<1x1x64x16xbf16> to vector<64x16xbf16>
    %cst_49 = arith.constant dense<0.000000e+00> : vector<8x16xf32>
    %59 = tpu.matmul %4, %58, %cst_49 {dimension_numbers = #tpu.dot_dimension_numbers<[1], [0], [0], [1], [0, 0, 1, 1], [], []>} : vector<8x64xbf16>, vector<64x16xbf16>, vector<8x16xf32> -> vector<8x16xf32>
    %c0_50 = arith.constant 0 : index
    %c5_51 = arith.constant 5 : index
    %c0_52 = arith.constant 0 : index
    %c0_53 = arith.constant 0 : index
    %60 = vector.load %arg7[%c0_50, %c5_51, %c0_52, %c0_53] : memref<1x12x1x16xf32, #tpu.memory_space<vmem>>, vector<1x1x1x16xf32>
    %61 = vector.shape_cast %60 : vector<1x1x1x16xf32> to vector<1x16xf32>
    %62 = vector.broadcast %61 : vector<1x16xf32> to vector<8x16xf32>
    %63 = arith.addf %59, %62 : vector<8x16xf32>
    %c0_54 = arith.constant 0 : index
    %c9 = arith.constant 9 : index
    %c0_55 = arith.constant 0 : index
    %c0_56 = arith.constant 0 : index
    %64 = vector.load %arg6[%c0_54, %c9, %c0_55, %c0_56] : memref<1x12x64x16xbf16, #tpu.memory_space<vmem>>, vector<1x1x64x16xbf16>
    %65 = vector.shape_cast %64 : vector<1x1x64x16xbf16> to vector<64x16xbf16>
    %cst_57 = arith.constant dense<0.000000e+00> : vector<8x16xf32>
    %66 = tpu.matmul %4, %65, %cst_57 {dimension_numbers = #tpu.dot_dimension_numbers<[1], [0], [0], [1], [0, 0, 1, 1], [], []>} : vector<8x64xbf16>, vector<64x16xbf16>, vector<8x16xf32> -> vector<8x16xf32>
    %c0_58 = arith.constant 0 : index
    %c9_59 = arith.constant 9 : index
    %c0_60 = arith.constant 0 : index
    %c0_61 = arith.constant 0 : index
    %67 = vector.load %arg7[%c0_58, %c9_59, %c0_60, %c0_61] : memref<1x12x1x16xf32, #tpu.memory_space<vmem>>, vector<1x1x1x16xf32>
    %68 = vector.shape_cast %67 : vector<1x1x1x16xf32> to vector<1x16xf32>
    %69 = vector.broadcast %68 : vector<1x16xf32> to vector<8x16xf32>
    %70 = arith.addf %66, %69 : vector<8x16xf32>
    %71 = arith.truncf %56 : vector<8x16xf32> to vector<8x16xbf16>
    %72 = arith.truncf %63 : vector<8x16xf32> to vector<8x16xbf16>
    %cst_62 = arith.constant dense<0.000000e+00> : vector<8x8xf32>
    %73 = tpu.matmul %71, %72, %cst_62 {dimension_numbers = #tpu.dot_dimension_numbers<[1], [1], [0], [0], [0, 0, 1, 0], [], []>} : vector<8x16xbf16>, vector<8x16xbf16>, vector<8x8xf32> -> vector<8x8xf32>
    %74 = vector.broadcast %6 : vector<1x8xf32> to vector<8x8xf32>
    %75 = arith.addf %73, %74 : vector<8x8xf32>
    %cst_63 = arith.constant dense<0xFF800000> : vector<8xf32>
    %76 = vector.multi_reduction <maximumf>, %75, %cst_63 [1] : vector<8x8xf32> to vector<8xf32>
    %77 = vector.shape_cast %76 : vector<8xf32> to vector<8x1xf32>
    %78 = vector.broadcast %77 : vector<8x1xf32> to vector<8x8xf32>
    %79 = arith.subf %75, %78 : vector<8x8xf32>
    %80 = math.exp %79 : vector<8x8xf32>
    %cst_64 = arith.constant dense<0.000000e+00> : vector<8xf32>
    %81 = vector.multi_reduction <add>, %80, %cst_64 [1] : vector<8x8xf32> to vector<8xf32>
    %82 = vector.shape_cast %81 : vector<8xf32> to vector<8x1xf32>
    %83 = tpu.reciprocal %82 {approx = true} : vector<8x1xf32> -> vector<8x1xf32>
    %84 = vector.broadcast %83 : vector<8x1xf32> to vector<8x8xf32>
    %85 = arith.mulf %80, %84 : vector<8x8xf32>
    %86 = arith.truncf %85 : vector<8x8xf32> to vector<8x8xbf16>
    %87 = arith.truncf %70 : vector<8x16xf32> to vector<8x16xbf16>
    %cst_65 = arith.constant dense<0.000000e+00> : vector<8x16xf32>
    %88 = tpu.matmul %86, %87, %cst_65 {dimension_numbers = #tpu.dot_dimension_numbers<[1], [0], [0], [1], [0, 0, 1, 1], [], []>} : vector<8x8xbf16>, vector<8x16xbf16>, vector<8x16xf32> -> vector<8x16xf32>
    %89 = arith.truncf %88 : vector<8x16xf32> to vector<8x16xbf16>
    %c0_66 = arith.constant 0 : index
    %c1_67 = arith.constant 1 : index
    %c0_68 = arith.constant 0 : index
    %c0_69 = arith.constant 0 : index
    %90 = vector.load %arg8[%c0_66, %c1_67, %c0_68, %c0_69] : memref<1x4x16x64xbf16, #tpu.memory_space<vmem>>, vector<1x1x16x64xbf16>
    %91 = vector.shape_cast %90 : vector<1x1x16x64xbf16> to vector<16x64xbf16>
    %cst_70 = arith.constant dense<0.000000e+00> : vector<8x64xf32>
    %92 = tpu.matmul %89, %91, %cst_70 {dimension_numbers = #tpu.dot_dimension_numbers<[1], [0], [0], [1], [0, 0, 1, 1], [], []>} : vector<8x16xbf16>, vector<16x64xbf16>, vector<8x64xf32> -> vector<8x64xf32>
    %93 = arith.addf %49, %92 : vector<8x64xf32>
    %c0_71 = arith.constant 0 : index
    %c2 = arith.constant 2 : index
    %c0_72 = arith.constant 0 : index
    %c0_73 = arith.constant 0 : index
    %94 = vector.load %arg6[%c0_71, %c2, %c0_72, %c0_73] : memref<1x12x64x16xbf16, #tpu.memory_space<vmem>>, vector<1x1x64x16xbf16>
    %95 = vector.shape_cast %94 : vector<1x1x64x16xbf16> to vector<64x16xbf16>
    %cst_74 = arith.constant dense<0.000000e+00> : vector<8x16xf32>
    %96 = tpu.matmul %4, %95, %cst_74 {dimension_numbers = #tpu.dot_dimension_numbers<[1], [0], [0], [1], [0, 0, 1, 1], [], []>} : vector<8x64xbf16>, vector<64x16xbf16>, vector<8x16xf32> -> vector<8x16xf32>
    %c0_75 = arith.constant 0 : index
    %c2_76 = arith.constant 2 : index
    %c0_77 = arith.constant 0 : index
    %c0_78 = arith.constant 0 : index
    %97 = vector.load %arg7[%c0_75, %c2_76, %c0_77, %c0_78] : memref<1x12x1x16xf32, #tpu.memory_space<vmem>>, vector<1x1x1x16xf32>
    %98 = vector.shape_cast %97 : vector<1x1x1x16xf32> to vector<1x16xf32>
    %99 = vector.broadcast %98 : vector<1x16xf32> to vector<8x16xf32>
    %100 = arith.addf %96, %99 : vector<8x16xf32>
    %c0_79 = arith.constant 0 : index
    %c6 = arith.constant 6 : index
    %c0_80 = arith.constant 0 : index
    %c0_81 = arith.constant 0 : index
    %101 = vector.load %arg6[%c0_79, %c6, %c0_80, %c0_81] : memref<1x12x64x16xbf16, #tpu.memory_space<vmem>>, vector<1x1x64x16xbf16>
    %102 = vector.shape_cast %101 : vector<1x1x64x16xbf16> to vector<64x16xbf16>
    %cst_82 = arith.constant dense<0.000000e+00> : vector<8x16xf32>
    %103 = tpu.matmul %4, %102, %cst_82 {dimension_numbers = #tpu.dot_dimension_numbers<[1], [0], [0], [1], [0, 0, 1, 1], [], []>} : vector<8x64xbf16>, vector<64x16xbf16>, vector<8x16xf32> -> vector<8x16xf32>
    %c0_83 = arith.constant 0 : index
    %c6_84 = arith.constant 6 : index
    %c0_85 = arith.constant 0 : index
    %c0_86 = arith.constant 0 : index
    %104 = vector.load %arg7[%c0_83, %c6_84, %c0_85, %c0_86] : memref<1x12x1x16xf32, #tpu.memory_space<vmem>>, vector<1x1x1x16xf32>
    %105 = vector.shape_cast %104 : vector<1x1x1x16xf32> to vector<1x16xf32>
    %106 = vector.broadcast %105 : vector<1x16xf32> to vector<8x16xf32>
    %107 = arith.addf %103, %106 : vector<8x16xf32>
    %c0_87 = arith.constant 0 : index
    %c10 = arith.constant 10 : index
    %c0_88 = arith.constant 0 : index
    %c0_89 = arith.constant 0 : index
    %108 = vector.load %arg6[%c0_87, %c10, %c0_88, %c0_89] : memref<1x12x64x16xbf16, #tpu.memory_space<vmem>>, vector<1x1x64x16xbf16>
    %109 = vector.shape_cast %108 : vector<1x1x64x16xbf16> to vector<64x16xbf16>
    %cst_90 = arith.constant dense<0.000000e+00> : vector<8x16xf32>
    %110 = tpu.matmul %4, %109, %cst_90 {dimension_numbers = #tpu.dot_dimension_numbers<[1], [0], [0], [1], [0, 0, 1, 1], [], []>} : vector<8x64xbf16>, vector<64x16xbf16>, vector<8x16xf32> -> vector<8x16xf32>
    %c0_91 = arith.constant 0 : index
    %c10_92 = arith.constant 10 : index
    %c0_93 = arith.constant 0 : index
    %c0_94 = arith.constant 0 : index
    %111 = vector.load %arg7[%c0_91, %c10_92, %c0_93, %c0_94] : memref<1x12x1x16xf32, #tpu.memory_space<vmem>>, vector<1x1x1x16xf32>
    %112 = vector.shape_cast %111 : vector<1x1x1x16xf32> to vector<1x16xf32>
    %113 = vector.broadcast %112 : vector<1x16xf32> to vector<8x16xf32>
    %114 = arith.addf %110, %113 : vector<8x16xf32>
    %115 = arith.truncf %100 : vector<8x16xf32> to vector<8x16xbf16>
    %116 = arith.truncf %107 : vector<8x16xf32> to vector<8x16xbf16>
    %cst_95 = arith.constant dense<0.000000e+00> : vector<8x8xf32>
    %117 = tpu.matmul %115, %116, %cst_95 {dimension_numbers = #tpu.dot_dimension_numbers<[1], [1], [0], [0], [0, 0, 1, 0], [], []>} : vector<8x16xbf16>, vector<8x16xbf16>, vector<8x8xf32> -> vector<8x8xf32>
    %118 = vector.broadcast %6 : vector<1x8xf32> to vector<8x8xf32>
    %119 = arith.addf %117, %118 : vector<8x8xf32>
    %cst_96 = arith.constant dense<0xFF800000> : vector<8xf32>
    %120 = vector.multi_reduction <maximumf>, %119, %cst_96 [1] : vector<8x8xf32> to vector<8xf32>
    %121 = vector.shape_cast %120 : vector<8xf32> to vector<8x1xf32>
    %122 = vector.broadcast %121 : vector<8x1xf32> to vector<8x8xf32>
    %123 = arith.subf %119, %122 : vector<8x8xf32>
    %124 = math.exp %123 : vector<8x8xf32>
    %cst_97 = arith.constant dense<0.000000e+00> : vector<8xf32>
    %125 = vector.multi_reduction <add>, %124, %cst_97 [1] : vector<8x8xf32> to vector<8xf32>
    %126 = vector.shape_cast %125 : vector<8xf32> to vector<8x1xf32>
    %127 = tpu.reciprocal %126 {approx = true} : vector<8x1xf32> -> vector<8x1xf32>
    %128 = vector.broadcast %127 : vector<8x1xf32> to vector<8x8xf32>
    %129 = arith.mulf %124, %128 : vector<8x8xf32>
    %130 = arith.truncf %129 : vector<8x8xf32> to vector<8x8xbf16>
    %131 = arith.truncf %114 : vector<8x16xf32> to vector<8x16xbf16>
    %cst_98 = arith.constant dense<0.000000e+00> : vector<8x16xf32>
    %132 = tpu.matmul %130, %131, %cst_98 {dimension_numbers = #tpu.dot_dimension_numbers<[1], [0], [0], [1], [0, 0, 1, 1], [], []>} : vector<8x8xbf16>, vector<8x16xbf16>, vector<8x16xf32> -> vector<8x16xf32>
    %133 = arith.truncf %132 : vector<8x16xf32> to vector<8x16xbf16>
    %c0_99 = arith.constant 0 : index
    %c2_100 = arith.constant 2 : index
    %c0_101 = arith.constant 0 : index
    %c0_102 = arith.constant 0 : index
    %134 = vector.load %arg8[%c0_99, %c2_100, %c0_101, %c0_102] : memref<1x4x16x64xbf16, #tpu.memory_space<vmem>>, vector<1x1x16x64xbf16>
    %135 = vector.shape_cast %134 : vector<1x1x16x64xbf16> to vector<16x64xbf16>
    %cst_103 = arith.constant dense<0.000000e+00> : vector<8x64xf32>
    %136 = tpu.matmul %133, %135, %cst_103 {dimension_numbers = #tpu.dot_dimension_numbers<[1], [0], [0], [1], [0, 0, 1, 1], [], []>} : vector<8x16xbf16>, vector<16x64xbf16>, vector<8x64xf32> -> vector<8x64xf32>
    %137 = arith.addf %93, %136 : vector<8x64xf32>
    %c0_104 = arith.constant 0 : index
    %c3 = arith.constant 3 : index
    %c0_105 = arith.constant 0 : index
    %c0_106 = arith.constant 0 : index
    %138 = vector.load %arg6[%c0_104, %c3, %c0_105, %c0_106] : memref<1x12x64x16xbf16, #tpu.memory_space<vmem>>, vector<1x1x64x16xbf16>
    %139 = vector.shape_cast %138 : vector<1x1x64x16xbf16> to vector<64x16xbf16>
    %cst_107 = arith.constant dense<0.000000e+00> : vector<8x16xf32>
    %140 = tpu.matmul %4, %139, %cst_107 {dimension_numbers = #tpu.dot_dimension_numbers<[1], [0], [0], [1], [0, 0, 1, 1], [], []>} : vector<8x64xbf16>, vector<64x16xbf16>, vector<8x16xf32> -> vector<8x16xf32>
    %c0_108 = arith.constant 0 : index
    %c3_109 = arith.constant 3 : index
    %c0_110 = arith.constant 0 : index
    %c0_111 = arith.constant 0 : index
    %141 = vector.load %arg7[%c0_108, %c3_109, %c0_110, %c0_111] : memref<1x12x1x16xf32, #tpu.memory_space<vmem>>, vector<1x1x1x16xf32>
    %142 = vector.shape_cast %141 : vector<1x1x1x16xf32> to vector<1x16xf32>
    %143 = vector.broadcast %142 : vector<1x16xf32> to vector<8x16xf32>
    %144 = arith.addf %140, %143 : vector<8x16xf32>
    %c0_112 = arith.constant 0 : index
    %c7 = arith.constant 7 : index
    %c0_113 = arith.constant 0 : index
    %c0_114 = arith.constant 0 : index
    %145 = vector.load %arg6[%c0_112, %c7, %c0_113, %c0_114] : memref<1x12x64x16xbf16, #tpu.memory_space<vmem>>, vector<1x1x64x16xbf16>
    %146 = vector.shape_cast %145 : vector<1x1x64x16xbf16> to vector<64x16xbf16>
    %cst_115 = arith.constant dense<0.000000e+00> : vector<8x16xf32>
    %147 = tpu.matmul %4, %146, %cst_115 {dimension_numbers = #tpu.dot_dimension_numbers<[1], [0], [0], [1], [0, 0, 1, 1], [], []>} : vector<8x64xbf16>, vector<64x16xbf16>, vector<8x16xf32> -> vector<8x16xf32>
    %c0_116 = arith.constant 0 : index
    %c7_117 = arith.constant 7 : index
    %c0_118 = arith.constant 0 : index
    %c0_119 = arith.constant 0 : index
    %148 = vector.load %arg7[%c0_116, %c7_117, %c0_118, %c0_119] : memref<1x12x1x16xf32, #tpu.memory_space<vmem>>, vector<1x1x1x16xf32>
    %149 = vector.shape_cast %148 : vector<1x1x1x16xf32> to vector<1x16xf32>
    %150 = vector.broadcast %149 : vector<1x16xf32> to vector<8x16xf32>
    %151 = arith.addf %147, %150 : vector<8x16xf32>
    %c0_120 = arith.constant 0 : index
    %c11 = arith.constant 11 : index
    %c0_121 = arith.constant 0 : index
    %c0_122 = arith.constant 0 : index
    %152 = vector.load %arg6[%c0_120, %c11, %c0_121, %c0_122] : memref<1x12x64x16xbf16, #tpu.memory_space<vmem>>, vector<1x1x64x16xbf16>
    %153 = vector.shape_cast %152 : vector<1x1x64x16xbf16> to vector<64x16xbf16>
    %cst_123 = arith.constant dense<0.000000e+00> : vector<8x16xf32>
    %154 = tpu.matmul %4, %153, %cst_123 {dimension_numbers = #tpu.dot_dimension_numbers<[1], [0], [0], [1], [0, 0, 1, 1], [], []>} : vector<8x64xbf16>, vector<64x16xbf16>, vector<8x16xf32> -> vector<8x16xf32>
    %c0_124 = arith.constant 0 : index
    %c11_125 = arith.constant 11 : index
    %c0_126 = arith.constant 0 : index
    %c0_127 = arith.constant 0 : index
    %155 = vector.load %arg7[%c0_124, %c11_125, %c0_126, %c0_127] : memref<1x12x1x16xf32, #tpu.memory_space<vmem>>, vector<1x1x1x16xf32>
    %156 = vector.shape_cast %155 : vector<1x1x1x16xf32> to vector<1x16xf32>
    %157 = vector.broadcast %156 : vector<1x16xf32> to vector<8x16xf32>
    %158 = arith.addf %154, %157 : vector<8x16xf32>
    %159 = arith.truncf %144 : vector<8x16xf32> to vector<8x16xbf16>
    %160 = arith.truncf %151 : vector<8x16xf32> to vector<8x16xbf16>
    %cst_128 = arith.constant dense<0.000000e+00> : vector<8x8xf32>
    %161 = tpu.matmul %159, %160, %cst_128 {dimension_numbers = #tpu.dot_dimension_numbers<[1], [1], [0], [0], [0, 0, 1, 0], [], []>} : vector<8x16xbf16>, vector<8x16xbf16>, vector<8x8xf32> -> vector<8x8xf32>
    %162 = vector.broadcast %6 : vector<1x8xf32> to vector<8x8xf32>
    %163 = arith.addf %161, %162 : vector<8x8xf32>
    %cst_129 = arith.constant dense<0xFF800000> : vector<8xf32>
    %164 = vector.multi_reduction <maximumf>, %163, %cst_129 [1] : vector<8x8xf32> to vector<8xf32>
    %165 = vector.shape_cast %164 : vector<8xf32> to vector<8x1xf32>
    %166 = vector.broadcast %165 : vector<8x1xf32> to vector<8x8xf32>
    %167 = arith.subf %163, %166 : vector<8x8xf32>
    %168 = math.exp %167 : vector<8x8xf32>
    %cst_130 = arith.constant dense<0.000000e+00> : vector<8xf32>
    %169 = vector.multi_reduction <add>, %168, %cst_130 [1] : vector<8x8xf32> to vector<8xf32>
    %170 = vector.shape_cast %169 : vector<8xf32> to vector<8x1xf32>
    %171 = tpu.reciprocal %170 {approx = true} : vector<8x1xf32> -> vector<8x1xf32>
    %172 = vector.broadcast %171 : vector<8x1xf32> to vector<8x8xf32>
    %173 = arith.mulf %168, %172 : vector<8x8xf32>
    %174 = arith.truncf %173 : vector<8x8xf32> to vector<8x8xbf16>
    %175 = arith.truncf %158 : vector<8x16xf32> to vector<8x16xbf16>
    %cst_131 = arith.constant dense<0.000000e+00> : vector<8x16xf32>
    %176 = tpu.matmul %174, %175, %cst_131 {dimension_numbers = #tpu.dot_dimension_numbers<[1], [0], [0], [1], [0, 0, 1, 1], [], []>} : vector<8x8xbf16>, vector<8x16xbf16>, vector<8x16xf32> -> vector<8x16xf32>
    %177 = arith.truncf %176 : vector<8x16xf32> to vector<8x16xbf16>
    %c0_132 = arith.constant 0 : index
    %c3_133 = arith.constant 3 : index
    %c0_134 = arith.constant 0 : index
    %c0_135 = arith.constant 0 : index
    %178 = vector.load %arg8[%c0_132, %c3_133, %c0_134, %c0_135] : memref<1x4x16x64xbf16, #tpu.memory_space<vmem>>, vector<1x1x16x64xbf16>
    %179 = vector.shape_cast %178 : vector<1x1x16x64xbf16> to vector<16x64xbf16>
    %cst_136 = arith.constant dense<0.000000e+00> : vector<8x64xf32>
    %180 = tpu.matmul %177, %179, %cst_136 {dimension_numbers = #tpu.dot_dimension_numbers<[1], [0], [0], [1], [0, 0, 1, 1], [], []>} : vector<8x16xbf16>, vector<16x64xbf16>, vector<8x64xf32> -> vector<8x64xf32>
    %181 = arith.addf %137, %180 : vector<8x64xf32>
    %c0_137 = arith.constant 0 : index
    %c0_138 = arith.constant 0 : index
    %c0_139 = arith.constant 0 : index
    %182 = vector.load %arg9[%c0_137, %c0_138, %c0_139] : memref<1x1x64xf32, #tpu.memory_space<vmem>>, vector<1x1x64xf32>
    %183 = vector.shape_cast %182 : vector<1x1x64xf32> to vector<1x64xf32>
    %184 = vector.broadcast %183 : vector<1x64xf32> to vector<8x64xf32>
    %185 = arith.addf %181, %184 : vector<8x64xf32>
    %186 = arith.addf %185, %3 : vector<8x64xf32>
    %c0_140 = arith.constant 0 : index
    %c0_141 = arith.constant 0 : index
    %c0_142 = arith.constant 0 : index
    %187 = vector.load %arg10[%c0_140, %c0_141, %c0_142] : memref<1x1x64xf32, #tpu.memory_space<vmem>>, vector<1x1x64xf32>
    %188 = vector.shape_cast %187 : vector<1x1x64xf32> to vector<1x64xf32>
    %c0_143 = arith.constant 0 : index
    %c0_144 = arith.constant 0 : index
    %c0_145 = arith.constant 0 : index
    %189 = vector.load %arg11[%c0_143, %c0_144, %c0_145] : memref<1x1x64xf32, #tpu.memory_space<vmem>>, vector<1x1x64xf32>
    %190 = vector.shape_cast %189 : vector<1x1x64xf32> to vector<1x64xf32>
    %cst_146 = arith.constant dense<0.000000e+00> : vector<8xf32>
    %191 = vector.multi_reduction <add>, %186, %cst_146 [1] : vector<8x64xf32> to vector<8xf32>
    %192 = vector.shape_cast %191 : vector<8xf32> to vector<8x1xf32>
    %cst_147 = arith.constant 6.400000e+01 : f32
    %193 = vector.broadcast %cst_147 : f32 to vector<8x1xf32>
    %194 = arith.divf %192, %193 : vector<8x1xf32>
    %195 = vector.broadcast %194 : vector<8x1xf32> to vector<8x64xf32>
    %196 = arith.subf %186, %195 : vector<8x64xf32>
    %197 = arith.mulf %196, %196 : vector<8x64xf32>
    %cst_148 = arith.constant dense<0.000000e+00> : vector<8xf32>
    %198 = vector.multi_reduction <add>, %197, %cst_148 [1] : vector<8x64xf32> to vector<8xf32>
    %199 = vector.shape_cast %198 : vector<8xf32> to vector<8x1xf32>
    %cst_149 = arith.constant 6.400000e+01 : f32
    %200 = vector.broadcast %cst_149 : f32 to vector<8x1xf32>
    %201 = arith.divf %199, %200 : vector<8x1xf32>
    %cst_150 = arith.constant 9.99999996E-13 : f32
    %202 = vector.broadcast %cst_150 : f32 to vector<8x1xf32>
    %203 = arith.addf %201, %202 : vector<8x1xf32>
    %204 = math.rsqrt %203 : vector<8x1xf32>
    %205 = vector.broadcast %204 : vector<8x1xf32> to vector<8x64xf32>
    %206 = arith.mulf %196, %205 : vector<8x64xf32>
    %207 = vector.broadcast %188 : vector<1x64xf32> to vector<8x64xf32>
    %208 = arith.mulf %206, %207 : vector<8x64xf32>
    %209 = vector.broadcast %190 : vector<1x64xf32> to vector<8x64xf32>
    %210 = arith.addf %208, %209 : vector<8x64xf32>
    %211 = arith.truncf %210 : vector<8x64xf32> to vector<8x64xbf16>
    %c0_151 = arith.constant 0 : index
    %c0_152 = arith.constant 0 : index
    %c0_153 = arith.constant 0 : index
    %212 = vector.load %arg12[%c0_151, %c0_152, %c0_153] : memref<1x64x128xbf16, #tpu.memory_space<vmem>>, vector<1x64x128xbf16>
    %213 = vector.shape_cast %212 : vector<1x64x128xbf16> to vector<64x128xbf16>
    %cst_154 = arith.constant dense<0.000000e+00> : vector<8x128xf32>
    %214 = tpu.matmul %211, %213, %cst_154 {dimension_numbers = #tpu.dot_dimension_numbers<[1], [0], [0], [1], [0, 0, 1, 1], [], []>} : vector<8x64xbf16>, vector<64x128xbf16>, vector<8x128xf32> -> vector<8x128xf32>
    %c0_155 = arith.constant 0 : index
    %c0_156 = arith.constant 0 : index
    %c0_157 = arith.constant 0 : index
    %215 = vector.load %arg13[%c0_155, %c0_156, %c0_157] : memref<1x1x128xf32, #tpu.memory_space<vmem>>, vector<1x1x128xf32>
    %216 = vector.shape_cast %215 : vector<1x1x128xf32> to vector<1x128xf32>
    %217 = vector.broadcast %216 : vector<1x128xf32> to vector<8x128xf32>
    %218 = arith.addf %214, %217 : vector<8x128xf32>
    %219 = arith.mulf %218, %218 : vector<8x128xf32>
    %220 = arith.mulf %218, %219 : vector<8x128xf32>
    %cst_158 = arith.constant 4.471500e-02 : f32
    %221 = vector.broadcast %cst_158 : f32 to vector<8x128xf32>
    %222 = arith.mulf %221, %220 : vector<8x128xf32>
    %223 = arith.addf %218, %222 : vector<8x128xf32>
    %cst_159 = arith.constant 0.797884583 : f32
    %224 = vector.broadcast %cst_159 : f32 to vector<8x128xf32>
    %225 = arith.mulf %224, %223 : vector<8x128xf32>
    %226 = math.tanh %225 : vector<8x128xf32>
    %cst_160 = arith.constant 1.000000e+00 : f32
    %227 = vector.broadcast %cst_160 : f32 to vector<8x128xf32>
    %228 = arith.addf %227, %226 : vector<8x128xf32>
    %cst_161 = arith.constant 5.000000e-01 : f32
    %229 = vector.broadcast %cst_161 : f32 to vector<8x128xf32>
    %230 = arith.mulf %229, %228 : vector<8x128xf32>
    %231 = arith.mulf %218, %230 : vector<8x128xf32>
    %232 = arith.truncf %231 : vector<8x128xf32> to vector<8x128xbf16>
    %c0_162 = arith.constant 0 : index
    %c0_163 = arith.constant 0 : index
    %c0_164 = arith.constant 0 : index
    %233 = vector.load %arg14[%c0_162, %c0_163, %c0_164] : memref<1x128x64xbf16, #tpu.memory_space<vmem>>, vector<1x128x64xbf16>
    %234 = vector.shape_cast %233 : vector<1x128x64xbf16> to vector<128x64xbf16>
    %cst_165 = arith.constant dense<0.000000e+00> : vector<8x64xf32>
    %235 = tpu.matmul %232, %234, %cst_165 {dimension_numbers = #tpu.dot_dimension_numbers<[1], [0], [0], [1], [0, 0, 1, 1], [], []>} : vector<8x128xbf16>, vector<128x64xbf16>, vector<8x64xf32> -> vector<8x64xf32>
    %c0_166 = arith.constant 0 : index
    %c0_167 = arith.constant 0 : index
    %c0_168 = arith.constant 0 : index
    %236 = vector.load %arg15[%c0_166, %c0_167, %c0_168] : memref<1x1x64xf32, #tpu.memory_space<vmem>>, vector<1x1x64xf32>
    %237 = vector.shape_cast %236 : vector<1x1x64xf32> to vector<1x64xf32>
    %238 = vector.broadcast %237 : vector<1x64xf32> to vector<8x64xf32>
    %239 = arith.addf %235, %238 : vector<8x64xf32>
    %240 = arith.addf %239, %210 : vector<8x64xf32>
    %c0_169 = arith.constant 0 : index
    %c0_170 = arith.constant 0 : index
    %c0_171 = arith.constant 0 : index
    %241 = vector.load %arg16[%c0_169, %c0_170, %c0_171] : memref<1x1x64xf32, #tpu.memory_space<vmem>>, vector<1x1x64xf32>
    %242 = vector.shape_cast %241 : vector<1x1x64xf32> to vector<1x64xf32>
    %c0_172 = arith.constant 0 : index
    %c0_173 = arith.constant 0 : index
    %c0_174 = arith.constant 0 : index
    %243 = vector.load %arg17[%c0_172, %c0_173, %c0_174] : memref<1x1x64xf32, #tpu.memory_space<vmem>>, vector<1x1x64xf32>
    %244 = vector.shape_cast %243 : vector<1x1x64xf32> to vector<1x64xf32>
    %cst_175 = arith.constant dense<0.000000e+00> : vector<8xf32>
    %245 = vector.multi_reduction <add>, %240, %cst_175 [1] : vector<8x64xf32> to vector<8xf32>
    %246 = vector.shape_cast %245 : vector<8xf32> to vector<8x1xf32>
    %cst_176 = arith.constant 6.400000e+01 : f32
    %247 = vector.broadcast %cst_176 : f32 to vector<8x1xf32>
    %248 = arith.divf %246, %247 : vector<8x1xf32>
    %249 = vector.broadcast %248 : vector<8x1xf32> to vector<8x64xf32>
    %250 = arith.subf %240, %249 : vector<8x64xf32>
    %251 = arith.mulf %250, %250 : vector<8x64xf32>
    %cst_177 = arith.constant dense<0.000000e+00> : vector<8xf32>
    %252 = vector.multi_reduction <add>, %251, %cst_177 [1] : vector<8x64xf32> to vector<8xf32>
    %253 = vector.shape_cast %252 : vector<8xf32> to vector<8x1xf32>
    %cst_178 = arith.constant 6.400000e+01 : f32
    %254 = vector.broadcast %cst_178 : f32 to vector<8x1xf32>
    %255 = arith.divf %253, %254 : vector<8x1xf32>
    %cst_179 = arith.constant 9.99999996E-13 : f32
    %256 = vector.broadcast %cst_179 : f32 to vector<8x1xf32>
    %257 = arith.addf %255, %256 : vector<8x1xf32>
    %258 = math.rsqrt %257 : vector<8x1xf32>
    %259 = vector.broadcast %258 : vector<8x1xf32> to vector<8x64xf32>
    %260 = arith.mulf %250, %259 : vector<8x64xf32>
    %261 = vector.broadcast %242 : vector<1x64xf32> to vector<8x64xf32>
    %262 = arith.mulf %260, %261 : vector<8x64xf32>
    %263 = vector.broadcast %244 : vector<1x64xf32> to vector<8x64xf32>
    %264 = arith.addf %262, %263 : vector<8x64xf32>
    %c0_180 = arith.constant 0 : index
    %c0_181 = arith.constant 0 : index
    %265 = vector.load %arg21[%c0_180, %c0_181] : memref<8x64xf32, #tpu.memory_space<vmem>>, vector<8x64xf32>
    tpu.vector_store %arg21[%c0_180, %c0_181], %264 {strides = array<i32>} : memref<8x64xf32, #tpu.memory_space<vmem>>, vector<8x64xf32>,
    %c1_i32 = arith.constant 1 : i32
    %266 = arith.cmpi eq, %arg1, %c1_i32 : i32
    %267 = arith.extui %266 : i1 to i32
    %c0_i32_182 = arith.constant 0 : i32
    %268 = arith.cmpi ne, %267, %c0_i32_182 : i32
    scf.if %268 {
      %269 = vector.extract_strided_slice %264 {offsets = [0, 0], sizes = [1, 64], strides = [1, 1]} : vector<8x64xf32> to vector<1x64xf32>
      %c0_183 = arith.constant 0 : index
      %c0_184 = arith.constant 0 : index
      %270 = vector.load %arg18[%c0_183, %c0_184] : memref<1x64xf32, #tpu.memory_space<vmem>>, vector<1x64xf32>
      %271 = arith.mulf %269, %270 : vector<1x64xf32>
      %cst_185 = arith.constant dense<0.000000e+00> : vector<1xf32>
      %272 = vector.multi_reduction <add>, %271, %cst_185 [1] : vector<1x64xf32> to vector<1xf32>
      %273 = vector.shape_cast %272 : vector<1xf32> to vector<1x1xf32>
      %c0_186 = arith.constant 0 : index
      %274 = memref.load %arg19[%c0_186] : memref<1xf32, #tpu.memory_space<smem>>
      %275 = vector.broadcast %274 : f32 to vector<1x1xf32>
      %276 = arith.addf %273, %275 : vector<1x1xf32>
      %c0_187 = arith.constant 0 : index
      %c0_188 = arith.constant 0 : index
      %c0_189 = arith.constant 0 : index
      %277 = vector.load %arg20[%c0_187, %c0_188, %c0_189] : memref<1x1x1xf32, #tpu.memory_space<vmem>>, vector<1x1x1xf32>
      %278 = vector.shape_cast %277 : vector<1x1x1xf32> to vector<1x1xf32>
      %279 = vector.shape_cast %276 : vector<1x1xf32> to vector<1x1x1xf32>
      tpu.vector_store %arg20[%c0_187, %c0_188, %c0_189], %279 {strides = array<i32>} : memref<1x1x1xf32, #tpu.memory_space<vmem>>, vector<1x1x1xf32>,
    } else {
    }
    return
  }
  func.func @transform_0(%arg0: i32, %arg1: i32) -> (i32, i32, i32) {
    %c0_i32 = arith.constant 0 : i32
    %c0_i32_0 = arith.constant 0 : i32
    %c0_i32_1 = arith.constant 0 : i32
    return %arg0, %c0_i32, %c0_i32_0 : i32, i32, i32
  }
  func.func @transform_1(%arg0: i32, %arg1: i32) -> (i32, i32, i32) {
    %c0_i32 = arith.constant 0 : i32
    %c0_i32_0 = arith.constant 0 : i32
    %c0_i32_1 = arith.constant 0 : i32
    return %arg0, %c0_i32, %c0_i32_0 : i32, i32, i32
  }
  func.func @transform_2(%arg0: i32, %arg1: i32) -> (i32, i32) {
    %c0_i32 = arith.constant 0 : i32
    %c0_i32_0 = arith.constant 0 : i32
    %c0_i32_1 = arith.constant 0 : i32
    return %c0_i32, %c0_i32_0 : i32, i32
  }
  func.func @transform_3(%arg0: i32, %arg1: i32) -> (i32, i32) {
    %c0_i32 = arith.constant 0 : i32
    %c0_i32_0 = arith.constant 0 : i32
    %c0_i32_1 = arith.constant 0 : i32
    return %c0_i32, %c0_i32_0 : i32, i32
  }
  func.func @transform_4(%arg0: i32, %arg1: i32) -> (i32, i32, i32, i32) {
    %c0_i32 = arith.constant 0 : i32
    %c0_i32_0 = arith.constant 0 : i32
    %c0_i32_1 = arith.constant 0 : i32
    %c0_i32_2 = arith.constant 0 : i32
    return %arg1, %c0_i32, %c0_i32_0, %c0_i32_1 : i32, i32, i32, i32
  }
  func.func @transform_5(%arg0: i32, %arg1: i32) -> (i32, i32, i32, i32) {
    %c0_i32 = arith.constant 0 : i32
    %c0_i32_0 = arith.constant 0 : i32
    %c0_i32_1 = arith.constant 0 : i32
    %c0_i32_2 = arith.constant 0 : i32
    return %arg1, %c0_i32, %c0_i32_0, %c0_i32_1 : i32, i32, i32, i32
  }
  func.func @transform_6(%arg0: i32, %arg1: i32) -> (i32, i32, i32, i32) {
    %c0_i32 = arith.constant 0 : i32
    %c0_i32_0 = arith.constant 0 : i32
    %c0_i32_1 = arith.constant 0 : i32
    %c0_i32_2 = arith.constant 0 : i32
    return %arg1, %c0_i32, %c0_i32_0, %c0_i32_1 : i32, i32, i32, i32
  }
  func.func @transform_7(%arg0: i32, %arg1: i32) -> (i32, i32, i32) {
    %c0_i32 = arith.constant 0 : i32
    %c0_i32_0 = arith.constant 0 : i32
    %c0_i32_1 = arith.constant 0 : i32
    return %arg1, %c0_i32, %c0_i32_0 : i32, i32, i32
  }
  func.func @transform_8(%arg0: i32, %arg1: i32) -> (i32, i32, i32) {
    %c0_i32 = arith.constant 0 : i32
    %c0_i32_0 = arith.constant 0 : i32
    %c0_i32_1 = arith.constant 0 : i32
    return %arg1, %c0_i32, %c0_i32_0 : i32, i32, i32
  }
  func.func @transform_9(%arg0: i32, %arg1: i32) -> (i32, i32, i32) {
    %c0_i32 = arith.constant 0 : i32
    %c0_i32_0 = arith.constant 0 : i32
    %c0_i32_1 = arith.constant 0 : i32
    return %arg1, %c0_i32, %c0_i32_0 : i32, i32, i32
  }
  func.func @transform_10(%arg0: i32, %arg1: i32) -> (i32, i32, i32) {
    %c0_i32 = arith.constant 0 : i32
    %c0_i32_0 = arith.constant 0 : i32
    %c0_i32_1 = arith.constant 0 : i32
    return %arg1, %c0_i32, %c0_i32_0 : i32, i32, i32
  }
  func.func @transform_11(%arg0: i32, %arg1: i32) -> (i32, i32, i32) {
    %c0_i32 = arith.constant 0 : i32
    %c0_i32_0 = arith.constant 0 : i32
    %c0_i32_1 = arith.constant 0 : i32
    return %arg1, %c0_i32, %c0_i32_0 : i32, i32, i32
  }
  func.func @transform_12(%arg0: i32, %arg1: i32) -> (i32, i32, i32) {
    %c0_i32 = arith.constant 0 : i32
    %c0_i32_0 = arith.constant 0 : i32
    %c0_i32_1 = arith.constant 0 : i32
    return %arg1, %c0_i32, %c0_i32_0 : i32, i32, i32
  }
  func.func @transform_13(%arg0: i32, %arg1: i32) -> (i32, i32, i32) {
    %c0_i32 = arith.constant 0 : i32
    %c0_i32_0 = arith.constant 0 : i32
    %c0_i32_1 = arith.constant 0 : i32
    return %arg1, %c0_i32, %c0_i32_0 : i32, i32, i32
  }
  func.func @transform_14(%arg0: i32, %arg1: i32) -> (i32, i32, i32) {
    %c0_i32 = arith.constant 0 : i32
    %c0_i32_0 = arith.constant 0 : i32
    %c0_i32_1 = arith.constant 0 : i32
    return %arg1, %c0_i32, %c0_i32_0 : i32, i32, i32
  }
  func.func @transform_15(%arg0: i32, %arg1: i32) -> (i32, i32, i32) {
    %c0_i32 = arith.constant 0 : i32
    %c0_i32_0 = arith.constant 0 : i32
    %c0_i32_1 = arith.constant 0 : i32
    return %arg1, %c0_i32, %c0_i32_0 : i32, i32, i32
  }
  func.func @transform_16(%arg0: i32, %arg1: i32) -> (i32, i32) {
    %c0_i32 = arith.constant 0 : i32
    %c0_i32_0 = arith.constant 0 : i32
    %c0_i32_1 = arith.constant 0 : i32
    return %c0_i32, %c0_i32_0 : i32, i32
  }
  func.func @transform_17(%arg0: i32, %arg1: i32) -> i32 {
    %c0_i32 = arith.constant 0 : i32
    %c0_i32_0 = arith.constant 0 : i32
    return %c0_i32 : i32
  }
  func.func @transform_18(%arg0: i32, %arg1: i32) -> (i32, i32, i32) {
    %c0_i32 = arith.constant 0 : i32
    %c0_i32_0 = arith.constant 0 : i32
    %c0_i32_1 = arith.constant 0 : i32
    return %arg0, %c0_i32, %c0_i32_0 : i32, i32, i32
  }
}

</mosaic_0001>

<llo_original>
// kernel: distilbert_regressor.1
$region0: #{distilbert_regressor.1}
  #allocation0 [shape = 'u32[]', space=smem, size = 0x4, offset = 0x4, fixed_abs, tag = 'smem constant byte address 0x4 - core index']
  #allocation1 [shape = 'u32[144,128]{1,0:T(1,128)}', space=vmem, size = 0x12000, scoped, tag = 'internal scratch']
  #allocation2 [shape = 'f32[8,64]{1,0:T(8,128)}', space=vmem, size = 0x1000, scoped, tag = 'scratch operand']
  #allocation3 [shape = 'f32[1]{0:T(128)S(6)}', space=smem, size = 0x200, scoped, tag = 'scoped memory for distilbert_regressor.1']
  %s0 = inlined_call_operand.vmem [shape: f32[2,8,64], index: 0, kind: input, shape index: {}]
  %s1 = inlined_call_operand.vmem [shape: f32[2,1,8], index: 1, kind: input, shape index: {}]
  %s2 = inlined_call_operand.vmem [shape: f32[1,64], index: 2, kind: input, shape index: {}]
  %s3 = inlined_call_operand.vmem [shape: f32[1,64], index: 3, kind: input, shape index: {}]
  %s4 = inlined_call_operand.vmem [shape: bf16[2,12,64,16], index: 4, kind: input, shape index: {}]
  %s5 = inlined_call_operand.vmem [shape: f32[2,12,1,16], index: 5, kind: input, shape index: {}]
  %s6 = inlined_call_operand.vmem [shape: bf16[2,4,16,64], index: 6, kind: input, shape index: {}]
  %s7 = inlined_call_operand.vmem [shape: f32[2,1,64], index: 7, kind: input, shape index: {}]
  %s8 = inlined_call_operand.vmem [shape: f32[2,1,64], index: 8, kind: input, shape index: {}]
  %s9 = inlined_call_operand.vmem [shape: f32[2,1,64], index: 9, kind: input, shape index: {}]
  %s10 = inlined_call_operand.vmem [shape: bf16[2,64,128], index: 10, kind: input, shape index: {}]
  %s11 = inlined_call_operand.vmem [shape: f32[2,1,128], index: 11, kind: input, shape index: {}]
  %s12 = inlined_call_operand.vmem [shape: bf16[2,128,64], index: 12, kind: input, shape index: {}]
  %s13 = inlined_call_operand.vmem [shape: f32[2,1,64], index: 13, kind: input, shape index: {}]
  %s14 = inlined_call_operand.vmem [shape: f32[2,1,64], index: 14, kind: input, shape index: {}]
  %s15 = inlined_call_operand.vmem [shape: f32[2,1,64], index: 15, kind: input, shape index: {}]
  %s16 = inlined_call_operand.vmem [shape: f32[1,64], index: 16, kind: input, shape index: {}]
  %s17 = inlined_call_operand.<no memory space> [shape: f32[1], index: 17, kind: input, shape index: {}]
  %s18 = inlined_call_operand.vmem [shape: f32[2,1,1], index: 18, kind: output, shape index: {}]
  %s19 = sld [smem:[#allocation0]]
  $region113: #{distilbert_regressor.1} parent=0
    _
  %s21 = ssub.s32 1, %s19
  %s22 = scalar_select 0, %s21, %s19
  %23 = sst [smem:[#allocation3]] %s17
  loop: start=0, step=1, limit=6
  $region2: #{distilbert_regressor.1} parent=0 // loop_pre_header
    _
  $region3: #{distilbert_regressor.1} parent=0 // loop_header
    %s25 = sphi 0, %s29
    %p26 = scmp.ge.s32.totalorder %s25, 6
    %s32 = sphi 0, %s44
    %s33 = sphi 0, %s40
    %s34 = sphi 0, %s32
    %s35 = sphi 0, %s33
    %s36 = sphi 0, %s34
    %s37 = sphi 0, %s35
    %s47 = sphi 0, %s49
    %s50 = sphi 0, %s47
    %s51 = sphi 0, %s50
    %s67 = sphi 0, %s51
    %s73 = sphi 0, %s75
    %s76 = sphi 0, %s73
    %s77 = sphi 0, %s76
    %s93 = sphi 0, %s77
    %s97 = sphi 0, %s97
    %s99 = sphi 0, %s97
    %s100 = sphi 0, %s99
    %s114 = sphi 0, %s100
    %s118 = sphi 0, %s118
    %s120 = sphi 0, %s118
    %s121 = sphi 0, %s120
    %s135 = sphi 0, %s121
    %s141 = sphi 0, %s143
    %s144 = sphi 0, %s141
    %s145 = sphi 0, %s144
    %s161 = sphi 0, %s145
    %s167 = sphi 0, %s169
    %s170 = sphi 0, %s167
    %s171 = sphi 0, %s170
    %s187 = sphi 0, %s171
    %s193 = sphi 0, %s195
    %s196 = sphi 0, %s193
    %s197 = sphi 0, %s196
    %s213 = sphi 0, %s197
    %s219 = sphi 0, %s221
    %s222 = sphi 0, %s219
    %s223 = sphi 0, %s222
    %s239 = sphi 0, %s223
    %s245 = sphi 0, %s247
    %s248 = sphi 0, %s245
    %s249 = sphi 0, %s248
    %s265 = sphi 0, %s249
    %s271 = sphi 0, %s273
    %s274 = sphi 0, %s271
    %s275 = sphi 0, %s274
    %s291 = sphi 0, %s275
    %s297 = sphi 0, %s299
    %s300 = sphi 0, %s297
    %s301 = sphi 0, %s300
    %s317 = sphi 0, %s301
    %s323 = sphi 0, %s325
    %s326 = sphi 0, %s323
    %s327 = sphi 0, %s326
    %s343 = sphi 0, %s327
    %s349 = sphi 0, %s351
    %s352 = sphi 0, %s349
    %s353 = sphi 0, %s352
    %s369 = sphi 0, %s353
    %s375 = sphi 0, %s377
    %s378 = sphi 0, %s375
    %s379 = sphi 0, %s378
    %s395 = sphi 0, %s379
    %s401 = sphi 0, %s403
    %s404 = sphi 0, %s401
    %s405 = sphi 0, %s404
    %s421 = sphi 0, %s405
    %s427 = sphi 0, %s429
    %s430 = sphi 0, %s427
    %s431 = sphi 0, %s430
    %s447 = sphi 0, %s431
    %s451 = sphi 0, %s451
    %s453 = sphi 0, %s451
    %s454 = sphi 0, %s453
    %s468 = sphi 0, %s454
    %s472 = sphi 0, %s472
    %s474 = sphi 0, %s472
    %s475 = sphi 0, %s474
    %s489 = sphi 0, %s475
    %s495 = sphi 0, %s497
    %s498 = sphi 0, %s495
    %s499 = sphi 0, %s498
    %s515 = sphi 0, %s499
  $region4: #{distilbert_regressor.1} parent=0 // loop_header_branch
    %28 = sbr.rel (%p26) target = $region8
  $region5: #{distilbert_regressor.1} parent=0 // loop_body
    %s30 = ssub.s32 %s25, 1
    %s31 = ssub.s32 %s25, 2
    %s38 = sadd.s32 1, %s33
    %p39 = scmp.ge.s32.totalorder %s38, 2
    %s40 = scalar_select %p39, 0, %s38
    %s41 = sadd.s32 1, %s32
    %s42 = scalar_select %p39, %s41, %s32
    %p43 = scmp.ge.s32.totalorder %s42, 2
    %s44 = scalar_select %p43, 0, %s42
    %s45 = ssub.s32 %s32, %s44
    %p46 = scmp.eq.s32.totalorder %s45, 0
    %s48 = sadd.s32 %s47, 1
    %s49 = scalar_select %p46, %s47, %s48
    %p52 = pneg %p46
    %p53 = scmp.eq.s32.totalorder %s25, 3
    %p54 = por %p52, %p53
    %p55 = scmp.ne.s32.totalorder %s47, %s50
    %p56 = scmp.eq.s32.totalorder %s25, 0
    %p57 = por %p55, %p56
    %p58 = scmp.ne.s32.totalorder %s47, %s50
    %p59 = scmp.eq.s32.totalorder %s30, 3
    %p60 = por %p58, %p59
    %p61 = scmp.ne.s32.totalorder %s50, %s51
    %p62 = scmp.eq.s32.totalorder %s30, 0
    %p63 = por %p61, %p62
    %p64 = scmp.ne.s32.totalorder %s50, %s51
    %p65 = scmp.eq.s32.totalorder %s31, 3
    %p66 = por %p64, %p65
    %p68 = scmp.ne.s32.totalorder %s51, %s67
    %p69 = scmp.eq.s32.totalorder %s31, 0
    %p70 = por %p68, %p69
    %s71 = ssub.s32 %s32, %s44
    %p72 = scmp.eq.s32.totalorder %s71, 0
    %s74 = sadd.s32 %s73, 1
    %s75 = scalar_select %p72, %s73, %s74
    %p78 = pneg %p72
    %p79 = scmp.eq.s32.totalorder %s25, 3
    %p80 = por %p78, %p79
    %p81 = scmp.ne.s32.totalorder %s73, %s76
    %p82 = scmp.eq.s32.totalorder %s25, 0
    %p83 = por %p81, %p82
    %p84 = scmp.ne.s32.totalorder %s73, %s76
    %p85 = scmp.eq.s32.totalorder %s30, 3
    %p86 = por %p84, %p85
    %p87 = scmp.ne.s32.totalorder %s76, %s77
    %p88 = scmp.eq.s32.totalorder %s30, 0
    %p89 = por %p87, %p88
    %p90 = scmp.ne.s32.totalorder %s76, %s77
    %p91 = scmp.eq.s32.totalorder %s31, 3
    %p92 = por %p90, %p91
    %p94 = scmp.ne.s32.totalorder %s77, %s93
    %p95 = scmp.eq.s32.totalorder %s31, 0
    %p96 = por %p94, %p95
    %s98 = sadd.s32 %s97, 1
    %p101 = scmp.eq.s32.totalorder %s25, 3
    %p102 = scmp.ne.s32.totalorder %s97, %s99
    %p103 = scmp.eq.s32.totalorder %s25, 0
    %p104 = por %p102, %p103
    %p105 = scmp.ne.s32.totalorder %s97, %s99
    %p106 = scmp.eq.s32.totalorder %s30, 3
    %p107 = por %p105, %p106
    %p108 = scmp.ne.s32.totalorder %s99, %s100
    %p109 = scmp.eq.s32.totalorder %s30, 0
    %p110 = por %p108, %p109
    %p111 = scmp.ne.s32.totalorder %s99, %s100
    %p112 = scmp.eq.s32.totalorder %s31, 3
    %p113 = por %p111, %p112
    %p115 = scmp.ne.s32.totalorder %s100, %s114
    %p116 = scmp.eq.s32.totalorder %s31, 0
    %p117 = por %p115, %p116
    %s119 = sadd.s32 %s118, 1
    %p122 = scmp.eq.s32.totalorder %s25, 3
    %p123 = scmp.ne.s32.totalorder %s118, %s120
    %p124 = scmp.eq.s32.totalorder %s25, 0
    %p125 = por %p123, %p124
    %p126 = scmp.ne.s32.totalorder %s118, %s120
    %p127 = scmp.eq.s32.totalorder %s30, 3
    %p128 = por %p126, %p127
    %p129 = scmp.ne.s32.totalorder %s120, %s121
    %p130 = scmp.eq.s32.totalorder %s30, 0
    %p131 = por %p129, %p130
    %p132 = scmp.ne.s32.totalorder %s120, %s121
    %p133 = scmp.eq.s32.totalorder %s31, 3
    %p134 = por %p132, %p133
    %p136 = scmp.ne.s32.totalorder %s121, %s135
    %p137 = scmp.eq.s32.totalorder %s31, 0
    %p138 = por %p136, %p137
    %s139 = ssub.s32 %s33, %s40
    %p140 = scmp.eq.s32.totalorder %s139, 0
    %s142 = sadd.s32 %s141, 1
    %s143 = scalar_select %p140, %s141, %s142
    %p146 = pneg %p140
    %p147 = scmp.eq.s32.totalorder %s25, 3
    %p148 = por %p146, %p147
    %p149 = scmp.ne.s32.totalorder %s141, %s144
    %p150 = scmp.eq.s32.totalorder %s25, 0
    %p151 = por %p149, %p150
    %p152 = scmp.ne.s32.totalorder %s141, %s144
    %p153 = scmp.eq.s32.totalorder %s30, 3
    %p154 = por %p152, %p153
    %p155 = scmp.ne.s32.totalorder %s144, %s145
    %p156 = scmp.eq.s32.totalorder %s30, 0
    %p157 = por %p155, %p156
    %p158 = scmp.ne.s32.totalorder %s144, %s145
    %p159 = scmp.eq.s32.totalorder %s31, 3
    %p160 = por %p158, %p159
    %p162 = scmp.ne.s32.totalorder %s145, %s161
    %p163 = scmp.eq.s32.totalorder %s31, 0
    %p164 = por %p162, %p163
    %s165 = ssub.s32 %s33, %s40
    %p166 = scmp.eq.s32.totalorder %s165, 0
    %s168 = sadd.s32 %s167, 1
    %s169 = scalar_select %p166, %s167, %s168
    %p172 = pneg %p166
    %p173 = scmp.eq.s32.totalorder %s25, 3
    %p174 = por %p172, %p173
    %p175 = scmp.ne.s32.totalorder %s167, %s170
    %p176 = scmp.eq.s32.totalorder %s25, 0
    %p177 = por %p175, %p176
    %p178 = scmp.ne.s32.totalorder %s167, %s170
    %p179 = scmp.eq.s32.totalorder %s30, 3
    %p180 = por %p178, %p179
    %p181 = scmp.ne.s32.totalorder %s170, %s171
    %p182 = scmp.eq.s32.totalorder %s30, 0
    %p183 = por %p181, %p182
    %p184 = scmp.ne.s32.totalorder %s170, %s171
    %p185 = scmp.eq.s32.totalorder %s31, 3
    %p186 = por %p184, %p185
    %p188 = scmp.ne.s32.totalorder %s171, %s187
    %p189 = scmp.eq.s32.totalorder %s31, 0
    %p190 = por %p188, %p189
    %s191 = ssub.s32 %s33, %s40
    %p192 = scmp.eq.s32.totalorder %s191, 0
    %s194 = sadd.s32 %s193, 1
    %s195 = scalar_select %p192, %s193, %s194
    %p198 = pneg %p192
    %p199 = scmp.eq.s32.totalorder %s25, 3
    %p200 = por %p198, %p199
    %p201 = scmp.ne.s32.totalorder %s193, %s196
    %p202 = scmp.eq.s32.totalorder %s25, 0
    %p203 = por %p201, %p202
    %p204 = scmp.ne.s32.totalorder %s193, %s196
    %p205 = scmp.eq.s32.totalorder %s30, 3
    %p206 = por %p204, %p205
    %p207 = scmp.ne.s32.totalorder %s196, %s197
    %p208 = scmp.eq.s32.totalorder %s30, 0
    %p209 = por %p207, %p208
    %p210 = scmp.ne.s32.totalorder %s196, %s197
    %p211 = scmp.eq.s32.totalorder %s31, 3
    %p212 = por %p210, %p211
    %p214 = scmp.ne.s32.totalorder %s197, %s213
    %p215 = scmp.eq.s32.totalorder %s31, 0
    %p216 = por %p214, %p215
    %s217 = ssub.s32 %s33, %s40
    %p218 = scmp.eq.s32.totalorder %s217, 0
    %s220 = sadd.s32 %s219, 1
    %s221 = scalar_select %p218, %s219, %s220
    %p224 = pneg %p218
    %p225 = scmp.eq.s32.totalorder %s25, 3
    %p226 = por %p224, %p225
    %p227 = scmp.ne.s32.totalorder %s219, %s222
    %p228 = scmp.eq.s32.totalorder %s25, 0
    %p229 = por %p227, %p228
    %p230 = scmp.ne.s32.totalorder %s219, %s222
    %p231 = scmp.eq.s32.totalorder %s30, 3
    %p232 = por %p230, %p231
    %p233 = scmp.ne.s32.totalorder %s222, %s223
    %p234 = scmp.eq.s32.totalorder %s30, 0
    %p235 = por %p233, %p234
    %p236 = scmp.ne.s32.totalorder %s222, %s223
    %p237 = scmp.eq.s32.totalorder %s31, 3
    %p238 = por %p236, %p237
    %p240 = scmp.ne.s32.totalorder %s223, %s239
    %p241 = scmp.eq.s32.totalorder %s31, 0
    %p242 = por %p240, %p241
    %s243 = ssub.s32 %s33, %s40
    %p244 = scmp.eq.s32.totalorder %s243, 0
    %s246 = sadd.s32 %s245, 1
    %s247 = scalar_select %p244, %s245, %s246
    %p250 = pneg %p244
    %p251 = scmp.eq.s32.totalorder %s25, 3
    %p252 = por %p250, %p251
    %p253 = scmp.ne.s32.totalorder %s245, %s248
    %p254 = scmp.eq.s32.totalorder %s25, 0
    %p255 = por %p253, %p254
    %p256 = scmp.ne.s32.totalorder %s245, %s248
    %p257 = scmp.eq.s32.totalorder %s30, 3
    %p258 = por %p256, %p257
    %p259 = scmp.ne.s32.totalorder %s248, %s249
    %p260 = scmp.eq.s32.totalorder %s30, 0
    %p261 = por %p259, %p260
    %p262 = scmp.ne.s32.totalorder %s248, %s249
    %p263 = scmp.eq.s32.totalorder %s31, 3
    %p264 = por %p262, %p263
    %p266 = scmp.ne.s32.totalorder %s249, %s265
    %p267 = scmp.eq.s32.totalorder %s31, 0
    %p268 = por %p266, %p267
    %s269 = ssub.s32 %s33, %s40
    %p270 = scmp.eq.s32.totalorder %s269, 0
    %s272 = sadd.s32 %s271, 1
    %s273 = scalar_select %p270, %s271, %s272
    %p276 = pneg %p270
    %p277 = scmp.eq.s32.totalorder %s25, 3
    %p278 = por %p276, %p277
    %p279 = scmp.ne.s32.totalorder %s271, %s274
    %p280 = scmp.eq.s32.totalorder %s25, 0
    %p281 = por %p279, %p280
    %p282 = scmp.ne.s32.totalorder %s271, %s274
    %p283 = scmp.eq.s32.totalorder %s30, 3
    %p284 = por %p282, %p283
    %p285 = scmp.ne.s32.totalorder %s274, %s275
    %p286 = scmp.eq.s32.totalorder %s30, 0
    %p287 = por %p285, %p286
    %p288 = scmp.ne.s32.totalorder %s274, %s275
    %p289 = scmp.eq.s32.totalorder %s31, 3
    %p290 = por %p288, %p289
    %p292 = scmp.ne.s32.totalorder %s275, %s291
    %p293 = scmp.eq.s32.totalorder %s31, 0
    %p294 = por %p292, %p293
    %s295 = ssub.s32 %s33, %s40
    %p296 = scmp.eq.s32.totalorder %s295, 0
    %s298 = sadd.s32 %s297, 1
    %s299 = scalar_select %p296, %s297, %s298
    %p302 = pneg %p296
    %p303 = scmp.eq.s32.totalorder %s25, 3
    %p304 = por %p302, %p303
    %p305 = scmp.ne.s32.totalorder %s297, %s300
    %p306 = scmp.eq.s32.totalorder %s25, 0
    %p307 = por %p305, %p306
    %p308 = scmp.ne.s32.totalorder %s297, %s300
    %p309 = scmp.eq.s32.totalorder %s30, 3
    %p310 = por %p308, %p309
    %p311 = scmp.ne.s32.totalorder %s300, %s301
    %p312 = scmp.eq.s32.totalorder %s30, 0
    %p313 = por %p311, %p312
    %p314 = scmp.ne.s32.totalorder %s300, %s301
    %p315 = scmp.eq.s32.totalorder %s31, 3
    %p316 = por %p314, %p315
    %p318 = scmp.ne.s32.totalorder %s301, %s317
    %p319 = scmp.eq.s32.totalorder %s31, 0
    %p320 = por %p318, %p319
    %s321 = ssub.s32 %s33, %s40
    %p322 = scmp.eq.s32.totalorder %s321, 0
    %s324 = sadd.s32 %s323, 1
    %s325 = scalar_select %p322, %s323, %s324
    %p328 = pneg %p322
    %p329 = scmp.eq.s32.totalorder %s25, 3
    %p330 = por %p328, %p329
    %p331 = scmp.ne.s32.totalorder %s323, %s326
    %p332 = scmp.eq.s32.totalorder %s25, 0
    %p333 = por %p331, %p332
    %p334 = scmp.ne.s32.totalorder %s323, %s326
    %p335 = scmp.eq.s32.totalorder %s30, 3
    %p336 = por %p334, %p335
    %p337 = scmp.ne.s32.totalorder %s326, %s327
    %p338 = scmp.eq.s32.totalorder %s30, 0
    %p339 = por %p337, %p338
    %p340 = scmp.ne.s32.totalorder %s326, %s327
    %p341 = scmp.eq.s32.totalorder %s31, 3
    %p342 = por %p340, %p341
    %p344 = scmp.ne.s32.totalorder %s327, %s343
    %p345 = scmp.eq.s32.totalorder %s31, 0
    %p346 = por %p344, %p345
    %s347 = ssub.s32 %s33, %s40
    %p348 = scmp.eq.s32.totalorder %s347, 0
    %s350 = sadd.s32 %s349, 1
    %s351 = scalar_select %p348, %s349, %s350
    %p354 = pneg %p348
    %p355 = scmp.eq.s32.totalorder %s25, 3
    %p356 = por %p354, %p355
    %p357 = scmp.ne.s32.totalorder %s349, %s352
    %p358 = scmp.eq.s32.totalorder %s25, 0
    %p359 = por %p357, %p358
    %p360 = scmp.ne.s32.totalorder %s349, %s352
    %p361 = scmp.eq.s32.totalorder %s30, 3
    %p362 = por %p360, %p361
    %p363 = scmp.ne.s32.totalorder %s352, %s353
    %p364 = scmp.eq.s32.totalorder %s30, 0
    %p365 = por %p363, %p364
    %p366 = scmp.ne.s32.totalorder %s352, %s353
    %p367 = scmp.eq.s32.totalorder %s31, 3
    %p368 = por %p366, %p367
    %p370 = scmp.ne.s32.totalorder %s353, %s369
    %p371 = scmp.eq.s32.totalorder %s31, 0
    %p372 = por %p370, %p371
    %s373 = ssub.s32 %s33, %s40
    %p374 = scmp.eq.s32.totalorder %s373, 0
    %s376 = sadd.s32 %s375, 1
    %s377 = scalar_select %p374, %s375, %s376
    %p380 = pneg %p374
    %p381 = scmp.eq.s32.totalorder %s25, 3
    %p382 = por %p380, %p381
    %p383 = scmp.ne.s32.totalorder %s375, %s378
    %p384 = scmp.eq.s32.totalorder %s25, 0
    %p385 = por %p383, %p384
    %p386 = scmp.ne.s32.totalorder %s375, %s378
    %p387 = scmp.eq.s32.totalorder %s30, 3
    %p388 = por %p386, %p387
    %p389 = scmp.ne.s32.totalorder %s378, %s379
    %p390 = scmp.eq.s32.totalorder %s30, 0
    %p391 = por %p389, %p390
    %p392 = scmp.ne.s32.totalorder %s378, %s379
    %p393 = scmp.eq.s32.totalorder %s31, 3
    %p394 = por %p392, %p393
    %p396 = scmp.ne.s32.totalorder %s379, %s395
    %p397 = scmp.eq.s32.totalorder %s31, 0
    %p398 = por %p396, %p397
    %s399 = ssub.s32 %s33, %s40
    %p400 = scmp.eq.s32.totalorder %s399, 0
    %s402 = sadd.s32 %s401, 1
    %s403 = scalar_select %p400, %s401, %s402
    %p406 = pneg %p400
    %p407 = scmp.eq.s32.totalorder %s25, 3
    %p408 = por %p406, %p407
    %p409 = scmp.ne.s32.totalorder %s401, %s404
    %p410 = scmp.eq.s32.totalorder %s25, 0
    %p411 = por %p409, %p410
    %p412 = scmp.ne.s32.totalorder %s401, %s404
    %p413 = scmp.eq.s32.totalorder %s30, 3
    %p414 = por %p412, %p413
    %p415 = scmp.ne.s32.totalorder %s404, %s405
    %p416 = scmp.eq.s32.totalorder %s30, 0
    %p417 = por %p415, %p416
    %p418 = scmp.ne.s32.totalorder %s404, %s405
    %p419 = scmp.eq.s32.totalorder %s31, 3
    %p420 = por %p418, %p419
    %p422 = scmp.ne.s32.totalorder %s405, %s421
    %p423 = scmp.eq.s32.totalorder %s31, 0
    %p424 = por %p422, %p423
    %s425 = ssub.s32 %s33, %s40
    %p426 = scmp.eq.s32.totalorder %s425, 0
    %s428 = sadd.s32 %s427, 1
    %s429 = scalar_select %p426, %s427, %s428
    %p432 = pneg %p426
    %p433 = scmp.eq.s32.totalorder %s25, 3
    %p434 = por %p432, %p433
    %p435 = scmp.ne.s32.totalorder %s427, %s430
    %p436 = scmp.eq.s32.totalorder %s25, 0
    %p437 = por %p435, %p436
    %p438 = scmp.ne.s32.totalorder %s427, %s430
    %p439 = scmp.eq.s32.totalorder %s30, 3
    %p440 = por %p438, %p439
    %p441 = scmp.ne.s32.totalorder %s430, %s431
    %p442 = scmp.eq.s32.totalorder %s30, 0
    %p443 = por %p441, %p442
    %p444 = scmp.ne.s32.totalorder %s430, %s431
    %p445 = scmp.eq.s32.totalorder %s31, 3
    %p446 = por %p444, %p445
    %p448 = scmp.ne.s32.totalorder %s431, %s447
    %p449 = scmp.eq.s32.totalorder %s31, 0
    %p450 = por %p448, %p449
    %s452 = sadd.s32 %s451, 1
    %p455 = scmp.eq.s32.totalorder %s25, 3
    %p456 = scmp.ne.s32.totalorder %s451, %s453
    %p457 = scmp.eq.s32.totalorder %s25, 0
    %p458 = por %p456, %p457
    %p459 = scmp.ne.s32.totalorder %s451, %s453
    %p460 = scmp.eq.s32.totalorder %s30, 3
    %p461 = por %p459, %p460
    %p462 = scmp.ne.s32.totalorder %s453, %s454
    %p463 = scmp.eq.s32.totalorder %s30, 0
    %p464 = por %p462, %p463
    %p465 = scmp.ne.s32.totalorder %s453, %s454
    %p466 = scmp.eq.s32.totalorder %s31, 3
    %p467 = por %p465, %p466
    %p469 = scmp.ne.s32.totalorder %s454, %s468
    %p470 = scmp.eq.s32.totalorder %s31, 0
    %p471 = por %p469, %p470
    %s473 = sadd.s32 %s472, 1
    %p476 = scmp.eq.s32.totalorder %s25, 3
    %p477 = scmp.ne.s32.totalorder %s472, %s474
    %p478 = scmp.eq.s32.totalorder %s25, 0
    %p479 = por %p477, %p478
    %p480 = scmp.ne.s32.totalorder %s472, %s474
    %p481 = scmp.eq.s32.totalorder %s30, 3
    %p482 = por %p480, %p481
    %p483 = scmp.ne.s32.totalorder %s474, %s475
    %p484 = scmp.eq.s32.totalorder %s30, 0
    %p485 = por %p483, %p484
    %p486 = scmp.ne.s32.totalorder %s474, %s475
    %p487 = scmp.eq.s32.totalorder %s31, 3
    %p488 = por %p486, %p487
    %p490 = scmp.ne.s32.totalorder %s475, %s489
    %p491 = scmp.eq.s32.totalorder %s31, 0
    %p492 = por %p490, %p491
    %s493 = ssub.s32 %s32, %s44
    %p494 = scmp.eq.s32.totalorder %s493, 0
    %s496 = sadd.s32 %s495, 1
    %s497 = scalar_select %p494, %s495, %s496
    %p500 = pneg %p494
    %p501 = scmp.eq.s32.totalorder %s25, 3
    %p502 = por %p500, %p501
    %p503 = scmp.ne.s32.totalorder %s495, %s498
    %p504 = scmp.eq.s32.totalorder %s25, 0
    %p505 = por %p503, %p504
    %p506 = scmp.ne.s32.totalorder %s495, %s498
    %p507 = scmp.eq.s32.totalorder %s30, 3
    %p508 = por %p506, %p507
    %p509 = scmp.ne.s32.totalorder %s498, %s499
    %p510 = scmp.eq.s32.totalorder %s30, 0
    %p511 = por %p509, %p510
    %p512 = scmp.ne.s32.totalorder %s498, %s499
    %p513 = scmp.eq.s32.totalorder %s31, 3
    %p514 = por %p512, %p513
    %p516 = scmp.ne.s32.totalorder %s499, %s515
    %p517 = scmp.eq.s32.totalorder %s31, 0
    %p518 = por %p516, %p517
    %p519 = scmp.le.s32.totalorder 1, %s25
    %p520 = scmp.lt.s32.totalorder %s25, 5
    %p521 = pnand %p519, %p520
    %p522 = pneg %p521
    // Predicated region
    $region9: #{distilbert_regressor.1} parent=5 // pred_check
      _
    $region10: #{distilbert_regressor.1} parent=5 // pred_check_branch
      %524 = sbr.rel (%p521) target = $region12
    $region11: #{distilbert_regressor.1} parent=5 // pred_region
      %s525 = ssub.s32 %s25, 1
      // Predicated region
      $region13: #{distilbert_regressor.1} parent=11 // pred_check
        %p526 = pneg %p110
      $region14: #{distilbert_regressor.1} parent=11 // pred_check_branch
        %528 = sbr.rel (%p526) target = $region16
      $region15: #{distilbert_regressor.1} parent=11 // pred_region
        _
      $region16: #{distilbert_regressor.1} parent=11 // pred_fallthru
        _
      // Predicated region
      $region17: #{distilbert_regressor.1} parent=11 // pred_check
        %p529 = pneg %p131
      $region18: #{distilbert_regressor.1} parent=11 // pred_check_branch
        %531 = sbr.rel (%p529) target = $region20
      $region19: #{distilbert_regressor.1} parent=11 // pred_region
        _
      $region20: #{distilbert_regressor.1} parent=11 // pred_fallthru
        _
      // Predicated region
      $region21: #{distilbert_regressor.1} parent=11 // pred_check
        %p532 = pneg %p464
      $region22: #{distilbert_regressor.1} parent=11 // pred_check_branch
        %534 = sbr.rel (%p532) target = $region24
      $region23: #{distilbert_regressor.1} parent=11 // pred_region
        _
      $region24: #{distilbert_regressor.1} parent=11 // pred_fallthru
        _
      // Predicated region
      $region25: #{distilbert_regressor.1} parent=11 // pred_check
        %p535 = pneg %p485
      $region26: #{distilbert_regressor.1} parent=11 // pred_check_branch
        %537 = sbr.rel (%p535) target = $region28
      $region27: #{distilbert_regressor.1} parent=11 // pred_region
        _
      $region28: #{distilbert_regressor.1} parent=11 // pred_fallthru
        _
    $region12: #{distilbert_regressor.1} parent=5 // pred_fallthru
      _
    %p538 = scmp.lt.s32.totalorder %s25, 4
    // Predicated region
    $region29: #{distilbert_regressor.1} parent=5 // pred_check
      %p539 = pneg %p538
    $region30: #{distilbert_regressor.1} parent=5 // pred_check_branch
      %541 = sbr.rel (%p539) target = $region32
    $region31: #{distilbert_regressor.1} parent=5 // pred_region
      // Predicated region
      $region33: #{distilbert_regressor.1} parent=31 // pred_check
        %p542 = pneg %p57
      $region34: #{distilbert_regressor.1} parent=31 // pred_check_branch
        %544 = sbr.rel (%p542) target = $region36
      $region35: #{distilbert_regressor.1} parent=31 // pred_region
        %p545 = scmp.lt.s32.totalorder %s32, 1
        %s546 = scalar_select %p545, %s32, 1
        %s547 = smul.addr %s546, 8
        %s548 = scalar_lea.vmem %s0, %s547
      $region36: #{distilbert_regressor.1} parent=31 // pred_fallthru
        _
      // Predicated region
      $region37: #{distilbert_regressor.1} parent=31 // pred_check
        %p549 = pneg %p83
      $region38: #{distilbert_regressor.1} parent=31 // pred_check_branch
        %551 = sbr.rel (%p549) target = $region40
      $region39: #{distilbert_regressor.1} parent=31 // pred_region
        %p552 = scmp.lt.s32.totalorder %s32, 1
        %s553 = scalar_select %p552, %s32, 1
        %s554 = scalar_lea.vmem %s1, %s553
      $region40: #{distilbert_regressor.1} parent=31 // pred_fallthru
        _
      // Predicated region
      $region41: #{distilbert_regressor.1} parent=31 // pred_check
        %p555 = pneg %p151
      $region42: #{distilbert_regressor.1} parent=31 // pred_check_branch
        %557 = sbr.rel (%p555) target = $region44
      $region43: #{distilbert_regressor.1} parent=31 // pred_region
        %p558 = scmp.lt.s32.totalorder %s33, 1
        %s559 = scalar_select %p558, %s33, 1
        %s560 = smul.addr %s559, 96
        %s561 = smul.addr %s560, 4
        %s562 = scalar_lea.vmem %s4, %s561
      $region44: #{distilbert_regressor.1} parent=31 // pred_fallthru
        _
      // Predicated region
      $region45: #{distilbert_regressor.1} parent=31 // pred_check
        %p563 = pneg %p177
      $region46: #{distilbert_regressor.1} parent=31 // pred_check_branch
        %565 = sbr.rel (%p563) target = $region48
      $region47: #{distilbert_regressor.1} parent=31 // pred_region
        %p566 = scmp.lt.s32.totalorder %s33, 1
        %s567 = scalar_select %p566, %s33, 1
        %s568 = smul.addr %s567, 12
        %s569 = scalar_lea.vmem %s5, %s568
      $region48: #{distilbert_regressor.1} parent=31 // pred_fallthru
        _
      // Predicated region
      $region49: #{distilbert_regressor.1} parent=31 // pred_check
        %p570 = pneg %p203
      $region50: #{distilbert_regressor.1} parent=31 // pred_check_branch
        %572 = sbr.rel (%p570) target = $region52
      $region51: #{distilbert_regressor.1} parent=31 // pred_region
        %p573 = scmp.lt.s32.totalorder %s33, 1
        %s574 = scalar_select %p573, %s33, 1
        %s575 = smul.addr %s574, 8
        %s576 = smul.addr %s575, 4
        %s577 = scalar_lea.vmem %s6, %s576
      $region52: #{distilbert_regressor.1} parent=31 // pred_fallthru
        _
      // Predicated region
      $region53: #{distilbert_regressor.1} parent=31 // pred_check
        %p578 = pneg %p229
      $region54: #{distilbert_regressor.1} parent=31 // pred_check_branch
        %580 = sbr.rel (%p578) target = $region56
      $region55: #{distilbert_regressor.1} parent=31 // pred_region
        %p581 = scmp.lt.s32.totalorder %s33, 1
        %s582 = scalar_select %p581, %s33, 1
        %s583 = scalar_lea.vmem %s7, %s582
      $region56: #{distilbert_regressor.1} parent=31 // pred_fallthru
        _
      // Predicated region
      $region57: #{distilbert_regressor.1} parent=31 // pred_check
        %p584 = pneg %p255
      $region58: #{distilbert_regressor.1} parent=31 // pred_check_branch
        %586 = sbr.rel (%p584) target = $region60
      $region59: #{distilbert_regressor.1} parent=31 // pred_region
        %p587 = scmp.lt.s32.totalorder %s33, 1
        %s588 = scalar_select %p587, %s33, 1
        %s589 = scalar_lea.vmem %s8, %s588
      $region60: #{distilbert_regressor.1} parent=31 // pred_fallthru
        _
      // Predicated region
      $region61: #{distilbert_regressor.1} parent=31 // pred_check
        %p590 = pneg %p281
      $region62: #{distilbert_regressor.1} parent=31 // pred_check_branch
        %592 = sbr.rel (%p590) target = $region64
      $region63: #{distilbert_regressor.1} parent=31 // pred_region
        %p593 = scmp.lt.s32.totalorder %s33, 1
        %s594 = scalar_select %p593, %s33, 1
        %s595 = scalar_lea.vmem %s9, %s594
      $region64: #{distilbert_regressor.1} parent=31 // pred_fallthru
        _
      // Predicated region
      $region65: #{distilbert_regressor.1} parent=31 // pred_check
        %p596 = pneg %p307
      $region66: #{distilbert_regressor.1} parent=31 // pred_check_branch
        %598 = sbr.rel (%p596) target = $region68
      $region67: #{distilbert_regressor.1} parent=31 // pred_region
        %p599 = scmp.lt.s32.totalorder %s33, 1
        %s600 = scalar_select %p599, %s33, 1
        %s601 = smul.addr %s600, 8
        %s602 = smul.addr %s601, 4
        %s603 = scalar_lea.vmem %s10, %s602
      $region68: #{distilbert_regressor.1} parent=31 // pred_fallthru
        _
      // Predicated region
      $region69: #{distilbert_regressor.1} parent=31 // pred_check
        %p604 = pneg %p333
      $region70: #{distilbert_regressor.1} parent=31 // pred_check_branch
        %606 = sbr.rel (%p604) target = $region72
      $region71: #{distilbert_regressor.1} parent=31 // pred_region
        %p607 = scmp.lt.s32.totalorder %s33, 1
        %s608 = scalar_select %p607, %s33, 1
        %s609 = scalar_lea.vmem %s11, %s608
      $region72: #{distilbert_regressor.1} parent=31 // pred_fallthru
        _
      // Predicated region
      $region73: #{distilbert_regressor.1} parent=31 // pred_check
        %p610 = pneg %p359
      $region74: #{distilbert_regressor.1} parent=31 // pred_check_branch
        %612 = sbr.rel (%p610) target = $region76
      $region75: #{distilbert_regressor.1} parent=31 // pred_region
        %p613 = scmp.lt.s32.totalorder %s33, 1
        %s614 = scalar_select %p613, %s33, 1
        %s615 = smul.addr %s614, 16
        %s616 = smul.addr %s615, 4
        %s617 = scalar_lea.vmem %s12, %s616
      $region76: #{distilbert_regressor.1} parent=31 // pred_fallthru
        _
      // Predicated region
      $region77: #{distilbert_regressor.1} parent=31 // pred_check
        %p618 = pneg %p385
      $region78: #{distilbert_regressor.1} parent=31 // pred_check_branch
        %620 = sbr.rel (%p618) target = $region80
      $region79: #{distilbert_regressor.1} parent=31 // pred_region
        %p621 = scmp.lt.s32.totalorder %s33, 1
        %s622 = scalar_select %p621, %s33, 1
        %s623 = scalar_lea.vmem %s13, %s622
      $region80: #{distilbert_regressor.1} parent=31 // pred_fallthru
        _
      // Predicated region
      $region81: #{distilbert_regressor.1} parent=31 // pred_check
        %p624 = pneg %p411
      $region82: #{distilbert_regressor.1} parent=31 // pred_check_branch
        %626 = sbr.rel (%p624) target = $region84
      $region83: #{distilbert_regressor.1} parent=31 // pred_region
        %p627 = scmp.lt.s32.totalorder %s33, 1
        %s628 = scalar_select %p627, %s33, 1
        %s629 = scalar_lea.vmem %s14, %s628
      $region84: #{distilbert_regressor.1} parent=31 // pred_fallthru
        _
      // Predicated region
      $region85: #{distilbert_regressor.1} parent=31 // pred_check
        %p630 = pneg %p437
      $region86: #{distilbert_regressor.1} parent=31 // pred_check_branch
        %632 = sbr.rel (%p630) target = $region88
      $region87: #{distilbert_regressor.1} parent=31 // pred_region
        %p633 = scmp.lt.s32.totalorder %s33, 1
        %s634 = scalar_select %p633, %s33, 1
        %s635 = scalar_lea.vmem %s15, %s634
      $region88: #{distilbert_regressor.1} parent=31 // pred_fallthru
        _
    $region32: #{distilbert_regressor.1} parent=5 // pred_fallthru
      _
    %p636 = scmp.le.s32.totalorder 1, %s25
    %p637 = scmp.lt.s32.totalorder %s25, 5
    %p638 = pnand %p636, %p637
    %p639 = pneg %p638
    // Predicated region
    $region89: #{distilbert_regressor.1} parent=5 // pred_check
      _
    $region90: #{distilbert_regressor.1} parent=5 // pred_check_branch
      %641 = sbr.rel (%p638) target = $region92
    $region91: #{distilbert_regressor.1} parent=5 // pred_region
      %s642 = ssub.s32 %s25, 1
      %p643 = scmp.lt.s32.totalorder %s34, 1
      %s644 = scalar_select %p643, %s34, 1
      %s645 = smul.addr %s644, 8
      %s646 = scalar_lea.vmem %s0, %s645
      %p647 = pneg %p63
      %p648 = pneg %p60
      %p649 = scmp.lt.s32.totalorder %s34, 1
      %s650 = scalar_select %p649, %s34, 1
      %s651 = scalar_lea.vmem %s1, %s650
      %p652 = pneg %p89
      %p653 = pneg %p86
      %p654 = pneg %p110
      %p655 = pneg %p107
      %p656 = pneg %p131
      %p657 = pneg %p128
      %p658 = scmp.lt.s32.totalorder %s35, 1
      %s659 = scalar_select %p658, %s35, 1
      %s660 = smul.addr %s659, 96
      %s661 = smul.addr %s660, 4
      %s662 = scalar_lea.vmem %s4, %s661
      %p663 = pneg %p157
      %p664 = pneg %p154
      %p665 = scmp.lt.s32.totalorder %s35, 1
      %s666 = scalar_select %p665, %s35, 1
      %s667 = smul.addr %s666, 12
      %s668 = scalar_lea.vmem %s5, %s667
      %p669 = pneg %p183
      %p670 = pneg %p180
      %p671 = scmp.lt.s32.totalorder %s35, 1
      %s672 = scalar_select %p671, %s35, 1
      %s673 = smul.addr %s672, 8
      %s674 = smul.addr %s673, 4
      %s675 = scalar_lea.vmem %s6, %s674
      %p676 = pneg %p209
      %p677 = pneg %p206
      %p678 = scmp.lt.s32.totalorder %s35, 1
      %s679 = scalar_select %p678, %s35, 1
      %s680 = scalar_lea.vmem %s7, %s679
      %p681 = pneg %p235
      %p682 = pneg %p232
      %p683 = scmp.lt.s32.totalorder %s35, 1
      %s684 = scalar_select %p683, %s35, 1
      %s685 = scalar_lea.vmem %s8, %s684
      %p686 = pneg %p261
      %p687 = pneg %p258
      %p688 = scmp.lt.s32.totalorder %s35, 1
      %s689 = scalar_select %p688, %s35, 1
      %s690 = scalar_lea.vmem %s9, %s689
      %p691 = pneg %p287
      %p692 = pneg %p284
      %p693 = scmp.lt.s32.totalorder %s35, 1
      %s694 = scalar_select %p693, %s35, 1
      %s695 = smul.addr %s694, 8
      %s696 = smul.addr %s695, 4
      %s697 = scalar_lea.vmem %s10, %s696
      %p698 = pneg %p313
      %p699 = pneg %p310
      %p700 = scmp.lt.s32.totalorder %s35, 1
      %s701 = scalar_select %p700, %s35, 1
      %s702 = scalar_lea.vmem %s11, %s701
      %p703 = pneg %p339
      %p704 = pneg %p336
      %p705 = scmp.lt.s32.totalorder %s35, 1
      %s706 = scalar_select %p705, %s35, 1
      %s707 = smul.addr %s706, 16
      %s708 = smul.addr %s707, 4
      %s709 = scalar_lea.vmem %s12, %s708
      %p710 = pneg %p365
      %p711 = pneg %p362
      %p712 = scmp.lt.s32.totalorder %s35, 1
      %s713 = scalar_select %p712, %s35, 1
      %s714 = scalar_lea.vmem %s13, %s713
      %p715 = pneg %p391
      %p716 = pneg %p388
      %p717 = scmp.lt.s32.totalorder %s35, 1
      %s718 = scalar_select %p717, %s35, 1
      %s719 = scalar_lea.vmem %s14, %s718
      %p720 = pneg %p417
      %p721 = pneg %p414
      %p722 = scmp.lt.s32.totalorder %s35, 1
      %s723 = scalar_select %p722, %s35, 1
      %s724 = scalar_lea.vmem %s15, %s723
      %p725 = pneg %p443
      %p726 = pneg %p440
      %p727 = pneg %p464
      %p728 = pneg %p461
      %p729 = pneg %p485
      %p730 = pneg %p482
      %p731 = pneg %p511
      %p732 = pneg %p508
      %p733 = scmp.lt.s32.totalorder %s34, 1
      %s734 = scalar_select %p733, %s34, 1
      %s735 = scalar_lea.vmem %s18, %s734
      %p736 = scmp.lt.s32.totalorder %s34, 1
      %s737 = scalar_select %p736, %s34, 1
      %s738 = smul.addr %s737, 8
      %s739 = scalar_lea.vmem %s0, %s738
      %p740 = scmp.lt.s32.totalorder %s34, 1
      %s741 = scalar_select %p740, %s34, 1
      %s742 = scalar_lea.vmem %s1, %s741
      %p743 = scmp.lt.s32.totalorder %s35, 1
      %s744 = scalar_select %p743, %s35, 1
      %s745 = smul.addr %s744, 96
      %s746 = smul.addr %s745, 4
      %s747 = scalar_lea.vmem %s4, %s746
      %p748 = scmp.lt.s32.totalorder %s35, 1
      %s749 = scalar_select %p748, %s35, 1
      %s750 = smul.addr %s749, 12
      %s751 = scalar_lea.vmem %s5, %s750
      %p752 = scmp.lt.s32.totalorder %s35, 1
      %s753 = scalar_select %p752, %s35, 1
      %s754 = smul.addr %s753, 8
      %s755 = smul.addr %s754, 4
      %s756 = scalar_lea.vmem %s6, %s755
      %p757 = scmp.lt.s32.totalorder %s35, 1
      %s758 = scalar_select %p757, %s35, 1
      %s759 = scalar_lea.vmem %s7, %s758
      %p760 = scmp.lt.s32.totalorder %s35, 1
      %s761 = scalar_select %p760, %s35, 1
      %s762 = scalar_lea.vmem %s8, %s761
      %p763 = scmp.lt.s32.totalorder %s35, 1
      %s764 = scalar_select %p763, %s35, 1
      %s765 = scalar_lea.vmem %s9, %s764
      %p766 = scmp.lt.s32.totalorder %s35, 1
      %s767 = scalar_select %p766, %s35, 1
      %s768 = smul.addr %s767, 8
      %s769 = smul.addr %s768, 4
      %s770 = scalar_lea.vmem %s10, %s769
      %p771 = scmp.lt.s32.totalorder %s35, 1
      %s772 = scalar_select %p771, %s35, 1
      %s773 = scalar_lea.vmem %s11, %s772
      %p774 = scmp.lt.s32.totalorder %s35, 1
      %s775 = scalar_select %p774, %s35, 1
      %s776 = smul.addr %s775, 16
      %s777 = smul.addr %s776, 4
      %s778 = scalar_lea.vmem %s12, %s777
      %p779 = scmp.lt.s32.totalorder %s35, 1
      %s780 = scalar_select %p779, %s35, 1
      %s781 = scalar_lea.vmem %s13, %s780
      %p782 = scmp.lt.s32.totalorder %s35, 1
      %s783 = scalar_select %p782, %s35, 1
      %s784 = scalar_lea.vmem %s14, %s783
      %p785 = scmp.lt.s32.totalorder %s35, 1
      %s786 = scalar_select %p785, %s35, 1
      %s787 = scalar_lea.vmem %s15, %s786
      %p788 = scmp.lt.s32.totalorder %s34, 1
      %s789 = scalar_select %p788, %s34, 1
      %s790 = scalar_lea.vmem %s18, %s789
      %p792 = scmp.eq.s32.totalorder %s35, 0
      // Predicated region
      $region93: #{distilbert_regressor.1} parent=91 // pred_check
        %p793 = pneg %p792
      $region94: #{distilbert_regressor.1} parent=91 // pred_check_branch
        %795 = sbr.rel (%p793) target = $region96
      $region95: #{distilbert_regressor.1} parent=91 // pred_region
        %v796 = vld [vmem:[%s739] sm:$0xff]
        %v797 = vld [vmem:[%s2] sm:$0x1]
        %v798 = vld [vmem:[%s3] sm:$0x1]
        %vm799 = vcmask 523264
        %v800 = vsel %vm799, %v796, 0.0
        %801 = vadd.xlane.f32.xlu0 %v800
        %v802 = vpop.xlane.xlu0 %801
        %v803 = vrcp.pop 64.0
        %v804 = vmul.f32 %v802, %v803
        %v805 = vsub.f32 %v796, %v804
        %v806 = vmul.f32 %v805, %v805
        %v807 = vsel %vm799, %v806, 0.0
        %808 = vadd.xlane.f32.xlu0 %v807
        %v809 = vpop.xlane.xlu0 %808
        %v810 = vmul.f32 %v809, %v803
        %v811 = vadd.f32 %v810, 1e-12
        %v812 = vrsqrt.pop %v811
        %v813 = vmul.f32 %v805, %v812
        %v815 = vlaneseq
        %v816 = vshrl.u32 %v815, 7
        %v817 = vsub.s32 0, %v816
        %v818 = vrot.slane %v797, %v817
        %v820 = vmul.f32 %v813, %v818
        %v822 = vlaneseq
        %v823 = vshrl.u32 %v822, 7
        %v824 = vsub.s32 0, %v823
        %v825 = vrot.slane %v798, %v824
        %v827 = vadd.f32 %v820, %v825
        %828 = vst.msk [vmem:[#allocation2] sm:$0xff] %vm799, %v827
      $region96: #{distilbert_regressor.1} parent=91 // pred_fallthru
        _
      %v829 = vld [vmem:[#allocation2] sm:$0xff]
      %v830 = vpack.c.bf16 %v829, %v829
      %v831 = vld [vmem:[%s742] sm:$0x1]
      %v832 = vld [vmem:[%s747] sm:$0xf]
      %v833 = vld [vmem:[%s747 + $0x4] sm:$0xf]
      %v834 = vld [vmem:[%s747 + $0x8] sm:$0xf]
      %v835 = vld [vmem:[%s747 + $0xc] sm:$0xf]
      %v836 = vld [vmem:[%s747 + $0x10] sm:$0xf]
      %v837 = vld [vmem:[%s747 + $0x14] sm:$0xf]
      %v838 = vld [vmem:[%s747 + $0x18] sm:$0xf]
      %v839 = vld [vmem:[%s747 + $0x1c] sm:$0xf]
      %v840 = vld [vmem:[%s751] sm:$0x1]
      %v842 = vlaneseq
      %v843 = vshrl.u32 %v842, 7
      %v844 = vsub.s32 0, %v843
      %v845 = vrot.slane %v840, %v844
      %v855 = vunpack.c.l.b16 %v832
      %v856 = vunpack.c.l.b16 %v833
      %v857 = vunpack.c.l.b16 %v834
      %v858 = vunpack.c.l.b16 %v835
      %v859 = vunpack.c.l.b16 %v836
      %v860 = vunpack.c.l.b16 %v837
      %v861 = vunpack.c.l.b16 %v838
      %v862 = vunpack.c.l.b16 %v839
      %v863 = vpack.c.b16 %v856, %v855
      %v864 = vpack.c.b16 %v858, %v857
      %v865 = vpack.c.b16 %v860, %v859
      %v866 = vpack.c.b16 %v862, %v861
      %vm871 = vcmask 523264
      %v873 = vsel %vm871, %v830, 0
      %875 = vmatprep.subr.bf16.mxu0 0
      %876 = vmatpush1.bf16.msra.mxu0 %v863
      %877 = vmatprep.subr.bf16.mxu0 0
      %878 = vmatpush1.bf16.msra.mxu0 %v864
      %879 = vmatprep.subr.bf16.mxu0 0
      %880 = vmatpush1.bf16.msra.mxu0 %v865
      %881 = vmatprep.subr.bf16.mxu0 0
      %882 = vmatpush1.bf16.msra.mxu0 %v866
      %883 = vmatprep.subr.bf16.mxu0 0
      %884 = vmatpush1.bf16.msra.mxu0 0
      %885 = vmatprep.subr.bf16.mxu0 0
      %886 = vmatpush1.bf16.msra.mxu0 0
      %887 = vmatprep.subr.bf16.mxu0 0
      %888 = vmatpush1.bf16.msra.mxu0 0
      %889 = vmatprep.subr.bf16.mxu0 0
      %890 = vmatpush1.bf16.msra.mxu0 0
      %891 = vmatprep.subr.bf16.mxu0 0
      %892 = vmatpush1.bf16.msra.mxu0 0
      %893 = vmatprep.subr.bf16.mxu0 0
      %894 = vmatpush1.bf16.msra.mxu0 0
      %895 = vmatprep.subr.bf16.mxu0 0
      %896 = vmatpush1.bf16.msra.mxu0 0
      %897 = vmatprep.subr.bf16.mxu0 0
      %898 = vmatpush1.bf16.msra.mxu0 0
      %899 = vmatprep.subr.bf16.mxu0 0
      %900 = vmatpush1.bf16.msra.mxu0 0
      %901 = vmatprep.subr.bf16.mxu0 0
      %902 = vmatpush1.bf16.msra.mxu0 0
      %903 = vmatprep.subr.bf16.mxu0 0
      %904 = vmatpush1.bf16.msra.mxu0 0
      %905 = vmatprep.subr.bf16.mxu0 0
      %906 = vmatpush1.bf16.msra.mxu0 0
      %907 = vmatprep.mubr.bf16.mxu0 0
      %908 = vmatmul.mubr.bf16.gmra.mrb[0].mxu0 %v873
      %v909 = vpop.f32.mrb[0].mxu0
      %v910 = vadd.f32 %v845, %v909
      %v911 = vpop.f32.mrb[0].mxu0
      %v912 = vpop.f32.mrb[0].mxu0
      %v913 = vpop.f32.mrb[0].mxu0
      %914 = vdwg.mxu0
      %s915 = scalar_lea.vmem %s747, 128
      %v916 = vld [vmem:[%s915] sm:$0xf]
      %v917 = vld [vmem:[%s915 + $0x4] sm:$0xf]
      %v918 = vld [vmem:[%s915 + $0x8] sm:$0xf]
      %v919 = vld [vmem:[%s915 + $0xc] sm:$0xf]
      %v920 = vld [vmem:[%s915 + $0x10] sm:$0xf]
      %v921 = vld [vmem:[%s915 + $0x14] sm:$0xf]
      %v922 = vld [vmem:[%s915 + $0x18] sm:$0xf]
      %v923 = vld [vmem:[%s915 + $0x1c] sm:$0xf]
      %s924 = scalar_lea.vmem %s751, 4
      %v925 = vld [vmem:[%s924] sm:$0x1]
      %v927 = vlaneseq
      %v928 = vshrl.u32 %v927, 7
      %v929 = vsub.s32 0, %v928
      %v930 = vrot.slane %v925, %v929
      %v940 = vunpack.c.l.b16 %v916
      %v941 = vunpack.c.l.b16 %v917
      %v942 = vunpack.c.l.b16 %v918
      %v943 = vunpack.c.l.b16 %v919
      %v944 = vunpack.c.l.b16 %v920
      %v945 = vunpack.c.l.b16 %v921
      %v946 = vunpack.c.l.b16 %v922
      %v947 = vunpack.c.l.b16 %v923
      %v948 = vpack.c.b16 %v941, %v940
      %v949 = vpack.c.b16 %v943, %v942
      %v950 = vpack.c.b16 %v945, %v944
      %v951 = vpack.c.b16 %v947, %v946
      %956 = vmatprep.subr.bf16.mxu0 0
      %957 = vmatpush1.bf16.msra.mxu0 %v948
      %958 = vmatprep.subr.bf16.mxu0 0
      %959 = vmatpush1.bf16.msra.mxu0 %v949
      %960 = vmatprep.subr.bf16.mxu0 0
      %961 = vmatpush1.bf16.msra.mxu0 %v950
      %962 = vmatprep.subr.bf16.mxu0 0
      %963 = vmatpush1.bf16.msra.mxu0 %v951
      %964 = vmatprep.subr.bf16.mxu0 0
      %965 = vmatpush1.bf16.msra.mxu0 0
      %966 = vmatprep.subr.bf16.mxu0 0
      %967 = vmatpush1.bf16.msra.mxu0 0
      %968 = vmatprep.subr.bf16.mxu0 0
      %969 = vmatpush1.bf16.msra.mxu0 0
      %970 = vmatprep.subr.bf16.mxu0 0
      %971 = vmatpush1.bf16.msra.mxu0 0
      %972 = vmatprep.subr.bf16.mxu0 0
      %973 = vmatpush1.bf16.msra.mxu0 0
      %974 = vmatprep.subr.bf16.mxu0 0
      %975 = vmatpush1.bf16.msra.mxu0 0
      %976 = vmatprep.subr.bf16.mxu0 0
      %977 = vmatpush1.bf16.msra.mxu0 0
      %978 = vmatprep.subr.bf16.mxu0 0
      %979 = vmatpush1.bf16.msra.mxu0 0
      %980 = vmatprep.subr.bf16.mxu0 0
      %981 = vmatpush1.bf16.msra.mxu0 0
      %982 = vmatprep.subr.bf16.mxu0 0
      %983 = vmatpush1.bf16.msra.mxu0 0
      %984 = vmatprep.subr.bf16.mxu0 0
      %985 = vmatpush1.bf16.msra.mxu0 0
      %986 = vmatprep.subr.bf16.mxu0 0
      %987 = vmatpush1.bf16.msra.mxu0 0
      %988 = vmatprep.mubr.bf16.mxu0 0
      %989 = vmatmul.mubr.bf16.gmra.mrb[0].mxu0 %v873
      %v990 = vpop.f32.mrb[0].mxu0
      %v991 = vadd.f32 %v930, %v990
      %v992 = vpop.f32.mrb[0].mxu0
      %v993 = vpop.f32.mrb[0].mxu0
      %v994 = vpop.f32.mrb[0].mxu0
      %995 = vdwg.mxu0
      %s996 = scalar_lea.vmem %s747, 256
      %v997 = vld [vmem:[%s996] sm:$0xf]
      %v998 = vld [vmem:[%s996 + $0x4] sm:$0xf]
      %v999 = vld [vmem:[%s996 + $0x8] sm:$0xf]
      %v1000 = vld [vmem:[%s996 + $0xc] sm:$0xf]
      %v1001 = vld [vmem:[%s996 + $0x10] sm:$0xf]
      %v1002 = vld [vmem:[%s996 + $0x14] sm:$0xf]
      %v1003 = vld [vmem:[%s996 + $0x18] sm:$0xf]
      %v1004 = vld [vmem:[%s996 + $0x1c] sm:$0xf]
      %s1005 = scalar_lea.vmem %s751, 8
      %v1006 = vld [vmem:[%s1005] sm:$0x1]
      %v1008 = vlaneseq
      %v1009 = vshrl.u32 %v1008, 7
      %v1010 = vsub.s32 0, %v1009
      %v1011 = vrot.slane %v1006, %v1010
      %v1021 = vunpack.c.l.b16 %v997
      %v1022 = vunpack.c.l.b16 %v998
      %v1023 = vunpack.c.l.b16 %v999
      %v1024 = vunpack.c.l.b16 %v1000
      %v1025 = vunpack.c.l.b16 %v1001
      %v1026 = vunpack.c.l.b16 %v1002
      %v1027 = vunpack.c.l.b16 %v1003
      %v1028 = vunpack.c.l.b16 %v1004
      %v1029 = vpack.c.b16 %v1022, %v1021
      %v1030 = vpack.c.b16 %v1024, %v1023
      %v1031 = vpack.c.b16 %v1026, %v1025
      %v1032 = vpack.c.b16 %v1028, %v1027
      %1037 = vmatprep.subr.bf16.mxu0 0
      %1038 = vmatpush1.bf16.msra.mxu0 %v1029
      %1039 = vmatprep.subr.bf16.mxu0 0
      %1040 = vmatpush1.bf16.msra.mxu0 %v1030
      %1041 = vmatprep.subr.bf16.mxu0 0
      %1042 = vmatpush1.bf16.msra.mxu0 %v1031
      %1043 = vmatprep.subr.bf16.mxu0 0
      %1044 = vmatpush1.bf16.msra.mxu0 %v1032
      %1045 = vmatprep.subr.bf16.mxu0 0
      %1046 = vmatpush1.bf16.msra.mxu0 0
      %1047 = vmatprep.subr.bf16.mxu0 0
      %1048 = vmatpush1.bf16.msra.mxu0 0
      %1049 = vmatprep.subr.bf16.mxu0 0
      %1050 = vmatpush1.bf16.msra.mxu0 0
      %1051 = vmatprep.subr.bf16.mxu0 0
      %1052 = vmatpush1.bf16.msra.mxu0 0
      %1053 = vmatprep.subr.bf16.mxu0 0
      %1054 = vmatpush1.bf16.msra.mxu0 0
      %1055 = vmatprep.subr.bf16.mxu0 0
      %1056 = vmatpush1.bf16.msra.mxu0 0
      %1057 = vmatprep.subr.bf16.mxu0 0
      %1058 = vmatpush1.bf16.msra.mxu0 0
      %1059 = vmatprep.subr.bf16.mxu0 0
      %1060 = vmatpush1.bf16.msra.mxu0 0
      %1061 = vmatprep.subr.bf16.mxu0 0
      %1062 = vmatpush1.bf16.msra.mxu0 0
      %1063 = vmatprep.subr.bf16.mxu0 0
      %1064 = vmatpush1.bf16.msra.mxu0 0
      %1065 = vmatprep.subr.bf16.mxu0 0
      %1066 = vmatpush1.bf16.msra.mxu0 0
      %1067 = vmatprep.subr.bf16.mxu0 0
      %1068 = vmatpush1.bf16.msra.mxu0 0
      %1069 = vmatprep.mubr.bf16.mxu0 0
      %1070 = vmatmul.mubr.bf16.gmra.mrb[0].mxu0 %v873
      %v1071 = vpop.f32.mrb[0].mxu0
      %v1072 = vadd.f32 %v1011, %v1071
      %v1073 = vpop.f32.mrb[0].mxu0
      %v1074 = vpop.f32.mrb[0].mxu0
      %v1075 = vpop.f32.mrb[0].mxu0
      %1076 = vdwg.mxu0
      %v1077 = vpack.c.bf16 %v910, %v910
      %v1078 = vpack.c.bf16 %v991, %v991
      %v1080 = vlaneseq
      %v1081 = vshrl.u32 %v1080, 7
      %v1082 = vsub.s32 0, %v1081
      %v1083 = vrot.slane %v831, %v1082
      %vm1085 = vcmask 130048
      %v1087 = vsel %vm1085, %v1077, 0
      %v1090 = vsel %vm1085, %v1078, 0
      %1092 = vmatprep.subr.bf16.mxu0 0
      %1093 = vmatpush1.bf16.xpose.msra.mxu0 %v1090
      %1094 = vmatprep.subr.bf16.mxu0 0
      %1095 = vmatpush1.bf16.xpose.msra.mxu0 0
      %1096 = vmatprep.subr.bf16.mxu0 0
      %1097 = vmatpush1.bf16.xpose.msra.mxu0 0
      %1098 = vmatprep.subr.bf16.mxu0 0
      %1099 = vmatpush1.bf16.xpose.msra.mxu0 0
      %1100 = vmatprep.subr.bf16.mxu0 0
      %1101 = vmatpush1.bf16.xpose.msra.mxu0 0
      %1102 = vmatprep.subr.bf16.mxu0 0
      %1103 = vmatpush1.bf16.xpose.msra.mxu0 0
      %1104 = vmatprep.subr.bf16.mxu0 0
      %1105 = vmatpush1.bf16.xpose.msra.mxu0 0
      %1106 = vmatprep.subr.bf16.mxu0 0
      %1107 = vmatpush1.bf16.xpose.msra.mxu0 0
      %1108 = vmatprep.subr.bf16.mxu0 0
      %1109 = vmatpush1.bf16.xpose.msra.mxu0 0
      %1110 = vmatprep.subr.bf16.mxu0 0
      %1111 = vmatpush1.bf16.xpose.msra.mxu0 0
      %1112 = vmatprep.subr.bf16.mxu0 0
      %1113 = vmatpush1.bf16.xpose.msra.mxu0 0
      %1114 = vmatprep.subr.bf16.mxu0 0
      %1115 = vmatpush1.bf16.xpose.msra.mxu0 0
      %1116 = vmatprep.subr.bf16.mxu0 0
      %1117 = vmatpush1.bf16.xpose.msra.mxu0 0
      %1118 = vmatprep.subr.bf16.mxu0 0
      %1119 = vmatpush1.bf16.xpose.msra.mxu0 0
      %1120 = vmatprep.subr.bf16.mxu0 0
      %1121 = vmatpush1.bf16.xpose.msra.mxu0 0
      %1122 = vmatprep.subr.bf16.mxu0 0
      %1123 = vmatpush1.bf16.xpose.msra.mxu0 0
      %1124 = vmatprep.mubr.bf16.mxu0 0
      %1125 = vmatmul.mubr.bf16.gmra.mrb[0].mxu0 %v1087
      %v1126 = vpop.f32.mrb[0].mxu0
      %v1127 = vadd.f32 %v1083, %v1126
      %v1128 = vpop.f32.mrb[0].mxu0
      %v1129 = vpop.f32.mrb[0].mxu0
      %v1130 = vpop.f32.mrb[0].mxu0
      %1131 = vdwg.mxu0
      %vm1132 = vcmask 64512
      %v1133 = vsel %vm1132, %v1127, -inf
      %1134 = vmax.xlane.f32.xlu0 %v1133
      %v1135 = vpop.xlane.xlu0 %1134
      %v1136 = vsub.f32 %v1127, %v1135
      %v1137 = vmul.f32 %v1136, 1.442695
      %v1138 = vpow.pop %v1137
      %v1139 = vsel %vm1132, %v1138, 0.0
      %1140 = vadd.xlane.f32.xlu0 %v1139
      %v1141 = vpop.xlane.xlu0 %1140
      %v1142 = vrcp.pop %v1141
      %v1143 = vmul.f32 %v1138, %v1142
      %v1144 = vpack.c.bf16 %v1143, %v1143
      %v1145 = vpack.c.bf16 %v1072, %v1072
      %v1147 = vsel %vm1132, %v1144, 0
      %vm1149 = vcmask 1043456
      %v1151 = vsel %vm1149, %v1145, 0
      %1153 = vmatprep.subr.bf16.mxu0 0
      %1154 = vmatpush1.bf16.msra.mxu0 %v1151
      %1155 = vmatprep.subr.bf16.mxu0 0
      %1156 = vmatpush1.bf16.msra.mxu0 0
      %1157 = vmatprep.subr.bf16.mxu0 0
      %1158 = vmatpush1.bf16.msra.mxu0 0
      %1159 = vmatprep.subr.bf16.mxu0 0
      %1160 = vmatpush1.bf16.msra.mxu0 0
      %1161 = vmatprep.subr.bf16.mxu0 0
      %1162 = vmatpush1.bf16.msra.mxu0 0
      %1163 = vmatprep.subr.bf16.mxu0 0
      %1164 = vmatpush1.bf16.msra.mxu0 0
      %1165 = vmatprep.subr.bf16.mxu0 0
      %1166 = vmatpush1.bf16.msra.mxu0 0
      %1167 = vmatprep.subr.bf16.mxu0 0
      %1168 = vmatpush1.bf16.msra.mxu0 0
      %1169 = vmatprep.subr.bf16.mxu0 0
      %1170 = vmatpush1.bf16.msra.mxu0 0
      %1171 = vmatprep.subr.bf16.mxu0 0
      %1172 = vmatpush1.bf16.msra.mxu0 0
      %1173 = vmatprep.subr.bf16.mxu0 0
      %1174 = vmatpush1.bf16.msra.mxu0 0
      %1175 = vmatprep.subr.bf16.mxu0 0
      %1176 = vmatpush1.bf16.msra.mxu0 0
      %1177 = vmatprep.subr.bf16.mxu0 0
      %1178 = vmatpush1.bf16.msra.mxu0 0
      %1179 = vmatprep.subr.bf16.mxu0 0
      %1180 = vmatpush1.bf16.msra.mxu0 0
      %1181 = vmatprep.subr.bf16.mxu0 0
      %1182 = vmatpush1.bf16.msra.mxu0 0
      %1183 = vmatprep.subr.bf16.mxu0 0
      %1184 = vmatpush1.bf16.msra.mxu0 0
      %1185 = vmatprep.mubr.bf16.mxu0 0
      %1186 = vmatmul.mubr.bf16.gmra.mrb[0].mxu0 %v1147
      %v1187 = vpop.f32.mrb[0].mxu0
      %v1188 = vadd.f32 0.0, %v1187
      %v1189 = vpop.f32.mrb[0].mxu0
      %v1190 = vpop.f32.mrb[0].mxu0
      %v1191 = vpop.f32.mrb[0].mxu0
      %1192 = vdwg.mxu0
      %v1193 = vpack.c.bf16 %v1188, %v1188
      %v1194 = vld [vmem:[%s756] sm:$0xf]
      %v1195 = vld [vmem:[%s756 + $0x4] sm:$0xf]
      %s1196 = scalar_lea.vmem %s747, 32
      %v1197 = vld [vmem:[%s1196] sm:$0xf]
      %v1198 = vld [vmem:[%s1196 + $0x4] sm:$0xf]
      %v1199 = vld [vmem:[%s1196 + $0x8] sm:$0xf]
      %v1200 = vld [vmem:[%s1196 + $0xc] sm:$0xf]
      %v1201 = vld [vmem:[%s1196 + $0x10] sm:$0xf]
      %v1202 = vld [vmem:[%s1196 + $0x14] sm:$0xf]
      %v1203 = vld [vmem:[%s1196 + $0x18] sm:$0xf]
      %v1204 = vld [vmem:[%s1196 + $0x1c] sm:$0xf]
      %s1205 = scalar_lea.vmem %s751, 1
      %v1206 = vld [vmem:[%s1205] sm:$0x1]
      %v1208 = vlaneseq
      %v1209 = vshrl.u32 %v1208, 7
      %v1210 = vsub.s32 0, %v1209
      %v1211 = vrot.slane %v1206, %v1210
      %v1221 = vunpack.c.l.b16 %v1197
      %v1222 = vunpack.c.l.b16 %v1198
      %v1223 = vunpack.c.l.b16 %v1199
      %v1224 = vunpack.c.l.b16 %v1200
      %v1225 = vunpack.c.l.b16 %v1201
      %v1226 = vunpack.c.l.b16 %v1202
      %v1227 = vunpack.c.l.b16 %v1203
      %v1228 = vunpack.c.l.b16 %v1204
      %v1229 = vpack.c.b16 %v1222, %v1221
      %v1230 = vpack.c.b16 %v1224, %v1223
      %v1231 = vpack.c.b16 %v1226, %v1225
      %v1232 = vpack.c.b16 %v1228, %v1227
      %1237 = vmatprep.subr.bf16.mxu0 0
      %1238 = vmatpush1.bf16.msra.mxu0 %v1229
      %1239 = vmatprep.subr.bf16.mxu0 0
      %1240 = vmatpush1.bf16.msra.mxu0 %v1230
      %1241 = vmatprep.subr.bf16.mxu0 0
      %1242 = vmatpush1.bf16.msra.mxu0 %v1231
      %1243 = vmatprep.subr.bf16.mxu0 0
      %1244 = vmatpush1.bf16.msra.mxu0 %v1232
      %1245 = vmatprep.subr.bf16.mxu0 0
      %1246 = vmatpush1.bf16.msra.mxu0 0
      %1247 = vmatprep.subr.bf16.mxu0 0
      %1248 = vmatpush1.bf16.msra.mxu0 0
      %1249 = vmatprep.subr.bf16.mxu0 0
      %1250 = vmatpush1.bf16.msra.mxu0 0
      %1251 = vmatprep.subr.bf16.mxu0 0
      %1252 = vmatpush1.bf16.msra.mxu0 0
      %1253 = vmatprep.subr.bf16.mxu0 0
      %1254 = vmatpush1.bf16.msra.mxu0 0
      %1255 = vmatprep.subr.bf16.mxu0 0
      %1256 = vmatpush1.bf16.msra.mxu0 0
      %1257 = vmatprep.subr.bf16.mxu0 0
      %1258 = vmatpush1.bf16.msra.mxu0 0
      %1259 = vmatprep.subr.bf16.mxu0 0
      %1260 = vmatpush1.bf16.msra.mxu0 0
      %1261 = vmatprep.subr.bf16.mxu0 0
      %1262 = vmatpush1.bf16.msra.mxu0 0
      %1263 = vmatprep.subr.bf16.mxu0 0
      %1264 = vmatpush1.bf16.msra.mxu0 0
      %1265 = vmatprep.subr.bf16.mxu0 0
      %1266 = vmatpush1.bf16.msra.mxu0 0
      %1267 = vmatprep.subr.bf16.mxu0 0
      %1268 = vmatpush1.bf16.msra.mxu0 0
      %1269 = vmatprep.mubr.bf16.mxu0 0
      %1270 = vmatmul.mubr.bf16.gmra.mrb[0].mxu0 %v873
      %v1271 = vpop.f32.mrb[0].mxu0
      %v1272 = vadd.f32 %v1211, %v1271
      %v1273 = vpop.f32.mrb[0].mxu0
      %v1274 = vpop.f32.mrb[0].mxu0
      %v1275 = vpop.f32.mrb[0].mxu0
      %1276 = vdwg.mxu0
      %s1277 = scalar_lea.vmem %s747, 160
      %v1278 = vld [vmem:[%s1277] sm:$0xf]
      %v1279 = vld [vmem:[%s1277 + $0x4] sm:$0xf]
      %v1280 = vld [vmem:[%s1277 + $0x8] sm:$0xf]
      %v1281 = vld [vmem:[%s1277 + $0xc] sm:$0xf]
      %v1282 = vld [vmem:[%s1277 + $0x10] sm:$0xf]
      %v1283 = vld [vmem:[%s1277 + $0x14] sm:$0xf]
      %v1284 = vld [vmem:[%s1277 + $0x18] sm:$0xf]
      %v1285 = vld [vmem:[%s1277 + $0x1c] sm:$0xf]
      %s1286 = scalar_lea.vmem %s751, 5
      %v1287 = vld [vmem:[%s1286] sm:$0x1]
      %v1289 = vlaneseq
      %v1290 = vshrl.u32 %v1289, 7
      %v1291 = vsub.s32 0, %v1290
      %v1292 = vrot.slane %v1287, %v1291
      %v1302 = vunpack.c.l.b16 %v1278
      %v1303 = vunpack.c.l.b16 %v1279
      %v1304 = vunpack.c.l.b16 %v1280
      %v1305 = vunpack.c.l.b16 %v1281
      %v1306 = vunpack.c.l.b16 %v1282
      %v1307 = vunpack.c.l.b16 %v1283
      %v1308 = vunpack.c.l.b16 %v1284
      %v1309 = vunpack.c.l.b16 %v1285
      %v1310 = vpack.c.b16 %v1303, %v1302
      %v1311 = vpack.c.b16 %v1305, %v1304
      %v1312 = vpack.c.b16 %v1307, %v1306
      %v1313 = vpack.c.b16 %v1309, %v1308
      %1318 = vmatprep.subr.bf16.mxu0 0
      %1319 = vmatpush1.bf16.msra.mxu0 %v1310
      %1320 = vmatprep.subr.bf16.mxu0 0
      %1321 = vmatpush1.bf16.msra.mxu0 %v1311
      %1322 = vmatprep.subr.bf16.mxu0 0
      %1323 = vmatpush1.bf16.msra.mxu0 %v1312
      %1324 = vmatprep.subr.bf16.mxu0 0
      %1325 = vmatpush1.bf16.msra.mxu0 %v1313
      %1326 = vmatprep.subr.bf16.mxu0 0
      %1327 = vmatpush1.bf16.msra.mxu0 0
      %1328 = vmatprep.subr.bf16.mxu0 0
      %1329 = vmatpush1.bf16.msra.mxu0 0
      %1330 = vmatprep.subr.bf16.mxu0 0
      %1331 = vmatpush1.bf16.msra.mxu0 0
      %1332 = vmatprep.subr.bf16.mxu0 0
      %1333 = vmatpush1.bf16.msra.mxu0 0
      %1334 = vmatprep.subr.bf16.mxu0 0
      %1335 = vmatpush1.bf16.msra.mxu0 0
      %1336 = vmatprep.subr.bf16.mxu0 0
      %1337 = vmatpush1.bf16.msra.mxu0 0
      %1338 = vmatprep.subr.bf16.mxu0 0
      %1339 = vmatpush1.bf16.msra.mxu0 0
      %1340 = vmatprep.subr.bf16.mxu0 0
      %1341 = vmatpush1.bf16.msra.mxu0 0
      %1342 = vmatprep.subr.bf16.mxu0 0
      %1343 = vmatpush1.bf16.msra.mxu0 0
      %1344 = vmatprep.subr.bf16.mxu0 0
      %1345 = vmatpush1.bf16.msra.mxu0 0
      %1346 = vmatprep.subr.bf16.mxu0 0
      %1347 = vmatpush1.bf16.msra.mxu0 0
      %1348 = vmatprep.subr.bf16.mxu0 0
      %1349 = vmatpush1.bf16.msra.mxu0 0
      %1350 = vmatprep.mubr.bf16.mxu0 0
      %1351 = vmatmul.mubr.bf16.gmra.mrb[0].mxu0 %v873
      %v1352 = vpop.f32.mrb[0].mxu0
      %v1353 = vadd.f32 %v1292, %v1352
      %v1354 = vpop.f32.mrb[0].mxu0
      %v1355 = vpop.f32.mrb[0].mxu0
      %v1356 = vpop.f32.mrb[0].mxu0
      %1357 = vdwg.mxu0
      %s1358 = scalar_lea.vmem %s747, 288
      %v1359 = vld [vmem:[%s1358] sm:$0xf]
      %v1360 = vld [vmem:[%s1358 + $0x4] sm:$0xf]
      %v1361 = vld [vmem:[%s1358 + $0x8] sm:$0xf]
      %v1362 = vld [vmem:[%s1358 + $0xc] sm:$0xf]
      %v1363 = vld [vmem:[%s1358 + $0x10] sm:$0xf]
      %v1364 = vld [vmem:[%s1358 + $0x14] sm:$0xf]
      %v1365 = vld [vmem:[%s1358 + $0x18] sm:$0xf]
      %v1366 = vld [vmem:[%s1358 + $0x1c] sm:$0xf]
      %s1367 = scalar_lea.vmem %s751, 9
      %v1368 = vld [vmem:[%s1367] sm:$0x1]
      %v1370 = vlaneseq
      %v1371 = vshrl.u32 %v1370, 7
      %v1372 = vsub.s32 0, %v1371
      %v1373 = vrot.slane %v1368, %v1372
      %v1383 = vunpack.c.l.b16 %v1359
      %v1384 = vunpack.c.l.b16 %v1360
      %v1385 = vunpack.c.l.b16 %v1361
      %v1386 = vunpack.c.l.b16 %v1362
      %v1387 = vunpack.c.l.b16 %v1363
      %v1388 = vunpack.c.l.b16 %v1364
      %v1389 = vunpack.c.l.b16 %v1365
      %v1390 = vunpack.c.l.b16 %v1366
      %v1391 = vpack.c.b16 %v1384, %v1383
      %v1392 = vpack.c.b16 %v1386, %v1385
      %v1393 = vpack.c.b16 %v1388, %v1387
      %v1394 = vpack.c.b16 %v1390, %v1389
      %1399 = vmatprep.subr.bf16.mxu0 0
      %1400 = vmatpush1.bf16.msra.mxu0 %v1391
      %1401 = vmatprep.subr.bf16.mxu0 0
      %1402 = vmatpush1.bf16.msra.mxu0 %v1392
      %1403 = vmatprep.subr.bf16.mxu0 0
      %1404 = vmatpush1.bf16.msra.mxu0 %v1393
      %1405 = vmatprep.subr.bf16.mxu0 0
      %1406 = vmatpush1.bf16.msra.mxu0 %v1394
      %1407 = vmatprep.subr.bf16.mxu0 0
      %1408 = vmatpush1.bf16.msra.mxu0 0
      %1409 = vmatprep.subr.bf16.mxu0 0
      %1410 = vmatpush1.bf16.msra.mxu0 0
      %1411 = vmatprep.subr.bf16.mxu0 0
      %1412 = vmatpush1.bf16.msra.mxu0 0
      %1413 = vmatprep.subr.bf16.mxu0 0
      %1414 = vmatpush1.bf16.msra.mxu0 0
      %1415 = vmatprep.subr.bf16.mxu0 0
      %1416 = vmatpush1.bf16.msra.mxu0 0
      %1417 = vmatprep.subr.bf16.mxu0 0
      %1418 = vmatpush1.bf16.msra.mxu0 0
      %1419 = vmatprep.subr.bf16.mxu0 0
      %1420 = vmatpush1.bf16.msra.mxu0 0
      %1421 = vmatprep.subr.bf16.mxu0 0
      %1422 = vmatpush1.bf16.msra.mxu0 0
      %1423 = vmatprep.subr.bf16.mxu0 0
      %1424 = vmatpush1.bf16.msra.mxu0 0
      %1425 = vmatprep.subr.bf16.mxu0 0
      %1426 = vmatpush1.bf16.msra.mxu0 0
      %1427 = vmatprep.subr.bf16.mxu0 0
      %1428 = vmatpush1.bf16.msra.mxu0 0
      %1429 = vmatprep.subr.bf16.mxu0 0
      %1430 = vmatpush1.bf16.msra.mxu0 0
      %1431 = vmatprep.mubr.bf16.mxu0 0
      %1432 = vmatmul.mubr.bf16.gmra.mrb[0].mxu0 %v873
      %v1433 = vpop.f32.mrb[0].mxu0
      %v1434 = vadd.f32 %v1373, %v1433
      %v1435 = vpop.f32.mrb[0].mxu0
      %v1436 = vpop.f32.mrb[0].mxu0
      %v1437 = vpop.f32.mrb[0].mxu0
      %1438 = vdwg.mxu0
      %v1439 = vpack.c.bf16 %v1272, %v1272
      %v1440 = vpack.c.bf16 %v1353, %v1353
      %v1442 = vsel %vm1085, %v1439, 0
      %v1445 = vsel %vm1085, %v1440, 0
      %1447 = vmatprep.subr.bf16.mxu0 0
      %1448 = vmatpush1.bf16.xpose.msra.mxu0 %v1445
      %1449 = vmatprep.subr.bf16.mxu0 0
      %1450 = vmatpush1.bf16.xpose.msra.mxu0 0
      %1451 = vmatprep.subr.bf16.mxu0 0
      %1452 = vmatpush1.bf16.xpose.msra.mxu0 0
      %1453 = vmatprep.subr.bf16.mxu0 0
      %1454 = vmatpush1.bf16.xpose.msra.mxu0 0
      %1455 = vmatprep.subr.bf16.mxu0 0
      %1456 = vmatpush1.bf16.xpose.msra.mxu0 0
      %1457 = vmatprep.subr.bf16.mxu0 0
      %1458 = vmatpush1.bf16.xpose.msra.mxu0 0
      %1459 = vmatprep.subr.bf16.mxu0 0
      %1460 = vmatpush1.bf16.xpose.msra.mxu0 0
      %1461 = vmatprep.subr.bf16.mxu0 0
      %1462 = vmatpush1.bf16.xpose.msra.mxu0 0
      %1463 = vmatprep.subr.bf16.mxu0 0
      %1464 = vmatpush1.bf16.xpose.msra.mxu0 0
      %1465 = vmatprep.subr.bf16.mxu0 0
      %1466 = vmatpush1.bf16.xpose.msra.mxu0 0
      %1467 = vmatprep.subr.bf16.mxu0 0
      %1468 = vmatpush1.bf16.xpose.msra.mxu0 0
      %1469 = vmatprep.subr.bf16.mxu0 0
      %1470 = vmatpush1.bf16.xpose.msra.mxu0 0
      %1471 = vmatprep.subr.bf16.mxu0 0
      %1472 = vmatpush1.bf16.xpose.msra.mxu0 0
      %1473 = vmatprep.subr.bf16.mxu0 0
      %1474 = vmatpush1.bf16.xpose.msra.mxu0 0
      %1475 = vmatprep.subr.bf16.mxu0 0
      %1476 = vmatpush1.bf16.xpose.msra.mxu0 0
      %1477 = vmatprep.subr.bf16.mxu0 0
      %1478 = vmatpush1.bf16.xpose.msra.mxu0 0
      %1479 = vmatprep.mubr.bf16.mxu0 0
      %1480 = vmatmul.mubr.bf16.gmra.mrb[0].mxu0 %v1442
      %v1481 = vpop.f32.mrb[0].mxu0
      %v1482 = vadd.f32 %v1083, %v1481
      %v1483 = vpop.f32.mrb[0].mxu0
      %v1484 = vpop.f32.mrb[0].mxu0
      %v1485 = vpop.f32.mrb[0].mxu0
      %1486 = vdwg.mxu0
      %v1487 = vsel %vm1132, %v1482, -inf
      %1488 = vmax.xlane.f32.xlu0 %v1487
      %v1489 = vpop.xlane.xlu0 %1488
      %v1490 = vsub.f32 %v1482, %v1489
      %v1491 = vmul.f32 %v1490, 1.442695
      %v1492 = vpow.pop %v1491
      %v1493 = vsel %vm1132, %v1492, 0.0
      %1494 = vadd.xlane.f32.xlu0 %v1493
      %v1495 = vpop.xlane.xlu0 %1494
      %v1496 = vrcp.pop %v1495
      %v1497 = vmul.f32 %v1492, %v1496
      %v1498 = vpack.c.bf16 %v1497, %v1497
      %v1499 = vpack.c.bf16 %v1434, %v1434
      %v1501 = vsel %vm1132, %v1498, 0
      %v1504 = vsel %vm1149, %v1499, 0
      %1506 = vmatprep.subr.bf16.mxu0 0
      %1507 = vmatpush1.bf16.msra.mxu0 %v1504
      %1508 = vmatprep.subr.bf16.mxu0 0
      %1509 = vmatpush1.bf16.msra.mxu0 0
      %1510 = vmatprep.subr.bf16.mxu0 0
      %1511 = vmatpush1.bf16.msra.mxu0 0
      %1512 = vmatprep.subr.bf16.mxu0 0
      %1513 = vmatpush1.bf16.msra.mxu0 0
      %1514 = vmatprep.subr.bf16.mxu0 0
      %1515 = vmatpush1.bf16.msra.mxu0 0
      %1516 = vmatprep.subr.bf16.mxu0 0
      %1517 = vmatpush1.bf16.msra.mxu0 0
      %1518 = vmatprep.subr.bf16.mxu0 0
      %1519 = vmatpush1.bf16.msra.mxu0 0
      %1520 = vmatprep.subr.bf16.mxu0 0
      %1521 = vmatpush1.bf16.msra.mxu0 0
      %1522 = vmatprep.subr.bf16.mxu0 0
      %1523 = vmatpush1.bf16.msra.mxu0 0
      %1524 = vmatprep.subr.bf16.mxu0 0
      %1525 = vmatpush1.bf16.msra.mxu0 0
      %1526 = vmatprep.subr.bf16.mxu0 0
      %1527 = vmatpush1.bf16.msra.mxu0 0
      %1528 = vmatprep.subr.bf16.mxu0 0
      %1529 = vmatpush1.bf16.msra.mxu0 0
      %1530 = vmatprep.subr.bf16.mxu0 0
      %1531 = vmatpush1.bf16.msra.mxu0 0
      %1532 = vmatprep.subr.bf16.mxu0 0
      %1533 = vmatpush1.bf16.msra.mxu0 0
      %1534 = vmatprep.subr.bf16.mxu0 0
      %1535 = vmatpush1.bf16.msra.mxu0 0
      %1536 = vmatprep.subr.bf16.mxu0 0
      %1537 = vmatpush1.bf16.msra.mxu0 0
      %1538 = vmatprep.mubr.bf16.mxu0 0
      %1539 = vmatmul.mubr.bf16.gmra.mrb[0].mxu0 %v1501
      %v1540 = vpop.f32.mrb[0].mxu0
      %v1541 = vadd.f32 0.0, %v1540
      %v1542 = vpop.f32.mrb[0].mxu0
      %v1543 = vpop.f32.mrb[0].mxu0
      %v1544 = vpop.f32.mrb[0].mxu0
      %1545 = vdwg.mxu0
      %v1546 = vpack.c.bf16 %v1541, %v1541
      %s1547 = scalar_lea.vmem %s756, 8
      %v1548 = vld [vmem:[%s1547] sm:$0xf]
      %v1549 = vld [vmem:[%s1547 + $0x4] sm:$0xf]
      %v1552 = vunpack.c.l.b16 %v1548
      %v1553 = vunpack.c.l.b16 %v1549
      %v1554 = vpack.c.b16 %v1553, %v1552
      %v1557 = vsel %vm1085, %v1546, 0
      %1559 = vmatprep.subr.bf16.mxu0 0
      %1560 = vmatpush1.bf16.msra.mxu0 %v1554
      %1561 = vmatprep.subr.bf16.mxu0 0
      %1562 = vmatpush1.bf16.msra.mxu0 0
      %1563 = vmatprep.subr.bf16.mxu0 0
      %1564 = vmatpush1.bf16.msra.mxu0 0
      %1565 = vmatprep.subr.bf16.mxu0 0
      %1566 = vmatpush1.bf16.msra.mxu0 0
      %1567 = vmatprep.subr.bf16.mxu0 0
      %1568 = vmatpush1.bf16.msra.mxu0 0
      %1569 = vmatprep.subr.bf16.mxu0 0
      %1570 = vmatpush1.bf16.msra.mxu0 0
      %1571 = vmatprep.subr.bf16.mxu0 0
      %1572 = vmatpush1.bf16.msra.mxu0 0
      %1573 = vmatprep.subr.bf16.mxu0 0
      %1574 = vmatpush1.bf16.msra.mxu0 0
      %1575 = vmatprep.subr.bf16.mxu0 0
      %1576 = vmatpush1.bf16.msra.mxu0 0
      %1577 = vmatprep.subr.bf16.mxu0 0
      %1578 = vmatpush1.bf16.msra.mxu0 0
      %1579 = vmatprep.subr.bf16.mxu0 0
      %1580 = vmatpush1.bf16.msra.mxu0 0
      %1581 = vmatprep.subr.bf16.mxu0 0
      %1582 = vmatpush1.bf16.msra.mxu0 0
      %1583 = vmatprep.subr.bf16.mxu0 0
      %1584 = vmatpush1.bf16.msra.mxu0 0
      %1585 = vmatprep.subr.bf16.mxu0 0
      %1586 = vmatpush1.bf16.msra.mxu0 0
      %1587 = vmatprep.subr.bf16.mxu0 0
      %1588 = vmatpush1.bf16.msra.mxu0 0
      %1589 = vmatprep.subr.bf16.mxu0 0
      %1590 = vmatpush1.bf16.msra.mxu0 0
      %1591 = vmatprep.mubr.bf16.mxu0 0
      %1592 = vmatmul.mubr.bf16.gmra.mrb[0].mxu0 %v1557
      %v1593 = vpop.f32.mrb[0].mxu0
      %v1594 = vadd.f32 0.0, %v1593
      %v1595 = vpop.f32.mrb[0].mxu0
      %v1596 = vpop.f32.mrb[0].mxu0
      %v1597 = vpop.f32.mrb[0].mxu0
      %1598 = vdwg.mxu0
      %v1601 = vunpack.c.l.b16 %v1194
      %v1602 = vunpack.c.l.b16 %v1195
      %v1603 = vpack.c.b16 %v1602, %v1601
      %v1606 = vsel %vm1085, %v1193, 0
      %1608 = vmatprep.subr.bf16.mxu0 0
      %1609 = vmatpush1.bf16.msra.mxu0 %v1603
      %1610 = vmatprep.subr.bf16.mxu0 0
      %1611 = vmatpush1.bf16.msra.mxu0 0
      %1612 = vmatprep.subr.bf16.mxu0 0
      %1613 = vmatpush1.bf16.msra.mxu0 0
      %1614 = vmatprep.subr.bf16.mxu0 0
      %1615 = vmatpush1.bf16.msra.mxu0 0
      %1616 = vmatprep.subr.bf16.mxu0 0
      %1617 = vmatpush1.bf16.msra.mxu0 0
      %1618 = vmatprep.subr.bf16.mxu0 0
      %1619 = vmatpush1.bf16.msra.mxu0 0
      %1620 = vmatprep.subr.bf16.mxu0 0
      %1621 = vmatpush1.bf16.msra.mxu0 0
      %1622 = vmatprep.subr.bf16.mxu0 0
      %1623 = vmatpush1.bf16.msra.mxu0 0
      %1624 = vmatprep.subr.bf16.mxu0 0
      %1625 = vmatpush1.bf16.msra.mxu0 0
      %1626 = vmatprep.subr.bf16.mxu0 0
      %1627 = vmatpush1.bf16.msra.mxu0 0
      %1628 = vmatprep.subr.bf16.mxu0 0
      %1629 = vmatpush1.bf16.msra.mxu0 0
      %1630 = vmatprep.subr.bf16.mxu0 0
      %1631 = vmatpush1.bf16.msra.mxu0 0
      %1632 = vmatprep.subr.bf16.mxu0 0
      %1633 = vmatpush1.bf16.msra.mxu0 0
      %1634 = vmatprep.subr.bf16.mxu0 0
      %1635 = vmatpush1.bf16.msra.mxu0 0
      %1636 = vmatprep.subr.bf16.mxu0 0
      %1637 = vmatpush1.bf16.msra.mxu0 0
      %1638 = vmatprep.subr.bf16.mxu0 0
      %1639 = vmatpush1.bf16.msra.mxu0 0
      %1640 = vmatprep.mubr.bf16.mxu0 0
      %1641 = vmatmul.mubr.bf16.gmra.mrb[0].mxu0 %v1606
      %v1642 = vpop.f32.mrb[0].mxu0
      %v1643 = vadd.f32 %v1594, %v1642
      %v1644 = vpop.f32.mrb[0].mxu0
      %v1645 = vpop.f32.mrb[0].mxu0
      %v1646 = vpop.f32.mrb[0].mxu0
      %1647 = vdwg.mxu0
      %s1648 = scalar_lea.vmem %s747, 64
      %v1649 = vld [vmem:[%s1648] sm:$0xf]
      %v1650 = vld [vmem:[%s1648 + $0x4] sm:$0xf]
      %v1651 = vld [vmem:[%s1648 + $0x8] sm:$0xf]
      %v1652 = vld [vmem:[%s1648 + $0xc] sm:$0xf]
      %v1653 = vld [vmem:[%s1648 + $0x10] sm:$0xf]
      %v1654 = vld [vmem:[%s1648 + $0x14] sm:$0xf]
      %v1655 = vld [vmem:[%s1648 + $0x18] sm:$0xf]
      %v1656 = vld [vmem:[%s1648 + $0x1c] sm:$0xf]
      %s1657 = scalar_lea.vmem %s751, 2
      %v1658 = vld [vmem:[%s1657] sm:$0x1]
      %v1660 = vlaneseq
      %v1661 = vshrl.u32 %v1660, 7
      %v1662 = vsub.s32 0, %v1661
      %v1663 = vrot.slane %v1658, %v1662
      %v1673 = vunpack.c.l.b16 %v1649
      %v1674 = vunpack.c.l.b16 %v1650
      %v1675 = vunpack.c.l.b16 %v1651
      %v1676 = vunpack.c.l.b16 %v1652
      %v1677 = vunpack.c.l.b16 %v1653
      %v1678 = vunpack.c.l.b16 %v1654
      %v1679 = vunpack.c.l.b16 %v1655
      %v1680 = vunpack.c.l.b16 %v1656
      %v1681 = vpack.c.b16 %v1674, %v1673
      %v1682 = vpack.c.b16 %v1676, %v1675
      %v1683 = vpack.c.b16 %v1678, %v1677
      %v1684 = vpack.c.b16 %v1680, %v1679
      %1689 = vmatprep.subr.bf16.mxu0 0
      %1690 = vmatpush1.bf16.msra.mxu0 %v1681
      %1691 = vmatprep.subr.bf16.mxu0 0
      %1692 = vmatpush1.bf16.msra.mxu0 %v1682
      %1693 = vmatprep.subr.bf16.mxu0 0
      %1694 = vmatpush1.bf16.msra.mxu0 %v1683
      %1695 = vmatprep.subr.bf16.mxu0 0
      %1696 = vmatpush1.bf16.msra.mxu0 %v1684
      %1697 = vmatprep.subr.bf16.mxu0 0
      %1698 = vmatpush1.bf16.msra.mxu0 0
      %1699 = vmatprep.subr.bf16.mxu0 0
      %1700 = vmatpush1.bf16.msra.mxu0 0
      %1701 = vmatprep.subr.bf16.mxu0 0
      %1702 = vmatpush1.bf16.msra.mxu0 0
      %1703 = vmatprep.subr.bf16.mxu0 0
      %1704 = vmatpush1.bf16.msra.mxu0 0
      %1705 = vmatprep.subr.bf16.mxu0 0
      %1706 = vmatpush1.bf16.msra.mxu0 0
      %1707 = vmatprep.subr.bf16.mxu0 0
      %1708 = vmatpush1.bf16.msra.mxu0 0
      %1709 = vmatprep.subr.bf16.mxu0 0
      %1710 = vmatpush1.bf16.msra.mxu0 0
      %1711 = vmatprep.subr.bf16.mxu0 0
      %1712 = vmatpush1.bf16.msra.mxu0 0
      %1713 = vmatprep.subr.bf16.mxu0 0
      %1714 = vmatpush1.bf16.msra.mxu0 0
      %1715 = vmatprep.subr.bf16.mxu0 0
      %1716 = vmatpush1.bf16.msra.mxu0 0
      %1717 = vmatprep.subr.bf16.mxu0 0
      %1718 = vmatpush1.bf16.msra.mxu0 0
      %1719 = vmatprep.subr.bf16.mxu0 0
      %1720 = vmatpush1.bf16.msra.mxu0 0
      %1721 = vmatprep.mubr.bf16.mxu0 0
      %1722 = vmatmul.mubr.bf16.gmra.mrb[0].mxu0 %v873
      %v1723 = vpop.f32.mrb[0].mxu0
      %v1724 = vadd.f32 %v1663, %v1723
      %v1725 = vpop.f32.mrb[0].mxu0
      %v1726 = vpop.f32.mrb[0].mxu0
      %v1727 = vpop.f32.mrb[0].mxu0
      %1728 = vdwg.mxu0
      %s1729 = scalar_lea.vmem %s747, 192
      %v1730 = vld [vmem:[%s1729] sm:$0xf]
      %v1731 = vld [vmem:[%s1729 + $0x4] sm:$0xf]
      %v1732 = vld [vmem:[%s1729 + $0x8] sm:$0xf]
      %v1733 = vld [vmem:[%s1729 + $0xc] sm:$0xf]
      %v1734 = vld [vmem:[%s1729 + $0x10] sm:$0xf]
      %v1735 = vld [vmem:[%s1729 + $0x14] sm:$0xf]
      %v1736 = vld [vmem:[%s1729 + $0x18] sm:$0xf]
      %v1737 = vld [vmem:[%s1729 + $0x1c] sm:$0xf]
      %s1738 = scalar_lea.vmem %s751, 6
      %v1739 = vld [vmem:[%s1738] sm:$0x1]
      %v1741 = vlaneseq
      %v1742 = vshrl.u32 %v1741, 7
      %v1743 = vsub.s32 0, %v1742
      %v1744 = vrot.slane %v1739, %v1743
      %v1754 = vunpack.c.l.b16 %v1730
      %v1755 = vunpack.c.l.b16 %v1731
      %v1756 = vunpack.c.l.b16 %v1732
      %v1757 = vunpack.c.l.b16 %v1733
      %v1758 = vunpack.c.l.b16 %v1734
      %v1759 = vunpack.c.l.b16 %v1735
      %v1760 = vunpack.c.l.b16 %v1736
      %v1761 = vunpack.c.l.b16 %v1737
      %v1762 = vpack.c.b16 %v1755, %v1754
      %v1763 = vpack.c.b16 %v1757, %v1756
      %v1764 = vpack.c.b16 %v1759, %v1758
      %v1765 = vpack.c.b16 %v1761, %v1760
      %1770 = vmatprep.subr.bf16.mxu0 0
      %1771 = vmatpush1.bf16.msra.mxu0 %v1762
      %1772 = vmatprep.subr.bf16.mxu0 0
      %1773 = vmatpush1.bf16.msra.mxu0 %v1763
      %1774 = vmatprep.subr.bf16.mxu0 0
      %1775 = vmatpush1.bf16.msra.mxu0 %v1764
      %1776 = vmatprep.subr.bf16.mxu0 0
      %1777 = vmatpush1.bf16.msra.mxu0 %v1765
      %1778 = vmatprep.subr.bf16.mxu0 0
      %1779 = vmatpush1.bf16.msra.mxu0 0
      %1780 = vmatprep.subr.bf16.mxu0 0
      %1781 = vmatpush1.bf16.msra.mxu0 0
      %1782 = vmatprep.subr.bf16.mxu0 0
      %1783 = vmatpush1.bf16.msra.mxu0 0
      %1784 = vmatprep.subr.bf16.mxu0 0
      %1785 = vmatpush1.bf16.msra.mxu0 0
      %1786 = vmatprep.subr.bf16.mxu0 0
      %1787 = vmatpush1.bf16.msra.mxu0 0
      %1788 = vmatprep.subr.bf16.mxu0 0
      %1789 = vmatpush1.bf16.msra.mxu0 0
      %1790 = vmatprep.subr.bf16.mxu0 0
      %1791 = vmatpush1.bf16.msra.mxu0 0
      %1792 = vmatprep.subr.bf16.mxu0 0
      %1793 = vmatpush1.bf16.msra.mxu0 0
      %1794 = vmatprep.subr.bf16.mxu0 0
      %1795 = vmatpush1.bf16.msra.mxu0 0
      %1796 = vmatprep.subr.bf16.mxu0 0
      %1797 = vmatpush1.bf16.msra.mxu0 0
      %1798 = vmatprep.subr.bf16.mxu0 0
      %1799 = vmatpush1.bf16.msra.mxu0 0
      %1800 = vmatprep.subr.bf16.mxu0 0
      %1801 = vmatpush1.bf16.msra.mxu0 0
      %1802 = vmatprep.mubr.bf16.mxu0 0
      %1803 = vmatmul.mubr.bf16.gmra.mrb[0].mxu0 %v873
      %v1804 = vpop.f32.mrb[0].mxu0
      %v1805 = vadd.f32 %v1744, %v1804
      %v1806 = vpop.f32.mrb[0].mxu0
      %v1807 = vpop.f32.mrb[0].mxu0
      %v1808 = vpop.f32.mrb[0].mxu0
      %1809 = vdwg.mxu0
      %s1810 = scalar_lea.vmem %s747, 320
      %v1811 = vld [vmem:[%s1810] sm:$0xf]
      %v1812 = vld [vmem:[%s1810 + $0x4] sm:$0xf]
      %v1813 = vld [vmem:[%s1810 + $0x8] sm:$0xf]
      %v1814 = vld [vmem:[%s1810 + $0xc] sm:$0xf]
      %v1815 = vld [vmem:[%s1810 + $0x10] sm:$0xf]
      %v1816 = vld [vmem:[%s1810 + $0x14] sm:$0xf]
      %v1817 = vld [vmem:[%s1810 + $0x18] sm:$0xf]
      %v1818 = vld [vmem:[%s1810 + $0x1c] sm:$0xf]
      %s1819 = scalar_lea.vmem %s751, 10
      %v1820 = vld [vmem:[%s1819] sm:$0x1]
      %v1822 = vlaneseq
      %v1823 = vshrl.u32 %v1822, 7
      %v1824 = vsub.s32 0, %v1823
      %v1825 = vrot.slane %v1820, %v1824
      %v1835 = vunpack.c.l.b16 %v1811
      %v1836 = vunpack.c.l.b16 %v1812
      %v1837 = vunpack.c.l.b16 %v1813
      %v1838 = vunpack.c.l.b16 %v1814
      %v1839 = vunpack.c.l.b16 %v1815
      %v1840 = vunpack.c.l.b16 %v1816
      %v1841 = vunpack.c.l.b16 %v1817
      %v1842 = vunpack.c.l.b16 %v1818
      %v1843 = vpack.c.b16 %v1836, %v1835
      %v1844 = vpack.c.b16 %v1838, %v1837
      %v1845 = vpack.c.b16 %v1840, %v1839
      %v1846 = vpack.c.b16 %v1842, %v1841
      %1851 = vmatprep.subr.bf16.mxu0 0
      %1852 = vmatpush1.bf16.msra.mxu0 %v1843
      %1853 = vmatprep.subr.bf16.mxu0 0
      %1854 = vmatpush1.bf16.msra.mxu0 %v1844
      %1855 = vmatprep.subr.bf16.mxu0 0
      %1856 = vmatpush1.bf16.msra.mxu0 %v1845
      %1857 = vmatprep.subr.bf16.mxu0 0
      %1858 = vmatpush1.bf16.msra.mxu0 %v1846
      %1859 = vmatprep.subr.bf16.mxu0 0
      %1860 = vmatpush1.bf16.msra.mxu0 0
      %1861 = vmatprep.subr.bf16.mxu0 0
      %1862 = vmatpush1.bf16.msra.mxu0 0
      %1863 = vmatprep.subr.bf16.mxu0 0
      %1864 = vmatpush1.bf16.msra.mxu0 0
      %1865 = vmatprep.subr.bf16.mxu0 0
      %1866 = vmatpush1.bf16.msra.mxu0 0
      %1867 = vmatprep.subr.bf16.mxu0 0
      %1868 = vmatpush1.bf16.msra.mxu0 0
      %1869 = vmatprep.subr.bf16.mxu0 0
      %1870 = vmatpush1.bf16.msra.mxu0 0
      %1871 = vmatprep.subr.bf16.mxu0 0
      %1872 = vmatpush1.bf16.msra.mxu0 0
      %1873 = vmatprep.subr.bf16.mxu0 0
      %1874 = vmatpush1.bf16.msra.mxu0 0
      %1875 = vmatprep.subr.bf16.mxu0 0
      %1876 = vmatpush1.bf16.msra.mxu0 0
      %1877 = vmatprep.subr.bf16.mxu0 0
      %1878 = vmatpush1.bf16.msra.mxu0 0
      %1879 = vmatprep.subr.bf16.mxu0 0
      %1880 = vmatpush1.bf16.msra.mxu0 0
      %1881 = vmatprep.subr.bf16.mxu0 0
      %1882 = vmatpush1.bf16.msra.mxu0 0
      %1883 = vmatprep.mubr.bf16.mxu0 0
      %1884 = vmatmul.mubr.bf16.gmra.mrb[0].mxu0 %v873
      %v1885 = vpop.f32.mrb[0].mxu0
      %v1886 = vadd.f32 %v1825, %v1885
      %v1887 = vpop.f32.mrb[0].mxu0
      %v1888 = vpop.f32.mrb[0].mxu0
      %v1889 = vpop.f32.mrb[0].mxu0
      %1890 = vdwg.mxu0
      %v1891 = vpack.c.bf16 %v1724, %v1724
      %v1892 = vpack.c.bf16 %v1805, %v1805
      %v1894 = vsel %vm1085, %v1891, 0
      %v1897 = vsel %vm1085, %v1892, 0
      %1899 = vmatprep.subr.bf16.mxu0 0
      %1900 = vmatpush1.bf16.xpose.msra.mxu0 %v1897
      %1901 = vmatprep.subr.bf16.mxu0 0
      %1902 = vmatpush1.bf16.xpose.msra.mxu0 0
      %1903 = vmatprep.subr.bf16.mxu0 0
      %1904 = vmatpush1.bf16.xpose.msra.mxu0 0
      %1905 = vmatprep.subr.bf16.mxu0 0
      %1906 = vmatpush1.bf16.xpose.msra.mxu0 0
      %1907 = vmatprep.subr.bf16.mxu0 0
      %1908 = vmatpush1.bf16.xpose.msra.mxu0 0
      %1909 = vmatprep.subr.bf16.mxu0 0
      %1910 = vmatpush1.bf16.xpose.msra.mxu0 0
      %1911 = vmatprep.subr.bf16.mxu0 0
      %1912 = vmatpush1.bf16.xpose.msra.mxu0 0
      %1913 = vmatprep.subr.bf16.mxu0 0
      %1914 = vmatpush1.bf16.xpose.msra.mxu0 0
      %1915 = vmatprep.subr.bf16.mxu0 0
      %1916 = vmatpush1.bf16.xpose.msra.mxu0 0
      %1917 = vmatprep.subr.bf16.mxu0 0
      %1918 = vmatpush1.bf16.xpose.msra.mxu0 0
      %1919 = vmatprep.subr.bf16.mxu0 0
      %1920 = vmatpush1.bf16.xpose.msra.mxu0 0
      %1921 = vmatprep.subr.bf16.mxu0 0
      %1922 = vmatpush1.bf16.xpose.msra.mxu0 0
      %1923 = vmatprep.subr.bf16.mxu0 0
      %1924 = vmatpush1.bf16.xpose.msra.mxu0 0
      %1925 = vmatprep.subr.bf16.mxu0 0
      %1926 = vmatpush1.bf16.xpose.msra.mxu0 0
      %1927 = vmatprep.subr.bf16.mxu0 0
      %1928 = vmatpush1.bf16.xpose.msra.mxu0 0
      %1929 = vmatprep.subr.bf16.mxu0 0
      %1930 = vmatpush1.bf16.xpose.msra.mxu0 0
      %1931 = vmatprep.mubr.bf16.mxu0 0
      %1932 = vmatmul.mubr.bf16.gmra.mrb[0].mxu0 %v1894
      %v1933 = vpop.f32.mrb[0].mxu0
      %v1934 = vadd.f32 %v1083, %v1933
      %v1935 = vpop.f32.mrb[0].mxu0
      %v1936 = vpop.f32.mrb[0].mxu0
      %v1937 = vpop.f32.mrb[0].mxu0
      %1938 = vdwg.mxu0
      %v1939 = vsel %vm1132, %v1934, -inf
      %1940 = vmax.xlane.f32.xlu0 %v1939
      %v1941 = vpop.xlane.xlu0 %1940
      %v1942 = vsub.f32 %v1934, %v1941
      %v1943 = vmul.f32 %v1942, 1.442695
      %v1944 = vpow.pop %v1943
      %v1945 = vsel %vm1132, %v1944, 0.0
      %1946 = vadd.xlane.f32.xlu0 %v1945
      %v1947 = vpop.xlane.xlu0 %1946
      %v1948 = vrcp.pop %v1947
      %v1949 = vmul.f32 %v1944, %v1948
      %v1950 = vpack.c.bf16 %v1949, %v1949
      %v1951 = vpack.c.bf16 %v1886, %v1886
      %v1953 = vsel %vm1132, %v1950, 0
      %v1956 = vsel %vm1149, %v1951, 0
      %1958 = vmatprep.subr.bf16.mxu0 0
      %1959 = vmatpush1.bf16.msra.mxu0 %v1956
      %1960 = vmatprep.subr.bf16.mxu0 0
      %1961 = vmatpush1.bf16.msra.mxu0 0
      %1962 = vmatprep.subr.bf16.mxu0 0
      %1963 = vmatpush1.bf16.msra.mxu0 0
      %1964 = vmatprep.subr.bf16.mxu0 0
      %1965 = vmatpush1.bf16.msra.mxu0 0
      %1966 = vmatprep.subr.bf16.mxu0 0
      %1967 = vmatpush1.bf16.msra.mxu0 0
      %1968 = vmatprep.subr.bf16.mxu0 0
      %1969 = vmatpush1.bf16.msra.mxu0 0
      %1970 = vmatprep.subr.bf16.mxu0 0
      %1971 = vmatpush1.bf16.msra.mxu0 0
      %1972 = vmatprep.subr.bf16.mxu0 0
      %1973 = vmatpush1.bf16.msra.mxu0 0
      %1974 = vmatprep.subr.bf16.mxu0 0
      %1975 = vmatpush1.bf16.msra.mxu0 0
      %1976 = vmatprep.subr.bf16.mxu0 0
      %1977 = vmatpush1.bf16.msra.mxu0 0
      %1978 = vmatprep.subr.bf16.mxu0 0
      %1979 = vmatpush1.bf16.msra.mxu0 0
      %1980 = vmatprep.subr.bf16.mxu0 0
      %1981 = vmatpush1.bf16.msra.mxu0 0
      %1982 = vmatprep.subr.bf16.mxu0 0
      %1983 = vmatpush1.bf16.msra.mxu0 0
      %1984 = vmatprep.subr.bf16.mxu0 0
      %1985 = vmatpush1.bf16.msra.mxu0 0
      %1986 = vmatprep.subr.bf16.mxu0 0
      %1987 = vmatpush1.bf16.msra.mxu0 0
      %1988 = vmatprep.subr.bf16.mxu0 0
      %1989 = vmatpush1.bf16.msra.mxu0 0
      %1990 = vmatprep.mubr.bf16.mxu0 0
      %1991 = vmatmul.mubr.bf16.gmra.mrb[0].mxu0 %v1953
      %v1992 = vpop.f32.mrb[0].mxu0
      %v1993 = vadd.f32 0.0, %v1992
      %v1994 = vpop.f32.mrb[0].mxu0
      %v1995 = vpop.f32.mrb[0].mxu0
      %v1996 = vpop.f32.mrb[0].mxu0
      %1997 = vdwg.mxu0
      %v1998 = vpack.c.bf16 %v1993, %v1993
      %s1999 = scalar_lea.vmem %s756, 16
      %v2000 = vld [vmem:[%s1999] sm:$0xf]
      %v2001 = vld [vmem:[%s1999 + $0x4] sm:$0xf]
      %v2004 = vunpack.c.l.b16 %v2000
      %v2005 = vunpack.c.l.b16 %v2001
      %v2006 = vpack.c.b16 %v2005, %v2004
      %v2009 = vsel %vm1085, %v1998, 0
      %2011 = vmatprep.subr.bf16.mxu0 0
      %2012 = vmatpush1.bf16.msra.mxu0 %v2006
      %2013 = vmatprep.subr.bf16.mxu0 0
      %2014 = vmatpush1.bf16.msra.mxu0 0
      %2015 = vmatprep.subr.bf16.mxu0 0
      %2016 = vmatpush1.bf16.msra.mxu0 0
      %2017 = vmatprep.subr.bf16.mxu0 0
      %2018 = vmatpush1.bf16.msra.mxu0 0
      %2019 = vmatprep.subr.bf16.mxu0 0
      %2020 = vmatpush1.bf16.msra.mxu0 0
      %2021 = vmatprep.subr.bf16.mxu0 0
      %2022 = vmatpush1.bf16.msra.mxu0 0
      %2023 = vmatprep.subr.bf16.mxu0 0
      %2024 = vmatpush1.bf16.msra.mxu0 0
      %2025 = vmatprep.subr.bf16.mxu0 0
      %2026 = vmatpush1.bf16.msra.mxu0 0
      %2027 = vmatprep.subr.bf16.mxu0 0
      %2028 = vmatpush1.bf16.msra.mxu0 0
      %2029 = vmatprep.subr.bf16.mxu0 0
      %2030 = vmatpush1.bf16.msra.mxu0 0
      %2031 = vmatprep.subr.bf16.mxu0 0
      %2032 = vmatpush1.bf16.msra.mxu0 0
      %2033 = vmatprep.subr.bf16.mxu0 0
      %2034 = vmatpush1.bf16.msra.mxu0 0
      %2035 = vmatprep.subr.bf16.mxu0 0
      %2036 = vmatpush1.bf16.msra.mxu0 0
      %2037 = vmatprep.subr.bf16.mxu0 0
      %2038 = vmatpush1.bf16.msra.mxu0 0
      %2039 = vmatprep.subr.bf16.mxu0 0
      %2040 = vmatpush1.bf16.msra.mxu0 0
      %2041 = vmatprep.subr.bf16.mxu0 0
      %2042 = vmatpush1.bf16.msra.mxu0 0
      %2043 = vmatprep.mubr.bf16.mxu0 0
      %2044 = vmatmul.mubr.bf16.gmra.mrb[0].mxu0 %v2009
      %v2045 = vpop.f32.mrb[0].mxu0
      %v2046 = vadd.f32 0.0, %v2045
      %v2047 = vpop.f32.mrb[0].mxu0
      %v2048 = vpop.f32.mrb[0].mxu0
      %v2049 = vpop.f32.mrb[0].mxu0
      %2050 = vdwg.mxu0
      %v2051 = vadd.f32 %v1643, %v2046
      %s2052 = scalar_lea.vmem %s747, 96
      %v2053 = vld [vmem:[%s2052] sm:$0xf]
      %v2054 = vld [vmem:[%s2052 + $0x4] sm:$0xf]
      %v2055 = vld [vmem:[%s2052 + $0x8] sm:$0xf]
      %v2056 = vld [vmem:[%s2052 + $0xc] sm:$0xf]
      %v2057 = vld [vmem:[%s2052 + $0x10] sm:$0xf]
      %v2058 = vld [vmem:[%s2052 + $0x14] sm:$0xf]
      %v2059 = vld [vmem:[%s2052 + $0x18] sm:$0xf]
      %v2060 = vld [vmem:[%s2052 + $0x1c] sm:$0xf]
      %s2061 = scalar_lea.vmem %s751, 3
      %v2062 = vld [vmem:[%s2061] sm:$0x1]
      %v2064 = vlaneseq
      %v2065 = vshrl.u32 %v2064, 7
      %v2066 = vsub.s32 0, %v2065
      %v2067 = vrot.slane %v2062, %v2066
      %v2077 = vunpack.c.l.b16 %v2053
      %v2078 = vunpack.c.l.b16 %v2054
      %v2079 = vunpack.c.l.b16 %v2055
      %v2080 = vunpack.c.l.b16 %v2056
      %v2081 = vunpack.c.l.b16 %v2057
      %v2082 = vunpack.c.l.b16 %v2058
      %v2083 = vunpack.c.l.b16 %v2059
      %v2084 = vunpack.c.l.b16 %v2060
      %v2085 = vpack.c.b16 %v2078, %v2077
      %v2086 = vpack.c.b16 %v2080, %v2079
      %v2087 = vpack.c.b16 %v2082, %v2081
      %v2088 = vpack.c.b16 %v2084, %v2083
      %2093 = vmatprep.subr.bf16.mxu0 0
      %2094 = vmatpush1.bf16.msra.mxu0 %v2085
      %2095 = vmatprep.subr.bf16.mxu0 0
      %2096 = vmatpush1.bf16.msra.mxu0 %v2086
      %2097 = vmatprep.subr.bf16.mxu0 0
      %2098 = vmatpush1.bf16.msra.mxu0 %v2087
      %2099 = vmatprep.subr.bf16.mxu0 0
      %2100 = vmatpush1.bf16.msra.mxu0 %v2088
      %2101 = vmatprep.subr.bf16.mxu0 0
      %2102 = vmatpush1.bf16.msra.mxu0 0
      %2103 = vmatprep.subr.bf16.mxu0 0
      %2104 = vmatpush1.bf16.msra.mxu0 0
      %2105 = vmatprep.subr.bf16.mxu0 0
      %2106 = vmatpush1.bf16.msra.mxu0 0
      %2107 = vmatprep.subr.bf16.mxu0 0
      %2108 = vmatpush1.bf16.msra.mxu0 0
      %2109 = vmatprep.subr.bf16.mxu0 0
      %2110 = vmatpush1.bf16.msra.mxu0 0
      %2111 = vmatprep.subr.bf16.mxu0 0
      %2112 = vmatpush1.bf16.msra.mxu0 0
      %2113 = vmatprep.subr.bf16.mxu0 0
      %2114 = vmatpush1.bf16.msra.mxu0 0
      %2115 = vmatprep.subr.bf16.mxu0 0
      %2116 = vmatpush1.bf16.msra.mxu0 0
      %2117 = vmatprep.subr.bf16.mxu0 0
      %2118 = vmatpush1.bf16.msra.mxu0 0
      %2119 = vmatprep.subr.bf16.mxu0 0
      %2120 = vmatpush1.bf16.msra.mxu0 0
      %2121 = vmatprep.subr.bf16.mxu0 0
      %2122 = vmatpush1.bf16.msra.mxu0 0
      %2123 = vmatprep.subr.bf16.mxu0 0
      %2124 = vmatpush1.bf16.msra.mxu0 0
      %2125 = vmatprep.mubr.bf16.mxu0 0
      %2126 = vmatmul.mubr.bf16.gmra.mrb[0].mxu0 %v873
      %v2127 = vpop.f32.mrb[0].mxu0
      %v2128 = vadd.f32 %v2067, %v2127
      %v2129 = vpop.f32.mrb[0].mxu0
      %v2130 = vpop.f32.mrb[0].mxu0
      %v2131 = vpop.f32.mrb[0].mxu0
      %2132 = vdwg.mxu0
      %s2133 = scalar_lea.vmem %s747, 224
      %v2134 = vld [vmem:[%s2133] sm:$0xf]
      %v2135 = vld [vmem:[%s2133 + $0x4] sm:$0xf]
      %v2136 = vld [vmem:[%s2133 + $0x8] sm:$0xf]
      %v2137 = vld [vmem:[%s2133 + $0xc] sm:$0xf]
      %v2138 = vld [vmem:[%s2133 + $0x10] sm:$0xf]
      %v2139 = vld [vmem:[%s2133 + $0x14] sm:$0xf]
      %v2140 = vld [vmem:[%s2133 + $0x18] sm:$0xf]
      %v2141 = vld [vmem:[%s2133 + $0x1c] sm:$0xf]
      %s2142 = scalar_lea.vmem %s751, 7
      %v2143 = vld [vmem:[%s2142] sm:$0x1]
      %v2145 = vlaneseq
      %v2146 = vshrl.u32 %v2145, 7
      %v2147 = vsub.s32 0, %v2146
      %v2148 = vrot.slane %v2143, %v2147
      %v2158 = vunpack.c.l.b16 %v2134
      %v2159 = vunpack.c.l.b16 %v2135
      %v2160 = vunpack.c.l.b16 %v2136
      %v2161 = vunpack.c.l.b16 %v2137
      %v2162 = vunpack.c.l.b16 %v2138
      %v2163 = vunpack.c.l.b16 %v2139
      %v2164 = vunpack.c.l.b16 %v2140
      %v2165 = vunpack.c.l.b16 %v2141
      %v2166 = vpack.c.b16 %v2159, %v2158
      %v2167 = vpack.c.b16 %v2161, %v2160
      %v2168 = vpack.c.b16 %v2163, %v2162
      %v2169 = vpack.c.b16 %v2165, %v2164
      %2174 = vmatprep.subr.bf16.mxu0 0
      %2175 = vmatpush1.bf16.msra.mxu0 %v2166
      %2176 = vmatprep.subr.bf16.mxu0 0
      %2177 = vmatpush1.bf16.msra.mxu0 %v2167
      %2178 = vmatprep.subr.bf16.mxu0 0
      %2179 = vmatpush1.bf16.msra.mxu0 %v2168
      %2180 = vmatprep.subr.bf16.mxu0 0
      %2181 = vmatpush1.bf16.msra.mxu0 %v2169
      %2182 = vmatprep.subr.bf16.mxu0 0
      %2183 = vmatpush1.bf16.msra.mxu0 0
      %2184 = vmatprep.subr.bf16.mxu0 0
      %2185 = vmatpush1.bf16.msra.mxu0 0
      %2186 = vmatprep.subr.bf16.mxu0 0
      %2187 = vmatpush1.bf16.msra.mxu0 0
      %2188 = vmatprep.subr.bf16.mxu0 0
      %2189 = vmatpush1.bf16.msra.mxu0 0
      %2190 = vmatprep.subr.bf16.mxu0 0
      %2191 = vmatpush1.bf16.msra.mxu0 0
      %2192 = vmatprep.subr.bf16.mxu0 0
      %2193 = vmatpush1.bf16.msra.mxu0 0
      %2194 = vmatprep.subr.bf16.mxu0 0
      %2195 = vmatpush1.bf16.msra.mxu0 0
      %2196 = vmatprep.subr.bf16.mxu0 0
      %2197 = vmatpush1.bf16.msra.mxu0 0
      %2198 = vmatprep.subr.bf16.mxu0 0
      %2199 = vmatpush1.bf16.msra.mxu0 0
      %2200 = vmatprep.subr.bf16.mxu0 0
      %2201 = vmatpush1.bf16.msra.mxu0 0
      %2202 = vmatprep.subr.bf16.mxu0 0
      %2203 = vmatpush1.bf16.msra.mxu0 0
      %2204 = vmatprep.subr.bf16.mxu0 0
      %2205 = vmatpush1.bf16.msra.mxu0 0
      %2206 = vmatprep.mubr.bf16.mxu0 0
      %2207 = vmatmul.mubr.bf16.gmra.mrb[0].mxu0 %v873
      %v2208 = vpop.f32.mrb[0].mxu0
      %v2209 = vadd.f32 %v2148, %v2208
      %v2210 = vpop.f32.mrb[0].mxu0
      %v2211 = vpop.f32.mrb[0].mxu0
      %v2212 = vpop.f32.mrb[0].mxu0
      %2213 = vdwg.mxu0
      %s2214 = scalar_lea.vmem %s747, 352
      %v2215 = vld [vmem:[%s2214] sm:$0xf]
      %v2216 = vld [vmem:[%s2214 + $0x4] sm:$0xf]
      %v2217 = vld [vmem:[%s2214 + $0x8] sm:$0xf]
      %v2218 = vld [vmem:[%s2214 + $0xc] sm:$0xf]
      %v2219 = vld [vmem:[%s2214 + $0x10] sm:$0xf]
      %v2220 = vld [vmem:[%s2214 + $0x14] sm:$0xf]
      %v2221 = vld [vmem:[%s2214 + $0x18] sm:$0xf]
      %v2222 = vld [vmem:[%s2214 + $0x1c] sm:$0xf]
      %s2223 = scalar_lea.vmem %s751, 11
      %v2224 = vld [vmem:[%s2223] sm:$0x1]
      %v2226 = vlaneseq
      %v2227 = vshrl.u32 %v2226, 7
      %v2228 = vsub.s32 0, %v2227
      %v2229 = vrot.slane %v2224, %v2228
      %v2239 = vunpack.c.l.b16 %v2215
      %v2240 = vunpack.c.l.b16 %v2216
      %v2241 = vunpack.c.l.b16 %v2217
      %v2242 = vunpack.c.l.b16 %v2218
      %v2243 = vunpack.c.l.b16 %v2219
      %v2244 = vunpack.c.l.b16 %v2220
      %v2245 = vunpack.c.l.b16 %v2221
      %v2246 = vunpack.c.l.b16 %v2222
      %v2247 = vpack.c.b16 %v2240, %v2239
      %v2248 = vpack.c.b16 %v2242, %v2241
      %v2249 = vpack.c.b16 %v2244, %v2243
      %v2250 = vpack.c.b16 %v2246, %v2245
      %2255 = vmatprep.subr.bf16.mxu0 0
      %2256 = vmatpush1.bf16.msra.mxu0 %v2247
      %2257 = vmatprep.subr.bf16.mxu0 0
      %2258 = vmatpush1.bf16.msra.mxu0 %v2248
      %2259 = vmatprep.subr.bf16.mxu0 0
      %2260 = vmatpush1.bf16.msra.mxu0 %v2249
      %2261 = vmatprep.subr.bf16.mxu0 0
      %2262 = vmatpush1.bf16.msra.mxu0 %v2250
      %2263 = vmatprep.subr.bf16.mxu0 0
      %2264 = vmatpush1.bf16.msra.mxu0 0
      %2265 = vmatprep.subr.bf16.mxu0 0
      %2266 = vmatpush1.bf16.msra.mxu0 0
      %2267 = vmatprep.subr.bf16.mxu0 0
      %2268 = vmatpush1.bf16.msra.mxu0 0
      %2269 = vmatprep.subr.bf16.mxu0 0
      %2270 = vmatpush1.bf16.msra.mxu0 0
      %2271 = vmatprep.subr.bf16.mxu0 0
      %2272 = vmatpush1.bf16.msra.mxu0 0
      %2273 = vmatprep.subr.bf16.mxu0 0
      %2274 = vmatpush1.bf16.msra.mxu0 0
      %2275 = vmatprep.subr.bf16.mxu0 0
      %2276 = vmatpush1.bf16.msra.mxu0 0
      %2277 = vmatprep.subr.bf16.mxu0 0
      %2278 = vmatpush1.bf16.msra.mxu0 0
      %2279 = vmatprep.subr.bf16.mxu0 0
      %2280 = vmatpush1.bf16.msra.mxu0 0
      %2281 = vmatprep.subr.bf16.mxu0 0
      %2282 = vmatpush1.bf16.msra.mxu0 0
      %2283 = vmatprep.subr.bf16.mxu0 0
      %2284 = vmatpush1.bf16.msra.mxu0 0
      %2285 = vmatprep.subr.bf16.mxu0 0
      %2286 = vmatpush1.bf16.msra.mxu0 0
      %2287 = vmatprep.mubr.bf16.mxu0 0
      %2288 = vmatmul.mubr.bf16.gmra.mrb[0].mxu0 %v873
      %v2289 = vpop.f32.mrb[0].mxu0
      %v2290 = vadd.f32 %v2229, %v2289
      %v2291 = vpop.f32.mrb[0].mxu0
      %v2292 = vpop.f32.mrb[0].mxu0
      %v2293 = vpop.f32.mrb[0].mxu0
      %2294 = vdwg.mxu0
      %v2295 = vpack.c.bf16 %v2128, %v2128
      %v2296 = vpack.c.bf16 %v2209, %v2209
      %v2298 = vsel %vm1085, %v2295, 0
      %v2301 = vsel %vm1085, %v2296, 0
      %2303 = vmatprep.subr.bf16.mxu0 0
      %2304 = vmatpush1.bf16.xpose.msra.mxu0 %v2301
      %2305 = vmatprep.subr.bf16.mxu0 0
      %2306 = vmatpush1.bf16.xpose.msra.mxu0 0
      %2307 = vmatprep.subr.bf16.mxu0 0
      %2308 = vmatpush1.bf16.xpose.msra.mxu0 0
      %2309 = vmatprep.subr.bf16.mxu0 0
      %2310 = vmatpush1.bf16.xpose.msra.mxu0 0
      %2311 = vmatprep.subr.bf16.mxu0 0
      %2312 = vmatpush1.bf16.xpose.msra.mxu0 0
      %2313 = vmatprep.subr.bf16.mxu0 0
      %2314 = vmatpush1.bf16.xpose.msra.mxu0 0
      %2315 = vmatprep.subr.bf16.mxu0 0
      %2316 = vmatpush1.bf16.xpose.msra.mxu0 0
      %2317 = vmatprep.subr.bf16.mxu0 0
      %2318 = vmatpush1.bf16.xpose.msra.mxu0 0
      %2319 = vmatprep.subr.bf16.mxu0 0
      %2320 = vmatpush1.bf16.xpose.msra.mxu0 0
      %2321 = vmatprep.subr.bf16.mxu0 0
      %2322 = vmatpush1.bf16.xpose.msra.mxu0 0
      %2323 = vmatprep.subr.bf16.mxu0 0
      %2324 = vmatpush1.bf16.xpose.msra.mxu0 0
      %2325 = vmatprep.subr.bf16.mxu0 0
      %2326 = vmatpush1.bf16.xpose.msra.mxu0 0
      %2327 = vmatprep.subr.bf16.mxu0 0
      %2328 = vmatpush1.bf16.xpose.msra.mxu0 0
      %2329 = vmatprep.subr.bf16.mxu0 0
      %2330 = vmatpush1.bf16.xpose.msra.mxu0 0
      %2331 = vmatprep.subr.bf16.mxu0 0
      %2332 = vmatpush1.bf16.xpose.msra.mxu0 0
      %2333 = vmatprep.subr.bf16.mxu0 0
      %2334 = vmatpush1.bf16.xpose.msra.mxu0 0
      %2335 = vmatprep.mubr.bf16.mxu0 0
      %2336 = vmatmul.mubr.bf16.gmra.mrb[0].mxu0 %v2298
      %v2337 = vpop.f32.mrb[0].mxu0
      %v2338 = vadd.f32 %v1083, %v2337
      %v2339 = vpop.f32.mrb[0].mxu0
      %v2340 = vpop.f32.mrb[0].mxu0
      %v2341 = vpop.f32.mrb[0].mxu0
      %2342 = vdwg.mxu0
      %v2343 = vsel %vm1132, %v2338, -inf
      %2344 = vmax.xlane.f32.xlu0 %v2343
      %v2345 = vpop.xlane.xlu0 %2344
      %v2346 = vsub.f32 %v2338, %v2345
      %v2347 = vmul.f32 %v2346, 1.442695
      %v2348 = vpow.pop %v2347
      %v2349 = vsel %vm1132, %v2348, 0.0
      %2350 = vadd.xlane.f32.xlu0 %v2349
      %v2351 = vpop.xlane.xlu0 %2350
      %v2352 = vrcp.pop %v2351
      %v2353 = vmul.f32 %v2348, %v2352
      %v2354 = vpack.c.bf16 %v2353, %v2353
      %v2355 = vpack.c.bf16 %v2290, %v2290
      %v2357 = vsel %vm1132, %v2354, 0
      %v2360 = vsel %vm1149, %v2355, 0
      %2362 = vmatprep.subr.bf16.mxu0 0
      %2363 = vmatpush1.bf16.msra.mxu0 %v2360
      %2364 = vmatprep.subr.bf16.mxu0 0
      %2365 = vmatpush1.bf16.msra.mxu0 0
      %2366 = vmatprep.subr.bf16.mxu0 0
      %2367 = vmatpush1.bf16.msra.mxu0 0
      %2368 = vmatprep.subr.bf16.mxu0 0
      %2369 = vmatpush1.bf16.msra.mxu0 0
      %2370 = vmatprep.subr.bf16.mxu0 0
      %2371 = vmatpush1.bf16.msra.mxu0 0
      %2372 = vmatprep.subr.bf16.mxu0 0
      %2373 = vmatpush1.bf16.msra.mxu0 0
      %2374 = vmatprep.subr.bf16.mxu0 0
      %2375 = vmatpush1.bf16.msra.mxu0 0
      %2376 = vmatprep.subr.bf16.mxu0 0
      %2377 = vmatpush1.bf16.msra.mxu0 0
      %2378 = vmatprep.subr.bf16.mxu0 0
      %2379 = vmatpush1.bf16.msra.mxu0 0
      %2380 = vmatprep.subr.bf16.mxu0 0
      %2381 = vmatpush1.bf16.msra.mxu0 0
      %2382 = vmatprep.subr.bf16.mxu0 0
      %2383 = vmatpush1.bf16.msra.mxu0 0
      %2384 = vmatprep.subr.bf16.mxu0 0
      %2385 = vmatpush1.bf16.msra.mxu0 0
      %2386 = vmatprep.subr.bf16.mxu0 0
      %2387 = vmatpush1.bf16.msra.mxu0 0
      %2388 = vmatprep.subr.bf16.mxu0 0
      %2389 = vmatpush1.bf16.msra.mxu0 0
      %2390 = vmatprep.subr.bf16.mxu0 0
      %2391 = vmatpush1.bf16.msra.mxu0 0
      %2392 = vmatprep.subr.bf16.mxu0 0
      %2393 = vmatpush1.bf16.msra.mxu0 0
      %2394 = vmatprep.mubr.bf16.mxu0 0
      %2395 = vmatmul.mubr.bf16.gmra.mrb[0].mxu0 %v2357
      %v2396 = vpop.f32.mrb[0].mxu0
      %v2397 = vadd.f32 0.0, %v2396
      %v2398 = vpop.f32.mrb[0].mxu0
      %v2399 = vpop.f32.mrb[0].mxu0
      %v2400 = vpop.f32.mrb[0].mxu0
      %2401 = vdwg.mxu0
      %v2402 = vpack.c.bf16 %v2397, %v2397
      %s2403 = scalar_lea.vmem %s756, 24
      %v2404 = vld [vmem:[%s2403] sm:$0xf]
      %v2405 = vld [vmem:[%s2403 + $0x4] sm:$0xf]
      %v2408 = vunpack.c.l.b16 %v2404
      %v2409 = vunpack.c.l.b16 %v2405
      %v2410 = vpack.c.b16 %v2409, %v2408
      %v2413 = vsel %vm1085, %v2402, 0
      %2415 = vmatprep.subr.bf16.mxu0 0
      %2416 = vmatpush1.bf16.msra.mxu0 %v2410
      %2417 = vmatprep.subr.bf16.mxu0 0
      %2418 = vmatpush1.bf16.msra.mxu0 0
      %2419 = vmatprep.subr.bf16.mxu0 0
      %2420 = vmatpush1.bf16.msra.mxu0 0
      %2421 = vmatprep.subr.bf16.mxu0 0
      %2422 = vmatpush1.bf16.msra.mxu0 0
      %2423 = vmatprep.subr.bf16.mxu0 0
      %2424 = vmatpush1.bf16.msra.mxu0 0
      %2425 = vmatprep.subr.bf16.mxu0 0
      %2426 = vmatpush1.bf16.msra.mxu0 0
      %2427 = vmatprep.subr.bf16.mxu0 0
      %2428 = vmatpush1.bf16.msra.mxu0 0
      %2429 = vmatprep.subr.bf16.mxu0 0
      %2430 = vmatpush1.bf16.msra.mxu0 0
      %2431 = vmatprep.subr.bf16.mxu0 0
      %2432 = vmatpush1.bf16.msra.mxu0 0
      %2433 = vmatprep.subr.bf16.mxu0 0
      %2434 = vmatpush1.bf16.msra.mxu0 0
      %2435 = vmatprep.subr.bf16.mxu0 0
      %2436 = vmatpush1.bf16.msra.mxu0 0
      %2437 = vmatprep.subr.bf16.mxu0 0
      %2438 = vmatpush1.bf16.msra.mxu0 0
      %2439 = vmatprep.subr.bf16.mxu0 0
      %2440 = vmatpush1.bf16.msra.mxu0 0
      %2441 = vmatprep.subr.bf16.mxu0 0
      %2442 = vmatpush1.bf16.msra.mxu0 0
      %2443 = vmatprep.subr.bf16.mxu0 0
      %2444 = vmatpush1.bf16.msra.mxu0 0
      %2445 = vmatprep.subr.bf16.mxu0 0
      %2446 = vmatpush1.bf16.msra.mxu0 0
      %2447 = vmatprep.mubr.bf16.mxu0 0
      %2448 = vmatmul.mubr.bf16.gmra.mrb[0].mxu0 %v2413
      %v2449 = vpop.f32.mrb[0].mxu0
      %v2450 = vadd.f32 0.0, %v2449
      %v2451 = vpop.f32.mrb[0].mxu0
      %v2452 = vpop.f32.mrb[0].mxu0
      %v2453 = vpop.f32.mrb[0].mxu0
      %2454 = vdwg.mxu0
      %v2455 = vadd.f32 %v2051, %v2450
      %v2456 = vld [vmem:[%s759] sm:$0x1]
      %v2458 = vlaneseq
      %v2459 = vshrl.u32 %v2458, 7
      %v2460 = vsub.s32 0, %v2459
      %v2461 = vrot.slane %v2456, %v2460
      %v2463 = vadd.f32 %v2455, %v2461
      %v2464 = vadd.f32 %v2463, %v829
      %v2465 = vld [vmem:[%s762] sm:$0x1]
      %v2466 = vld [vmem:[%s765] sm:$0x1]
      %v2467 = vsel %vm871, %v2464, 0.0
      %2468 = vadd.xlane.f32.xlu0 %v2467
      %v2469 = vpop.xlane.xlu0 %2468
      %v2470 = vrcp.pop 64.0
      %v2471 = vmul.f32 %v2469, %v2470
      %v2472 = vsub.f32 %v2464, %v2471
      %v2473 = vmul.f32 %v2472, %v2472
      %v2474 = vsel %vm871, %v2473, 0.0
      %2475 = vadd.xlane.f32.xlu0 %v2474
      %v2476 = vpop.xlane.xlu0 %2475
      %v2477 = vmul.f32 %v2476, %v2470
      %v2478 = vadd.f32 %v2477, 1e-12
      %v2479 = vrsqrt.pop %v2478
      %v2480 = vmul.f32 %v2472, %v2479
      %v2482 = vlaneseq
      %v2483 = vshrl.u32 %v2482, 7
      %v2484 = vsub.s32 0, %v2483
      %v2485 = vrot.slane %v2465, %v2484
      %v2487 = vmul.f32 %v2480, %v2485
      %v2489 = vlaneseq
      %v2490 = vshrl.u32 %v2489, 7
      %v2491 = vsub.s32 0, %v2490
      %v2492 = vrot.slane %v2466, %v2491
      %v2494 = vadd.f32 %v2487, %v2492
      %v2495 = vpack.c.bf16 %v2494, %v2494
      %v2496 = vld [vmem:[%s770] sm:$0xf]
      %v2497 = vld [vmem:[%s770 + $0x4] sm:$0xf]
      %v2498 = vld [vmem:[%s770 + $0x8] sm:$0xf]
      %v2499 = vld [vmem:[%s770 + $0xc] sm:$0xf]
      %v2500 = vld [vmem:[%s770 + $0x10] sm:$0xf]
      %v2501 = vld [vmem:[%s770 + $0x14] sm:$0xf]
      %v2502 = vld [vmem:[%s770 + $0x18] sm:$0xf]
      %v2503 = vld [vmem:[%s770 + $0x1c] sm:$0xf]
      %v2504 = vld [vmem:[%s773] sm:$0x1]
      %v2506 = vlaneseq
      %v2507 = vshrl.u32 %v2506, 7
      %v2508 = vsub.s32 0, %v2507
      %v2509 = vrot.slane %v2504, %v2508
      %v2519 = vunpack.c.l.b16 %v2496
      %v2520 = vunpack.c.l.b16 %v2497
      %v2521 = vunpack.c.l.b16 %v2498
      %v2522 = vunpack.c.l.b16 %v2499
      %v2523 = vunpack.c.l.b16 %v2500
      %v2524 = vunpack.c.l.b16 %v2501
      %v2525 = vunpack.c.l.b16 %v2502
      %v2526 = vunpack.c.l.b16 %v2503
      %v2527 = vpack.c.b16 %v2520, %v2519
      %v2528 = vpack.c.b16 %v2522, %v2521
      %v2529 = vpack.c.b16 %v2524, %v2523
      %v2530 = vpack.c.b16 %v2526, %v2525
      %v2536 = vsel %vm871, %v2495, 0
      %2538 = vmatprep.subr.bf16.mxu0 0
      %2539 = vmatpush1.bf16.msra.mxu0 %v2527
      %2540 = vmatprep.subr.bf16.mxu0 0
      %2541 = vmatpush1.bf16.msra.mxu0 %v2528
      %2542 = vmatprep.subr.bf16.mxu0 0
      %2543 = vmatpush1.bf16.msra.mxu0 %v2529
      %2544 = vmatprep.subr.bf16.mxu0 0
      %2545 = vmatpush1.bf16.msra.mxu0 %v2530
      %2546 = vmatprep.subr.bf16.mxu0 0
      %2547 = vmatpush1.bf16.msra.mxu0 0
      %2548 = vmatprep.subr.bf16.mxu0 0
      %2549 = vmatpush1.bf16.msra.mxu0 0
      %2550 = vmatprep.subr.bf16.mxu0 0
      %2551 = vmatpush1.bf16.msra.mxu0 0
      %2552 = vmatprep.subr.bf16.mxu0 0
      %2553 = vmatpush1.bf16.msra.mxu0 0
      %2554 = vmatprep.subr.bf16.mxu0 0
      %2555 = vmatpush1.bf16.msra.mxu0 0
      %2556 = vmatprep.subr.bf16.mxu0 0
      %2557 = vmatpush1.bf16.msra.mxu0 0
      %2558 = vmatprep.subr.bf16.mxu0 0
      %2559 = vmatpush1.bf16.msra.mxu0 0
      %2560 = vmatprep.subr.bf16.mxu0 0
      %2561 = vmatpush1.bf16.msra.mxu0 0
      %2562 = vmatprep.subr.bf16.mxu0 0
      %2563 = vmatpush1.bf16.msra.mxu0 0
      %2564 = vmatprep.subr.bf16.mxu0 0
      %2565 = vmatpush1.bf16.msra.mxu0 0
      %2566 = vmatprep.subr.bf16.mxu0 0
      %2567 = vmatpush1.bf16.msra.mxu0 0
      %2568 = vmatprep.subr.bf16.mxu0 0
      %2569 = vmatpush1.bf16.msra.mxu0 0
      %2570 = vmatprep.mubr.bf16.mxu0 0
      %2571 = vmatmul.mubr.bf16.gmra.mrb[0].mxu0 %v2536
      %v2572 = vpop.f32.mrb[0].mxu0
      %v2573 = vadd.f32 %v2509, %v2572
      %v2574 = vpop.f32.mrb[0].mxu0
      %v2575 = vpop.f32.mrb[0].mxu0
      %v2576 = vpop.f32.mrb[0].mxu0
      %2577 = vdwg.mxu0
      %v2578 = vmul.f32 %v2573, %v2573
      %v2579 = vmul.f32 %v2573, %v2578
      %v2580 = vmul.f32 %v2579, 0.044715
      %v2581 = vadd.f32 %v2573, %v2580
      %v2582 = vmul.f32 %v2581, 0.7978846
      %v2583 = vtanh.pop %v2582
      %v2584 = vadd.f32 %v2583, 1.0
      %v2585 = vmul.f32 %v2584, 0.5
      %v2586 = vmul.f32 %v2573, %v2585
      %v2587 = vpack.c.bf16 %v2586, %v2586
      %v2588 = vld [vmem:[%s778] sm:$0xf]
      %v2589 = vld [vmem:[%s778 + $0x4] sm:$0xf]
      %v2590 = vld [vmem:[%s778 + $0x8] sm:$0xf]
      %v2591 = vld [vmem:[%s778 + $0xc] sm:$0xf]
      %v2592 = vld [vmem:[%s778 + $0x10] sm:$0xf]
      %v2593 = vld [vmem:[%s778 + $0x14] sm:$0xf]
      %v2594 = vld [vmem:[%s778 + $0x18] sm:$0xf]
      %v2595 = vld [vmem:[%s778 + $0x1c] sm:$0xf]
      %v2596 = vld [vmem:[%s778 + $0x20] sm:$0xf]
      %v2597 = vld [vmem:[%s778 + $0x24] sm:$0xf]
      %v2598 = vld [vmem:[%s778 + $0x28] sm:$0xf]
      %v2599 = vld [vmem:[%s778 + $0x2c] sm:$0xf]
      %v2600 = vld [vmem:[%s778 + $0x30] sm:$0xf]
      %v2601 = vld [vmem:[%s778 + $0x34] sm:$0xf]
      %v2602 = vld [vmem:[%s778 + $0x38] sm:$0xf]
      %v2603 = vld [vmem:[%s778 + $0x3c] sm:$0xf]
      %v2604 = vld [vmem:[%s781] sm:$0x1]
      %v2606 = vlaneseq
      %v2607 = vshrl.u32 %v2606, 7
      %v2608 = vsub.s32 0, %v2607
      %v2609 = vrot.slane %v2604, %v2608
      %v2627 = vunpack.c.l.b16 %v2588
      %v2628 = vunpack.c.l.b16 %v2589
      %v2629 = vunpack.c.l.b16 %v2590
      %v2630 = vunpack.c.l.b16 %v2591
      %v2631 = vunpack.c.l.b16 %v2592
      %v2632 = vunpack.c.l.b16 %v2593
      %v2633 = vunpack.c.l.b16 %v2594
      %v2634 = vunpack.c.l.b16 %v2595
      %v2635 = vunpack.c.l.b16 %v2596
      %v2636 = vunpack.c.l.b16 %v2597
      %v2637 = vunpack.c.l.b16 %v2598
      %v2638 = vunpack.c.l.b16 %v2599
      %v2639 = vunpack.c.l.b16 %v2600
      %v2640 = vunpack.c.l.b16 %v2601
      %v2641 = vunpack.c.l.b16 %v2602
      %v2642 = vunpack.c.l.b16 %v2603
      %v2643 = vpack.c.b16 %v2628, %v2627
      %v2644 = vpack.c.b16 %v2630, %v2629
      %v2645 = vpack.c.b16 %v2632, %v2631
      %v2646 = vpack.c.b16 %v2634, %v2633
      %v2647 = vpack.c.b16 %v2636, %v2635
      %v2648 = vpack.c.b16 %v2638, %v2637
      %v2649 = vpack.c.b16 %v2640, %v2639
      %v2650 = vpack.c.b16 %v2642, %v2641
      %2659 = vmatprep.subr.bf16.mxu0 0
      %2660 = vmatpush1.bf16.msra.mxu0 %v2643
      %2661 = vmatprep.subr.bf16.mxu0 0
      %2662 = vmatpush1.bf16.msra.mxu0 %v2644
      %2663 = vmatprep.subr.bf16.mxu0 0
      %2664 = vmatpush1.bf16.msra.mxu0 %v2645
      %2665 = vmatprep.subr.bf16.mxu0 0
      %2666 = vmatpush1.bf16.msra.mxu0 %v2646
      %2667 = vmatprep.subr.bf16.mxu0 0
      %2668 = vmatpush1.bf16.msra.mxu0 %v2647
      %2669 = vmatprep.subr.bf16.mxu0 0
      %2670 = vmatpush1.bf16.msra.mxu0 %v2648
      %2671 = vmatprep.subr.bf16.mxu0 0
      %2672 = vmatpush1.bf16.msra.mxu0 %v2649
      %2673 = vmatprep.subr.bf16.mxu0 0
      %2674 = vmatpush1.bf16.msra.mxu0 %v2650
      %2675 = vmatprep.subr.bf16.mxu0 0
      %2676 = vmatpush1.bf16.msra.mxu0 0
      %2677 = vmatprep.subr.bf16.mxu0 0
      %2678 = vmatpush1.bf16.msra.mxu0 0
      %2679 = vmatprep.subr.bf16.mxu0 0
      %2680 = vmatpush1.bf16.msra.mxu0 0
      %2681 = vmatprep.subr.bf16.mxu0 0
      %2682 = vmatpush1.bf16.msra.mxu0 0
      %2683 = vmatprep.subr.bf16.mxu0 0
      %2684 = vmatpush1.bf16.msra.mxu0 0
      %2685 = vmatprep.subr.bf16.mxu0 0
      %2686 = vmatpush1.bf16.msra.mxu0 0
      %2687 = vmatprep.subr.bf16.mxu0 0
      %2688 = vmatpush1.bf16.msra.mxu0 0
      %2689 = vmatprep.subr.bf16.mxu0 0
      %2690 = vmatpush1.bf16.msra.mxu0 0
      %2691 = vmatprep.mubr.bf16.mxu0 0
      %2692 = vmatmul.mubr.bf16.gmra.mrb[0].mxu0 %v2587
      %v2693 = vpop.f32.mrb[0].mxu0
      %v2694 = vadd.f32 %v2609, %v2693
      %v2695 = vpop.f32.mrb[0].mxu0
      %v2696 = vpop.f32.mrb[0].mxu0
      %v2697 = vpop.f32.mrb[0].mxu0
      %2698 = vdwg.mxu0
      %v2699 = vadd.f32 %v2694, %v2494
      %v2700 = vld [vmem:[%s784] sm:$0x1]
      %v2701 = vld [vmem:[%s787] sm:$0x1]
      %v2702 = vsel %vm871, %v2699, 0.0
      %2703 = vadd.xlane.f32.xlu0 %v2702
      %v2704 = vpop.xlane.xlu0 %2703
      %v2705 = vmul.f32 %v2704, %v2470
      %v2706 = vsub.f32 %v2699, %v2705
      %v2707 = vmul.f32 %v2706, %v2706
      %v2708 = vsel %vm871, %v2707, 0.0
      %2709 = vadd.xlane.f32.xlu0 %v2708
      %v2710 = vpop.xlane.xlu0 %2709
      %v2711 = vmul.f32 %v2710, %v2470
      %v2712 = vadd.f32 %v2711, 1e-12
      %v2713 = vrsqrt.pop %v2712
      %v2714 = vmul.f32 %v2706, %v2713
      %v2716 = vlaneseq
      %v2717 = vshrl.u32 %v2716, 7
      %v2718 = vsub.s32 0, %v2717
      %v2719 = vrot.slane %v2700, %v2718
      %v2721 = vmul.f32 %v2714, %v2719
      %v2723 = vlaneseq
      %v2724 = vshrl.u32 %v2723, 7
      %v2725 = vsub.s32 0, %v2724
      %v2726 = vrot.slane %v2701, %v2725
      %v2728 = vadd.f32 %v2721, %v2726
      %2729 = vst.msk [vmem:[#allocation2] sm:$0xff] %vm871, %v2728
      %p2730 = scmp.eq.s32.totalorder %s35, 1
      // Predicated region
      $region97: #{distilbert_regressor.1} parent=91 // pred_check
        %p2731 = pneg %p2730
      $region98: #{distilbert_regressor.1} parent=91 // pred_check_branch
        %2733 = sbr.rel (%p2731) target = $region100
      $region99: #{distilbert_regressor.1} parent=91 // pred_region
        %v2734 = vld [vmem:[%s16] sm:$0x1]
        %v2735 = vmul.f32 %v2728, %v2734
        %vm2736 = vcmask 516096
        %v2737 = vsel %vm2736, %v2735, 0.0
        %2738 = vadd.xlane.f32.xlu0 %v2737
        %v2739 = vpop.xlane.xlu0 %2738
        %s2740 = sld [smem:[#allocation3]]
        %v2741 = vstv %s2740
        %v2742 = vadd.f32 %v2739, %v2741
        %vm2743 = vcmask 0
        %2744 = vst.msk [vmem:[%s790] sm:$0x1] %vm2743, %v2742
      $region100: #{distilbert_regressor.1} parent=91 // pred_fallthru
        _
      %p2745 = scmp.lt.s32.totalorder %s34, 1
      %s2746 = scalar_select %p2745, %s34, 1
      %s2747 = scalar_lea.vmem %s18, %s2746
      // Predicated region
      $region101: #{distilbert_regressor.1} parent=91 // pred_check
        %p2748 = pneg %p508
      $region102: #{distilbert_regressor.1} parent=91 // pred_check_branch
        %2750 = sbr.rel (%p2748) target = $region104
      $region103: #{distilbert_regressor.1} parent=91 // pred_region
        _
      $region104: #{distilbert_regressor.1} parent=91 // pred_fallthru
        _
    $region92: #{distilbert_regressor.1} parent=5 // pred_fallthru
      _
    %p2751 = scmp.le.s32.totalorder 2, %s25
    // Predicated region
    $region105: #{distilbert_regressor.1} parent=5 // pred_check
      %p2752 = pneg %p2751
    $region106: #{distilbert_regressor.1} parent=5 // pred_check_branch
      %2754 = sbr.rel (%p2752) target = $region108
    $region107: #{distilbert_regressor.1} parent=5 // pred_region
      %s2755 = ssub.s32 %s25, 2
      // Predicated region
      $region109: #{distilbert_regressor.1} parent=107 // pred_check
        %p2756 = pneg %p514
      $region110: #{distilbert_regressor.1} parent=107 // pred_check_branch
        %2758 = sbr.rel (%p2756) target = $region112
      $region111: #{distilbert_regressor.1} parent=107 // pred_region
        %p2759 = scmp.lt.s32.totalorder %s36, 1
        %s2760 = scalar_select %p2759, %s36, 1
        %s2761 = scalar_lea.vmem %s18, %s2760
      $region112: #{distilbert_regressor.1} parent=107 // pred_fallthru
        _
    $region108: #{distilbert_regressor.1} parent=5 // pred_fallthru
      _
  $region6: #{distilbert_regressor.1} parent=0 // loop_footer
    %s29 = sadd.s32 1, %s25
  $region7: #{distilbert_regressor.1} parent=0 // loop_footer_branch
    %24 = sbr.rel target = $region3
  $region8: #{distilbert_regressor.1} parent=0 // loop_exit
    _

</llo_original>
